<compile_context>
chip_gen: v5e
topology: v5e:2x2
jax: 0.10.0
libtpu: 0.0.40
codegen_flags: <defaults>
</compile_context>

<pallas_src>
import functools

import jax
import jax.numpy as jnp
from jax import lax
from jax.experimental import pallas as pl
from jax.experimental.pallas import tpu as pltpu

EPS = 1e-5  # GroupNorm default eps
TAPS = [(dy, dx) for dy in (-1, 0, 1) for dx in (-1, 0, 1)]  # t = ky*3 + kx


def _silu(x):
    return x * jax.nn.sigmoid(x)


def _make_group_matrix(C, groups):
    """(C, C) 0/1 matrix: gmat @ per-channel-partials = per-channel group sums."""
    if groups == C:
        return None
    gs = C // groups
    gid_r = lax.broadcasted_iota(jnp.int32, (C, C), 0) // gs
    gid_c = lax.broadcasted_iota(jnp.int32, (C, C), 1) // gs
    return (gid_r == gid_c).astype(jnp.float32)


def _gn_normalize_2d(h, n_group_elems, gmat):
    """GroupNorm statistics for one image's (C, HW) slab (no affine).

    Two-stage, single-pass reduction: lane-wise sum / sum-of-squares per channel,
    then the tiny (C, 1) partials are folded within each group via a small matmul
    (no (C,HW)->(groups, ...) relayout).
    """
    s1 = jnp.sum(h, axis=1, keepdims=True)          # (C, 1)
    s2 = jnp.sum(h * h, axis=1, keepdims=True)      # (C, 1)
    if gmat is not None:
        s1 = jnp.dot(gmat, s1, preferred_element_type=jnp.float32)
        s2 = jnp.dot(gmat, s2, preferred_element_type=jnp.float32)
    mean = s1 * (1.0 / n_group_elems)
    var = s2 * (1.0 / n_group_elems) - mean * mean
    return (h - mean) * lax.rsqrt(var + EPS)


def _conv3x3(h, w_ref, col_ref, mask_full, W, use_col):
    """3x3 same-padding conv on a lane-folded activation slab.

    h:         (Cin, NB*HW) f32 activations (NB images concatenated along lanes).
    mask_full: (9, NB*HW)   f32 {0,1} boundary-validity per tap.
    use_col:   True  -> im2col slab + one K=9*Cin GEMM (default).
               False -> 9 accumulated K=Cin dots (col-free VMEM escape hatch).
    Returns (O, NB*HW) f32 (no bias).
    """
    Cin, NHW = h.shape
    acc = None
    for t, (dy, dx) in enumerate(TAPS):
        s = dy * W + dx
        # Shifted window via an XLU lane rotation over the folded axis.  Wrapped /
        # cross-image lanes are exactly the boundary-invalid ones -> masked to 0.
        rolled = h if s == 0 else pltpu.roll(h, shift=(-s) % NHW, axis=1)
        tap = rolled * mask_full[t:t + 1, :]
        if use_col:
            col_ref[t * Cin:(t + 1) * Cin, :] = tap.astype(col_ref.dtype)
        else:
            d = jnp.dot(w_ref[t], tap.astype(w_ref.dtype),
                        preferred_element_type=jnp.float32)
            acc = d if acc is None else acc + d
    if use_col:
        # MXU note: GEMM M dim == out_channels; this layout is MXU-efficient when
        # O >= 128 (demo O=32 only uses 12-25% of the MXU rows, but the kernel is
        # not MXU-bound at that size).
        acc = jnp.dot(w_ref[...], col_ref[0:9 * Cin, :],
                      preferred_element_type=jnp.float32)
    return acc


def resblock_kernel(x_ref, embo_ref, mask_ref,
                    g1_ref, bn1_ref, w1_ref,
                    g2_ref, bn2_ref, w2_ref, b2_ref,
                    out_ref, *scratch,
                    H, W, NB, groups, use_col):
    HW = H * W
    col_ref = scratch[0] if use_col else None
    C = x_ref.shape[1]
    O = out_ref.shape[1]

    gmat_c = _make_group_matrix(C, groups)
    gmat_o = gmat_c if O == C else _make_group_matrix(O, groups)
    n_c = (C // groups) * HW
    n_o = (O // groups) * HW

    # ---- in_layers: GroupNorm -> SiLU (per image), then fold batch along lanes --
    parts = []
    for b in range(NB):
        xb = x_ref[b].astype(jnp.float32)                 # (C, HW)
        parts.append(_gn_normalize_2d(xb, n_c, gmat_c))
    hw_slab = jnp.concatenate(parts, axis=1) if NB > 1 else parts[0]   # (C, NB*HW)
    hw_slab = _silu(hw_slab * g1_ref[...] + bn1_ref[...])

    mask = mask_ref[...]                                   # (9, HW), precomputed
    mask_full = jnp.concatenate([mask] * NB, axis=1) if NB > 1 else mask

    # ---- conv_nd(C -> O, 3x3, pad 1): one wide-N GEMM (or col-free 9-dot) ------
    h1 = _conv3x3(hw_slab, w1_ref, col_ref, mask_full, W, use_col)     # (O, NB*HW)

    # ---- + timestep embedding (conv1 bias pre-folded into emb_out) -------------
    # ---- out_layers: GroupNorm (per image) -> SiLU -> Dropout(eval) -> conv ----
    parts = []
    for b in range(NB):
        hb = h1[:, b * HW:(b + 1) * HW] + embo_ref[b]      # (O, HW) + (O, 1)
        parts.append(_gn_normalize_2d(hb, n_o, gmat_o))
    h2 = jnp.concatenate(parts, axis=1) if NB > 1 else parts[0]
    h2 = _silu(h2 * g2_ref[...] + bn2_ref[...])
    # TODO(synk): nn.Dropout modeled as identity (eval-mode semantics only).

    h2 = _conv3x3(h2, w2_ref, col_ref, mask_full, W, use_col) + b2_ref[...]

    # ---- skip connection: Identity (out_channels == channels) ------------------
    for b in range(NB):
        out_ref[b] = (x_ref[b].astype(jnp.float32)
                      + h2[:, b * HW:(b + 1) * HW]).astype(out_ref.dtype)


def resblock_forward(x_nchw, emb, params, *, H, W, groups=32,
                     batch_block=None, act_dtype=jnp.bfloat16,
                     force_no_col=False):
    """ResBlock forward (out_channels == channels, no up/down, eval-mode dropout).

    `params` holds PyTorch-shaped tensors; all layout packing / dtype casts are
    done here (in a real model, pre-pack the weights once outside the hot path).
    """
    B, C = x_nchw.shape[0], x_nchw.shape[1]
    O = params["w1"].shape[0]
    HW = H * W
    # TODO(synk): conv skip_connection (out_channels != channels) not implemented.
    assert O == C, "Identity skip only (out_channels == channels)."
    assert C % groups == 0 and O % groups == 0
    assert C % 16 == 0 and O % 16 == 0, "bf16 im2col rows assume /16 channel counts"
    assert HW % 128 == 0, "lane-dense layout wants H*W to be a multiple of 128"

    # Images per grid step: fold the whole batch by default (best on 1-TC v5e/v6e).
    # On v7x pass batch_block=B//2 so the batch axis keeps >=2 grid steps for the
    # two TensorCores (and consider pltpu.CORE_PARALLEL on that axis).
    NB = B if batch_block is None else batch_block
    assert B % NB == 0
    NHW = NB * HW

    # bf16 activations in/out (HBM-bandwidth bound at real sizes); channel-major
    # (C, HW) layout: NCHW flattened IS (C, HW), so no wrapper transpose.
    x = x_nchw.reshape(B, C, HW).astype(act_dtype)

    # timestep_emb_layers (SiLU -> Linear) hoisted to XLA; conv1 bias folded in.
    emb_out = (_silu(emb.astype(jnp.float32)) @ params["wl"].T.astype(jnp.float32)
               + params["bl"] + params["b1"])
    emb_out = emb_out.reshape(B, O, 1).astype(jnp.float32)

    # 9 boundary-validity masks (one per 3x3 tap), precomputed once in the wrapper.
    yy = jnp.arange(H).reshape(H, 1)
    xx = jnp.arange(W).reshape(1, W)
    mask9 = jnp.stack([
        ((yy + dy >= 0) & (yy + dy < H) & (xx + dx >= 0) & (xx + dx < W)).reshape(HW)
        for dy, dx in TAPS]).astype(jnp.float32)                     # (9, HW)

    # col-GEMM vs col-free 9-dot escape hatch (keeps VMEM bounded at big C*HW).
    col_bytes = 9 * max(C, O) * NHW * 2
    use_col = (not force_no_col) and col_bytes <= (12 << 20)

    if use_col:
        # tap-major contraction order: k = (ky*3+kx)*Cin + c (matches col rows).
        w1k = jnp.transpose(params["w1"], (0, 2, 3, 1)).reshape(O, 9 * C).astype(jnp.bfloat16)
        w2k = jnp.transpose(params["w2"], (0, 2, 3, 1)).reshape(O, 9 * O).astype(jnp.bfloat16)
        w1_spec = pl.BlockSpec((O, 9 * C), lambda b: (0, 0))
        w2_spec = pl.BlockSpec((O, 9 * O), lambda b: (0, 0))
        # single reused im2col slab for BOTH convs (col1 is dead before col2).
        scratch = [pltpu.VMEM((9 * max(C, O), NHW), jnp.bfloat16)]
    else:
        # per-tap weight planes: w[t] is the (O, Cin) matrix for tap t.
        w1k = jnp.transpose(params["w1"], (2, 3, 0, 1)).reshape(9, O, C).astype(jnp.bfloat16)
        w2k = jnp.transpose(params["w2"], (2, 3, 0, 1)).reshape(9, O, O).astype(jnp.bfloat16)
        w1_spec = pl.BlockSpec((9, O, C), lambda b: (0, 0, 0))
        w2_spec = pl.BlockSpec((9, O, O), lambda b: (0, 0, 0))
        scratch = []

    g1 = params["g1"].reshape(C, 1).astype(jnp.float32)
    bn1 = params["bn1"].reshape(C, 1).astype(jnp.float32)
    g2 = params["g2"].reshape(O, 1).astype(jnp.float32)
    bn2 = params["bn2"].reshape(O, 1).astype(jnp.float32)
    b2 = params["b2"].reshape(O, 1).astype(jnp.float32)

    # VMEM budget: blocks are double-buffered by the pipeline; leave headroom.
    actb = jnp.dtype(act_dtype).itemsize
    need = (2 * NB * C * HW * actb + 2 * NB * O * HW * actb       # x / out blocks
            + 2 * (w1k.size + w2k.size) * 2                       # bf16 weights
            + (9 * max(C, O) * NHW * 2 if use_col else 0)         # im2col slab
            + 6 * max(C, O) * NHW * 4)                            # live f32 temps
    vmem_limit = int(min(max(32 << 20, int(need * 1.5)), 64 << 20))

    grid_spec = pltpu.PrefetchScalarGridSpec(
        num_scalar_prefetch=0,
        grid=(B // NB,),
        in_specs=[
            pl.BlockSpec((NB, C, HW), lambda b: (b, 0, 0)),   # x (channel-major)
            pl.BlockSpec((NB, O, 1), lambda b: (b, 0, 0)),    # emb_out (+conv1 bias)
            pl.BlockSpec((9, HW), lambda b: (0, 0)),          # tap validity masks
            pl.BlockSpec((C, 1), lambda b: (0, 0)),           # gn1 gamma
            pl.BlockSpec((C, 1), lambda b: (0, 0)),           # gn1 beta
            w1_spec,                                          # conv1 w (bf16)
            pl.BlockSpec((O, 1), lambda b: (0, 0)),           # gn2 gamma
            pl.BlockSpec((O, 1), lambda b: (0, 0)),           # gn2 beta
            w2_spec,                                          # conv2 w (bf16)
            pl.BlockSpec((O, 1), lambda b: (0, 0)),           # conv2 bias
        ],
        out_specs=pl.BlockSpec((NB, O, HW), lambda b: (b, 0, 0)),
        scratch_shapes=scratch,
    )

    out = pl.pallas_call(
        functools.partial(resblock_kernel, H=H, W=W, NB=NB, groups=groups,
                          use_col=use_col),
        out_shape=jax.ShapeDtypeStruct((B, O, HW), act_dtype),
        grid_spec=grid_spec,
        compiler_params=pltpu.CompilerParams(
            dimension_semantics=("parallel",),
            vmem_limit_bytes=vmem_limit),
    )(x, emb_out, mask9, g1, bn1, w1k, g2, bn2, w2k, b2)

    return out.reshape(B, O, H, W)


def ref_forward(x, emb, p, groups):
    """Pure-JAX f32 reference (NCHW), mirrors the PyTorch forward."""
    B_ = x.shape[0]

    def gn(h, g, b):
        c = h.shape[1]
        hg = h.reshape(B_, groups, c // groups, h.shape[2], h.shape[3])
        mean = hg.mean(axis=(2, 3, 4), keepdims=True)
        var = ((hg - mean) ** 2).mean(axis=(2, 3, 4), keepdims=True)
        hn = ((hg - mean) / jnp.sqrt(var + EPS)).reshape(h.shape)
        return hn * g[None, :, None, None] + b[None, :, None, None]

    def conv(h, w, b):
        y = lax.conv_general_dilated(
            h, w, (1, 1), ((1, 1), (1, 1)),
            dimension_numbers=("NCHW", "OIHW", "NCHW"))
        return y + b[None, :, None, None]

    h = _silu(gn(x, p["g1"], p["bn1"]))
    h = conv(h, p["w1"], p["b1"])
    e = _silu(emb) @ p["wl"].T + p["bl"]
    h = h + e[:, :, None, None]
    h = _silu(gn(h, p["g2"], p["bn2"]))
    h = conv(h, p["w2"], p["b2"])
    return x + h


if __name__ == "__main__":
    B, C, H, W = 2, 32, 16, 16
    O = C            # out_channels=0 -> out_channels == channels -> Identity skip
    E = 64           # timestep_emb_channels
    key = jax.random.PRNGKey(0)
    ks = jax.random.split(key, 8)

    x = jax.random.normal(ks[0], (B, C, H, W), jnp.float32)
    emb = jax.random.normal(ks[1], (B, E), jnp.float32)

    # Parameters (PyTorch-style shapes), deterministic init.
    params = dict(
        g1=jnp.ones((C,), jnp.float32), bn1=jnp.zeros((C,), jnp.float32),
        w1=0.05 * jax.random.normal(ks[2], (O, C, 3, 3), jnp.float32),
        b1=0.05 * jax.random.normal(ks[3], (O,), jnp.float32),
        wl=0.05 * jax.random.normal(ks[4], (O, E), jnp.float32),
        bl=0.05 * jax.random.normal(ks[5], (O,), jnp.float32),
        g2=jnp.ones((O,), jnp.float32), bn2=jnp.zeros((O,), jnp.float32),
        # NOTE: PyTorch zero_module() zeros the final conv; random here so the
        # kernel's second conv path is actually exercised (same shapes).
        w2=0.05 * jax.random.normal(ks[6], (O, O, 3, 3), jnp.float32),
        b2=0.05 * jax.random.normal(ks[7], (O,), jnp.float32),
    )

    # bf16 activations + bf16 MXU operands (f32 accumulation/stats) -> tolerance.
    RTOL = ATOL = 3e-2

    # Run 1: default path — im2col GEMM, GroupNorm(32, 32) (group size 1).
    out = resblock_forward(x, emb, params, H=H, W=W, groups=32)
    out = jax.block_until_ready(out).astype(jnp.float32)
    ref = ref_forward(x, emb, params, groups=32)
    assert out.shape == (B, O, H, W)
    assert jnp.allclose(out, ref, rtol=RTOL, atol=ATOL), \
        float(jnp.max(jnp.abs(out - ref)))

    # Run 2: col-free 9-dot fallback (VMEM escape hatch) + grouped GroupNorm path
    # (exercises the general groups < channels statistics code).
    out2 = resblock_forward(x, emb, params, H=H, W=W, groups=8, force_no_col=True)
    out2 = jax.block_until_ready(out2).astype(jnp.float32)
    ref2 = ref_forward(x, emb, params, groups=8)
    assert jnp.allclose(out2, ref2, rtol=RTOL, atol=ATOL), \
        float(jnp.max(jnp.abs(out2 - ref2)))

    print("KERNEL_OK")
</pallas_src>

<mosaic_0001>
module attributes {stable_mosaic.version = 11 : i64} {
  func.func @resblock_kernel(%arg0: i32, %arg1: memref<2x32x256xbf16, #tpu.memory_space<vmem>>, %arg2: memref<2x32x1xf32, #tpu.memory_space<vmem>>, %arg3: memref<9x256xf32, #tpu.memory_space<vmem>>, %arg4: memref<32x1xf32, #tpu.memory_space<vmem>>, %arg5: memref<32x1xf32, #tpu.memory_space<vmem>>, %arg6: memref<32x288xbf16, #tpu.memory_space<vmem>>, %arg7: memref<32x1xf32, #tpu.memory_space<vmem>>, %arg8: memref<32x1xf32, #tpu.memory_space<vmem>>, %arg9: memref<32x288xbf16, #tpu.memory_space<vmem>>, %arg10: memref<32x1xf32, #tpu.memory_space<vmem>>, %arg11: memref<2x32x256xbf16, #tpu.memory_space<vmem>>, %arg12: memref<288x512xbf16, #tpu.memory_space<vmem>>) attributes {dimension_semantics = [#tpu.dimension_semantics<parallel>], iteration_bounds = array<i64: 1>, scalar_prefetch = 0 : i64, scratch_operands = 1 : i64, tpu.core_type = #tpu.core_type<tc>, window_params = [{transform_indices = @transform_0, window_bounds = array<i64: 2, 32, 256>}, {transform_indices = @transform_1, window_bounds = array<i64: 2, 32, 1>}, {pipeline_mode = #tpu.pipeline_mode<synchronous>, transform_indices = @transform_2, window_bounds = array<i64: 9, 256>}, {pipeline_mode = #tpu.pipeline_mode<synchronous>, transform_indices = @transform_3, window_bounds = array<i64: 32, 1>}, {pipeline_mode = #tpu.pipeline_mode<synchronous>, transform_indices = @transform_4, window_bounds = array<i64: 32, 1>}, {pipeline_mode = #tpu.pipeline_mode<synchronous>, transform_indices = @transform_5, window_bounds = array<i64: 32, 288>}, {pipeline_mode = #tpu.pipeline_mode<synchronous>, transform_indices = @transform_6, window_bounds = array<i64: 32, 1>}, {pipeline_mode = #tpu.pipeline_mode<synchronous>, transform_indices = @transform_7, window_bounds = array<i64: 32, 1>}, {pipeline_mode = #tpu.pipeline_mode<synchronous>, transform_indices = @transform_8, window_bounds = array<i64: 32, 288>}, {pipeline_mode = #tpu.pipeline_mode<synchronous>, transform_indices = @transform_9, window_bounds = array<i64: 32, 1>}, {transform_indices = @transform_10, window_bounds = array<i64: 2, 32, 256>}]} {
    %c0 = arith.constant 0 : index
    %c0_0 = arith.constant 0 : index
    %c0_1 = arith.constant 0 : index
    %0 = vector.load %arg1[%c0, %c0_0, %c0_1] : memref<2x32x256xbf16, #tpu.memory_space<vmem>>, vector<1x32x256xbf16>
    %1 = vector.shape_cast %0 : vector<1x32x256xbf16> to vector<32x256xbf16>
    %2 = arith.extf %1 : vector<32x256xbf16> to vector<32x256xf32>
    %cst = arith.constant dense<0.000000e+00> : vector<32xf32>
    %3 = vector.multi_reduction <add>, %2, %cst [1] : vector<32x256xf32> to vector<32xf32>
    %4 = vector.shape_cast %3 : vector<32xf32> to vector<32x1xf32>
    %5 = arith.mulf %2, %2 : vector<32x256xf32>
    %cst_2 = arith.constant dense<0.000000e+00> : vector<32xf32>
    %6 = vector.multi_reduction <add>, %5, %cst_2 [1] : vector<32x256xf32> to vector<32xf32>
    %7 = vector.shape_cast %6 : vector<32xf32> to vector<32x1xf32>
    %cst_3 = arith.constant 3.906250e-03 : f32
    %8 = vector.broadcast %cst_3 : f32 to vector<32x1xf32>
    %9 = arith.mulf %4, %8 : vector<32x1xf32>
    %cst_4 = arith.constant 3.906250e-03 : f32
    %10 = vector.broadcast %cst_4 : f32 to vector<32x1xf32>
    %11 = arith.mulf %7, %10 : vector<32x1xf32>
    %12 = arith.mulf %9, %9 : vector<32x1xf32>
    %13 = arith.subf %11, %12 : vector<32x1xf32>
    %14 = vector.broadcast %9 : vector<32x1xf32> to vector<32x256xf32>
    %15 = arith.subf %2, %14 : vector<32x256xf32>
    %cst_5 = arith.constant 9.99999974E-6 : f32
    %16 = vector.broadcast %cst_5 : f32 to vector<32x1xf32>
    %17 = arith.addf %13, %16 : vector<32x1xf32>
    %18 = math.rsqrt %17 : vector<32x1xf32>
    %19 = vector.broadcast %18 : vector<32x1xf32> to vector<32x256xf32>
    %20 = arith.mulf %15, %19 : vector<32x256xf32>
    %c1 = arith.constant 1 : index
    %c0_6 = arith.constant 0 : index
    %c0_7 = arith.constant 0 : index
    %21 = vector.load %arg1[%c1, %c0_6, %c0_7] : memref<2x32x256xbf16, #tpu.memory_space<vmem>>, vector<1x32x256xbf16>
    %22 = vector.shape_cast %21 : vector<1x32x256xbf16> to vector<32x256xbf16>
    %23 = arith.extf %22 : vector<32x256xbf16> to vector<32x256xf32>
    %cst_8 = arith.constant dense<0.000000e+00> : vector<32xf32>
    %24 = vector.multi_reduction <add>, %23, %cst_8 [1] : vector<32x256xf32> to vector<32xf32>
    %25 = vector.shape_cast %24 : vector<32xf32> to vector<32x1xf32>
    %26 = arith.mulf %23, %23 : vector<32x256xf32>
    %cst_9 = arith.constant dense<0.000000e+00> : vector<32xf32>
    %27 = vector.multi_reduction <add>, %26, %cst_9 [1] : vector<32x256xf32> to vector<32xf32>
    %28 = vector.shape_cast %27 : vector<32xf32> to vector<32x1xf32>
    %cst_10 = arith.constant 3.906250e-03 : f32
    %29 = vector.broadcast %cst_10 : f32 to vector<32x1xf32>
    %30 = arith.mulf %25, %29 : vector<32x1xf32>
    %cst_11 = arith.constant 3.906250e-03 : f32
    %31 = vector.broadcast %cst_11 : f32 to vector<32x1xf32>
    %32 = arith.mulf %28, %31 : vector<32x1xf32>
    %33 = arith.mulf %30, %30 : vector<32x1xf32>
    %34 = arith.subf %32, %33 : vector<32x1xf32>
    %35 = vector.broadcast %30 : vector<32x1xf32> to vector<32x256xf32>
    %36 = arith.subf %23, %35 : vector<32x256xf32>
    %cst_12 = arith.constant 9.99999974E-6 : f32
    %37 = vector.broadcast %cst_12 : f32 to vector<32x1xf32>
    %38 = arith.addf %34, %37 : vector<32x1xf32>
    %39 = math.rsqrt %38 : vector<32x1xf32>
    %40 = vector.broadcast %39 : vector<32x1xf32> to vector<32x256xf32>
    %41 = arith.mulf %36, %40 : vector<32x256xf32>
    %42 = tpu.concatenate %20, %41 in 1 : vector<32x256xf32>, vector<32x256xf32> -> vector<32x512xf32>
    %c0_13 = arith.constant 0 : index
    %c0_14 = arith.constant 0 : index
    %43 = vector.load %arg4[%c0_13, %c0_14] : memref<32x1xf32, #tpu.memory_space<vmem>>, vector<32x1xf32>
    %44 = vector.broadcast %43 : vector<32x1xf32> to vector<32x512xf32>
    %45 = arith.mulf %42, %44 : vector<32x512xf32>
    %c0_15 = arith.constant 0 : index
    %c0_16 = arith.constant 0 : index
    %46 = vector.load %arg5[%c0_15, %c0_16] : memref<32x1xf32, #tpu.memory_space<vmem>>, vector<32x1xf32>
    %47 = vector.broadcast %46 : vector<32x1xf32> to vector<32x512xf32>
    %48 = arith.addf %45, %47 : vector<32x512xf32>
    %49 = arith.negf %48 : vector<32x512xf32>
    %50 = math.exp %49 : vector<32x512xf32>
    %cst_17 = arith.constant 1.000000e+00 : f32
    %51 = vector.broadcast %cst_17 : f32 to vector<32x512xf32>
    %52 = arith.addf %51, %50 : vector<32x512xf32>
    %53 = arith.divf %51, %52 : vector<32x512xf32>
    %54 = arith.mulf %48, %53 : vector<32x512xf32>
    %c0_18 = arith.constant 0 : index
    %c0_19 = arith.constant 0 : index
    %55 = vector.load %arg3[%c0_18, %c0_19] : memref<9x256xf32, #tpu.memory_space<vmem>>, vector<9x256xf32>
    %56 = tpu.concatenate %55, %55 in 1 : vector<9x256xf32>, vector<9x256xf32> -> vector<9x512xf32>
    %c17_i32 = arith.constant 17 : i32
    %57 = tpu.dynamic_rotate %54 by %c17_i32 dim 1 : vector<32x512xf32>, i32 -> vector<32x512xf32>
    %58 = vector.extract_strided_slice %56 {offsets = [0, 0], sizes = [1, 512], strides = [1, 1]} : vector<9x512xf32> to vector<1x512xf32>
    %59 = vector.broadcast %58 : vector<1x512xf32> to vector<32x512xf32>
    %60 = arith.mulf %57, %59 : vector<32x512xf32>
    %61 = arith.truncf %60 : vector<32x512xf32> to vector<32x512xbf16>
    %c0_20 = arith.constant 0 : index
    %c0_21 = arith.constant 0 : index
    %62 = vector.load %arg12[%c0_20, %c0_21] : memref<288x512xbf16, #tpu.memory_space<vmem>>, vector<32x512xbf16>
    tpu.vector_store %arg12[%c0_20, %c0_21], %61 {strides = array<i32>} : memref<288x512xbf16, #tpu.memory_space<vmem>>, vector<32x512xbf16>,
    %c16_i32 = arith.constant 16 : i32
    %63 = tpu.dynamic_rotate %54 by %c16_i32 dim 1 : vector<32x512xf32>, i32 -> vector<32x512xf32>
    %64 = vector.extract_strided_slice %56 {offsets = [1, 0], sizes = [1, 512], strides = [1, 1]} : vector<9x512xf32> to vector<1x512xf32>
    %65 = vector.broadcast %64 : vector<1x512xf32> to vector<32x512xf32>
    %66 = arith.mulf %63, %65 : vector<32x512xf32>
    %67 = arith.truncf %66 : vector<32x512xf32> to vector<32x512xbf16>
    %c32 = arith.constant 32 : index
    %c0_22 = arith.constant 0 : index
    %68 = vector.load %arg12[%c32, %c0_22] : memref<288x512xbf16, #tpu.memory_space<vmem>>, vector<32x512xbf16>
    tpu.vector_store %arg12[%c32, %c0_22], %67 {strides = array<i32>} : memref<288x512xbf16, #tpu.memory_space<vmem>>, vector<32x512xbf16>,
    %c15_i32 = arith.constant 15 : i32
    %69 = tpu.dynamic_rotate %54 by %c15_i32 dim 1 : vector<32x512xf32>, i32 -> vector<32x512xf32>
    %70 = vector.extract_strided_slice %56 {offsets = [2, 0], sizes = [1, 512], strides = [1, 1]} : vector<9x512xf32> to vector<1x512xf32>
    %71 = vector.broadcast %70 : vector<1x512xf32> to vector<32x512xf32>
    %72 = arith.mulf %69, %71 : vector<32x512xf32>
    %73 = arith.truncf %72 : vector<32x512xf32> to vector<32x512xbf16>
    %c64 = arith.constant 64 : index
    %c0_23 = arith.constant 0 : index
    %74 = vector.load %arg12[%c64, %c0_23] : memref<288x512xbf16, #tpu.memory_space<vmem>>, vector<32x512xbf16>
    tpu.vector_store %arg12[%c64, %c0_23], %73 {strides = array<i32>} : memref<288x512xbf16, #tpu.memory_space<vmem>>, vector<32x512xbf16>,
    %c1_i32 = arith.constant 1 : i32
    %75 = tpu.dynamic_rotate %54 by %c1_i32 dim 1 : vector<32x512xf32>, i32 -> vector<32x512xf32>
    %76 = vector.extract_strided_slice %56 {offsets = [3, 0], sizes = [1, 512], strides = [1, 1]} : vector<9x512xf32> to vector<1x512xf32>
    %77 = vector.broadcast %76 : vector<1x512xf32> to vector<32x512xf32>
    %78 = arith.mulf %75, %77 : vector<32x512xf32>
    %79 = arith.truncf %78 : vector<32x512xf32> to vector<32x512xbf16>
    %c96 = arith.constant 96 : index
    %c0_24 = arith.constant 0 : index
    %80 = vector.load %arg12[%c96, %c0_24] : memref<288x512xbf16, #tpu.memory_space<vmem>>, vector<32x512xbf16>
    tpu.vector_store %arg12[%c96, %c0_24], %79 {strides = array<i32>} : memref<288x512xbf16, #tpu.memory_space<vmem>>, vector<32x512xbf16>,
    %81 = vector.extract_strided_slice %56 {offsets = [4, 0], sizes = [1, 512], strides = [1, 1]} : vector<9x512xf32> to vector<1x512xf32>
    %82 = vector.broadcast %81 : vector<1x512xf32> to vector<32x512xf32>
    %83 = arith.mulf %54, %82 : vector<32x512xf32>
    %84 = arith.truncf %83 : vector<32x512xf32> to vector<32x512xbf16>
    %c128 = arith.constant 128 : index
    %c0_25 = arith.constant 0 : index
    %85 = vector.load %arg12[%c128, %c0_25] : memref<288x512xbf16, #tpu.memory_space<vmem>>, vector<32x512xbf16>
    tpu.vector_store %arg12[%c128, %c0_25], %84 {strides = array<i32>} : memref<288x512xbf16, #tpu.memory_space<vmem>>, vector<32x512xbf16>,
    %c511_i32 = arith.constant 511 : i32
    %86 = tpu.dynamic_rotate %54 by %c511_i32 dim 1 : vector<32x512xf32>, i32 -> vector<32x512xf32>
    %87 = vector.extract_strided_slice %56 {offsets = [5, 0], sizes = [1, 512], strides = [1, 1]} : vector<9x512xf32> to vector<1x512xf32>
    %88 = vector.broadcast %87 : vector<1x512xf32> to vector<32x512xf32>
    %89 = arith.mulf %86, %88 : vector<32x512xf32>
    %90 = arith.truncf %89 : vector<32x512xf32> to vector<32x512xbf16>
    %c160 = arith.constant 160 : index
    %c0_26 = arith.constant 0 : index
    %91 = vector.load %arg12[%c160, %c0_26] : memref<288x512xbf16, #tpu.memory_space<vmem>>, vector<32x512xbf16>
    tpu.vector_store %arg12[%c160, %c0_26], %90 {strides = array<i32>} : memref<288x512xbf16, #tpu.memory_space<vmem>>, vector<32x512xbf16>,
    %c497_i32 = arith.constant 497 : i32
    %92 = tpu.dynamic_rotate %54 by %c497_i32 dim 1 : vector<32x512xf32>, i32 -> vector<32x512xf32>
    %93 = vector.extract_strided_slice %56 {offsets = [6, 0], sizes = [1, 512], strides = [1, 1]} : vector<9x512xf32> to vector<1x512xf32>
    %94 = vector.broadcast %93 : vector<1x512xf32> to vector<32x512xf32>
    %95 = arith.mulf %92, %94 : vector<32x512xf32>
    %96 = arith.truncf %95 : vector<32x512xf32> to vector<32x512xbf16>
    %c192 = arith.constant 192 : index
    %c0_27 = arith.constant 0 : index
    %97 = vector.load %arg12[%c192, %c0_27] : memref<288x512xbf16, #tpu.memory_space<vmem>>, vector<32x512xbf16>
    tpu.vector_store %arg12[%c192, %c0_27], %96 {strides = array<i32>} : memref<288x512xbf16, #tpu.memory_space<vmem>>, vector<32x512xbf16>,
    %c496_i32 = arith.constant 496 : i32
    %98 = tpu.dynamic_rotate %54 by %c496_i32 dim 1 : vector<32x512xf32>, i32 -> vector<32x512xf32>
    %99 = vector.extract_strided_slice %56 {offsets = [7, 0], sizes = [1, 512], strides = [1, 1]} : vector<9x512xf32> to vector<1x512xf32>
    %100 = vector.broadcast %99 : vector<1x512xf32> to vector<32x512xf32>
    %101 = arith.mulf %98, %100 : vector<32x512xf32>
    %102 = arith.truncf %101 : vector<32x512xf32> to vector<32x512xbf16>
    %c224 = arith.constant 224 : index
    %c0_28 = arith.constant 0 : index
    %103 = vector.load %arg12[%c224, %c0_28] : memref<288x512xbf16, #tpu.memory_space<vmem>>, vector<32x512xbf16>
    tpu.vector_store %arg12[%c224, %c0_28], %102 {strides = array<i32>} : memref<288x512xbf16, #tpu.memory_space<vmem>>, vector<32x512xbf16>,
    %c495_i32 = arith.constant 495 : i32
    %104 = tpu.dynamic_rotate %54 by %c495_i32 dim 1 : vector<32x512xf32>, i32 -> vector<32x512xf32>
    %105 = vector.extract_strided_slice %56 {offsets = [8, 0], sizes = [1, 512], strides = [1, 1]} : vector<9x512xf32> to vector<1x512xf32>
    %106 = vector.broadcast %105 : vector<1x512xf32> to vector<32x512xf32>
    %107 = arith.mulf %104, %106 : vector<32x512xf32>
    %108 = arith.truncf %107 : vector<32x512xf32> to vector<32x512xbf16>
    %c256 = arith.constant 256 : index
    %c0_29 = arith.constant 0 : index
    %109 = vector.load %arg12[%c256, %c0_29] : memref<288x512xbf16, #tpu.memory_space<vmem>>, vector<32x512xbf16>
    tpu.vector_store %arg12[%c256, %c0_29], %108 {strides = array<i32>} : memref<288x512xbf16, #tpu.memory_space<vmem>>, vector<32x512xbf16>,
    %c0_30 = arith.constant 0 : index
    %c0_31 = arith.constant 0 : index
    %110 = vector.load %arg6[%c0_30, %c0_31] : memref<32x288xbf16, #tpu.memory_space<vmem>>, vector<32x288xbf16>
    %c0_32 = arith.constant 0 : index
    %c0_33 = arith.constant 0 : index
    %111 = vector.load %arg12[%c0_32, %c0_33] : memref<288x512xbf16, #tpu.memory_space<vmem>>, vector<288x512xbf16>
    %cst_34 = arith.constant dense<0.000000e+00> : vector<32x512xf32>
    %112 = tpu.matmul %110, %111, %cst_34 {dimension_numbers = #tpu.dot_dimension_numbers<[1], [0], [0], [1], [0, 0, 1, 1], [], []>} : vector<32x288xbf16>, vector<288x512xbf16>, vector<32x512xf32> -> vector<32x512xf32>
    %113 = vector.extract_strided_slice %112 {offsets = [0, 0], sizes = [32, 256], strides = [1, 1]} : vector<32x512xf32> to vector<32x256xf32>
    %c0_35 = arith.constant 0 : index
    %c0_36 = arith.constant 0 : index
    %c0_37 = arith.constant 0 : index
    %114 = vector.load %arg2[%c0_35, %c0_36, %c0_37] : memref<2x32x1xf32, #tpu.memory_space<vmem>>, vector<1x32x1xf32>
    %115 = vector.shape_cast %114 : vector<1x32x1xf32> to vector<32x1xf32>
    %116 = vector.broadcast %115 : vector<32x1xf32> to vector<32x256xf32>
    %117 = arith.addf %113, %116 : vector<32x256xf32>
    %cst_38 = arith.constant dense<0.000000e+00> : vector<32xf32>
    %118 = vector.multi_reduction <add>, %117, %cst_38 [1] : vector<32x256xf32> to vector<32xf32>
    %119 = vector.shape_cast %118 : vector<32xf32> to vector<32x1xf32>
    %120 = arith.mulf %117, %117 : vector<32x256xf32>
    %cst_39 = arith.constant dense<0.000000e+00> : vector<32xf32>
    %121 = vector.multi_reduction <add>, %120, %cst_39 [1] : vector<32x256xf32> to vector<32xf32>
    %122 = vector.shape_cast %121 : vector<32xf32> to vector<32x1xf32>
    %cst_40 = arith.constant 3.906250e-03 : f32
    %123 = vector.broadcast %cst_40 : f32 to vector<32x1xf32>
    %124 = arith.mulf %119, %123 : vector<32x1xf32>
    %cst_41 = arith.constant 3.906250e-03 : f32
    %125 = vector.broadcast %cst_41 : f32 to vector<32x1xf32>
    %126 = arith.mulf %122, %125 : vector<32x1xf32>
    %127 = arith.mulf %124, %124 : vector<32x1xf32>
    %128 = arith.subf %126, %127 : vector<32x1xf32>
    %129 = vector.broadcast %124 : vector<32x1xf32> to vector<32x256xf32>
    %130 = arith.subf %117, %129 : vector<32x256xf32>
    %cst_42 = arith.constant 9.99999974E-6 : f32
    %131 = vector.broadcast %cst_42 : f32 to vector<32x1xf32>
    %132 = arith.addf %128, %131 : vector<32x1xf32>
    %133 = math.rsqrt %132 : vector<32x1xf32>
    %134 = vector.broadcast %133 : vector<32x1xf32> to vector<32x256xf32>
    %135 = arith.mulf %130, %134 : vector<32x256xf32>
    %136 = vector.extract_strided_slice %112 {offsets = [0, 256], sizes = [32, 256], strides = [1, 1]} : vector<32x512xf32> to vector<32x256xf32>
    %c1_43 = arith.constant 1 : index
    %c0_44 = arith.constant 0 : index
    %c0_45 = arith.constant 0 : index
    %137 = vector.load %arg2[%c1_43, %c0_44, %c0_45] : memref<2x32x1xf32, #tpu.memory_space<vmem>>, vector<1x32x1xf32>
    %138 = vector.shape_cast %137 : vector<1x32x1xf32> to vector<32x1xf32>
    %139 = vector.broadcast %138 : vector<32x1xf32> to vector<32x256xf32>
    %140 = arith.addf %136, %139 : vector<32x256xf32>
    %cst_46 = arith.constant dense<0.000000e+00> : vector<32xf32>
    %141 = vector.multi_reduction <add>, %140, %cst_46 [1] : vector<32x256xf32> to vector<32xf32>
    %142 = vector.shape_cast %141 : vector<32xf32> to vector<32x1xf32>
    %143 = arith.mulf %140, %140 : vector<32x256xf32>
    %cst_47 = arith.constant dense<0.000000e+00> : vector<32xf32>
    %144 = vector.multi_reduction <add>, %143, %cst_47 [1] : vector<32x256xf32> to vector<32xf32>
    %145 = vector.shape_cast %144 : vector<32xf32> to vector<32x1xf32>
    %cst_48 = arith.constant 3.906250e-03 : f32
    %146 = vector.broadcast %cst_48 : f32 to vector<32x1xf32>
    %147 = arith.mulf %142, %146 : vector<32x1xf32>
    %cst_49 = arith.constant 3.906250e-03 : f32
    %148 = vector.broadcast %cst_49 : f32 to vector<32x1xf32>
    %149 = arith.mulf %145, %148 : vector<32x1xf32>
    %150 = arith.mulf %147, %147 : vector<32x1xf32>
    %151 = arith.subf %149, %150 : vector<32x1xf32>
    %152 = vector.broadcast %147 : vector<32x1xf32> to vector<32x256xf32>
    %153 = arith.subf %140, %152 : vector<32x256xf32>
    %cst_50 = arith.constant 9.99999974E-6 : f32
    %154 = vector.broadcast %cst_50 : f32 to vector<32x1xf32>
    %155 = arith.addf %151, %154 : vector<32x1xf32>
    %156 = math.rsqrt %155 : vector<32x1xf32>
    %157 = vector.broadcast %156 : vector<32x1xf32> to vector<32x256xf32>
    %158 = arith.mulf %153, %157 : vector<32x256xf32>
    %159 = tpu.concatenate %135, %158 in 1 : vector<32x256xf32>, vector<32x256xf32> -> vector<32x512xf32>
    %c0_51 = arith.constant 0 : index
    %c0_52 = arith.constant 0 : index
    %160 = vector.load %arg7[%c0_51, %c0_52] : memref<32x1xf32, #tpu.memory_space<vmem>>, vector<32x1xf32>
    %161 = vector.broadcast %160 : vector<32x1xf32> to vector<32x512xf32>
    %162 = arith.mulf %159, %161 : vector<32x512xf32>
    %c0_53 = arith.constant 0 : index
    %c0_54 = arith.constant 0 : index
    %163 = vector.load %arg8[%c0_53, %c0_54] : memref<32x1xf32, #tpu.memory_space<vmem>>, vector<32x1xf32>
    %164 = vector.broadcast %163 : vector<32x1xf32> to vector<32x512xf32>
    %165 = arith.addf %162, %164 : vector<32x512xf32>
    %166 = arith.negf %165 : vector<32x512xf32>
    %167 = math.exp %166 : vector<32x512xf32>
    %cst_55 = arith.constant 1.000000e+00 : f32
    %168 = vector.broadcast %cst_55 : f32 to vector<32x512xf32>
    %169 = arith.addf %168, %167 : vector<32x512xf32>
    %170 = arith.divf %168, %169 : vector<32x512xf32>
    %171 = arith.mulf %165, %170 : vector<32x512xf32>
    %c17_i32_56 = arith.constant 17 : i32
    %172 = tpu.dynamic_rotate %171 by %c17_i32_56 dim 1 : vector<32x512xf32>, i32 -> vector<32x512xf32>
    %173 = vector.extract_strided_slice %56 {offsets = [0, 0], sizes = [1, 512], strides = [1, 1]} : vector<9x512xf32> to vector<1x512xf32>
    %174 = vector.broadcast %173 : vector<1x512xf32> to vector<32x512xf32>
    %175 = arith.mulf %172, %174 : vector<32x512xf32>
    %176 = arith.truncf %175 : vector<32x512xf32> to vector<32x512xbf16>
    %c0_57 = arith.constant 0 : index
    %c0_58 = arith.constant 0 : index
    %177 = vector.load %arg12[%c0_57, %c0_58] : memref<288x512xbf16, #tpu.memory_space<vmem>>, vector<32x512xbf16>
    tpu.vector_store %arg12[%c0_57, %c0_58], %176 {strides = array<i32>} : memref<288x512xbf16, #tpu.memory_space<vmem>>, vector<32x512xbf16>,
    %c16_i32_59 = arith.constant 16 : i32
    %178 = tpu.dynamic_rotate %171 by %c16_i32_59 dim 1 : vector<32x512xf32>, i32 -> vector<32x512xf32>
    %179 = vector.extract_strided_slice %56 {offsets = [1, 0], sizes = [1, 512], strides = [1, 1]} : vector<9x512xf32> to vector<1x512xf32>
    %180 = vector.broadcast %179 : vector<1x512xf32> to vector<32x512xf32>
    %181 = arith.mulf %178, %180 : vector<32x512xf32>
    %182 = arith.truncf %181 : vector<32x512xf32> to vector<32x512xbf16>
    %c32_60 = arith.constant 32 : index
    %c0_61 = arith.constant 0 : index
    %183 = vector.load %arg12[%c32_60, %c0_61] : memref<288x512xbf16, #tpu.memory_space<vmem>>, vector<32x512xbf16>
    tpu.vector_store %arg12[%c32_60, %c0_61], %182 {strides = array<i32>} : memref<288x512xbf16, #tpu.memory_space<vmem>>, vector<32x512xbf16>,
    %c15_i32_62 = arith.constant 15 : i32
    %184 = tpu.dynamic_rotate %171 by %c15_i32_62 dim 1 : vector<32x512xf32>, i32 -> vector<32x512xf32>
    %185 = vector.extract_strided_slice %56 {offsets = [2, 0], sizes = [1, 512], strides = [1, 1]} : vector<9x512xf32> to vector<1x512xf32>
    %186 = vector.broadcast %185 : vector<1x512xf32> to vector<32x512xf32>
    %187 = arith.mulf %184, %186 : vector<32x512xf32>
    %188 = arith.truncf %187 : vector<32x512xf32> to vector<32x512xbf16>
    %c64_63 = arith.constant 64 : index
    %c0_64 = arith.constant 0 : index
    %189 = vector.load %arg12[%c64_63, %c0_64] : memref<288x512xbf16, #tpu.memory_space<vmem>>, vector<32x512xbf16>
    tpu.vector_store %arg12[%c64_63, %c0_64], %188 {strides = array<i32>} : memref<288x512xbf16, #tpu.memory_space<vmem>>, vector<32x512xbf16>,
    %c1_i32_65 = arith.constant 1 : i32
    %190 = tpu.dynamic_rotate %171 by %c1_i32_65 dim 1 : vector<32x512xf32>, i32 -> vector<32x512xf32>
    %191 = vector.extract_strided_slice %56 {offsets = [3, 0], sizes = [1, 512], strides = [1, 1]} : vector<9x512xf32> to vector<1x512xf32>
    %192 = vector.broadcast %191 : vector<1x512xf32> to vector<32x512xf32>
    %193 = arith.mulf %190, %192 : vector<32x512xf32>
    %194 = arith.truncf %193 : vector<32x512xf32> to vector<32x512xbf16>
    %c96_66 = arith.constant 96 : index
    %c0_67 = arith.constant 0 : index
    %195 = vector.load %arg12[%c96_66, %c0_67] : memref<288x512xbf16, #tpu.memory_space<vmem>>, vector<32x512xbf16>
    tpu.vector_store %arg12[%c96_66, %c0_67], %194 {strides = array<i32>} : memref<288x512xbf16, #tpu.memory_space<vmem>>, vector<32x512xbf16>,
    %196 = vector.extract_strided_slice %56 {offsets = [4, 0], sizes = [1, 512], strides = [1, 1]} : vector<9x512xf32> to vector<1x512xf32>
    %197 = vector.broadcast %196 : vector<1x512xf32> to vector<32x512xf32>
    %198 = arith.mulf %171, %197 : vector<32x512xf32>
    %199 = arith.truncf %198 : vector<32x512xf32> to vector<32x512xbf16>
    %c128_68 = arith.constant 128 : index
    %c0_69 = arith.constant 0 : index
    %200 = vector.load %arg12[%c128_68, %c0_69] : memref<288x512xbf16, #tpu.memory_space<vmem>>, vector<32x512xbf16>
    tpu.vector_store %arg12[%c128_68, %c0_69], %199 {strides = array<i32>} : memref<288x512xbf16, #tpu.memory_space<vmem>>, vector<32x512xbf16>,
    %c511_i32_70 = arith.constant 511 : i32
    %201 = tpu.dynamic_rotate %171 by %c511_i32_70 dim 1 : vector<32x512xf32>, i32 -> vector<32x512xf32>
    %202 = vector.extract_strided_slice %56 {offsets = [5, 0], sizes = [1, 512], strides = [1, 1]} : vector<9x512xf32> to vector<1x512xf32>
    %203 = vector.broadcast %202 : vector<1x512xf32> to vector<32x512xf32>
    %204 = arith.mulf %201, %203 : vector<32x512xf32>
    %205 = arith.truncf %204 : vector<32x512xf32> to vector<32x512xbf16>
    %c160_71 = arith.constant 160 : index
    %c0_72 = arith.constant 0 : index
    %206 = vector.load %arg12[%c160_71, %c0_72] : memref<288x512xbf16, #tpu.memory_space<vmem>>, vector<32x512xbf16>
    tpu.vector_store %arg12[%c160_71, %c0_72], %205 {strides = array<i32>} : memref<288x512xbf16, #tpu.memory_space<vmem>>, vector<32x512xbf16>,
    %c497_i32_73 = arith.constant 497 : i32
    %207 = tpu.dynamic_rotate %171 by %c497_i32_73 dim 1 : vector<32x512xf32>, i32 -> vector<32x512xf32>
    %208 = vector.extract_strided_slice %56 {offsets = [6, 0], sizes = [1, 512], strides = [1, 1]} : vector<9x512xf32> to vector<1x512xf32>
    %209 = vector.broadcast %208 : vector<1x512xf32> to vector<32x512xf32>
    %210 = arith.mulf %207, %209 : vector<32x512xf32>
    %211 = arith.truncf %210 : vector<32x512xf32> to vector<32x512xbf16>
    %c192_74 = arith.constant 192 : index
    %c0_75 = arith.constant 0 : index
    %212 = vector.load %arg12[%c192_74, %c0_75] : memref<288x512xbf16, #tpu.memory_space<vmem>>, vector<32x512xbf16>
    tpu.vector_store %arg12[%c192_74, %c0_75], %211 {strides = array<i32>} : memref<288x512xbf16, #tpu.memory_space<vmem>>, vector<32x512xbf16>,
    %c496_i32_76 = arith.constant 496 : i32
    %213 = tpu.dynamic_rotate %171 by %c496_i32_76 dim 1 : vector<32x512xf32>, i32 -> vector<32x512xf32>
    %214 = vector.extract_strided_slice %56 {offsets = [7, 0], sizes = [1, 512], strides = [1, 1]} : vector<9x512xf32> to vector<1x512xf32>
    %215 = vector.broadcast %214 : vector<1x512xf32> to vector<32x512xf32>
    %216 = arith.mulf %213, %215 : vector<32x512xf32>
    %217 = arith.truncf %216 : vector<32x512xf32> to vector<32x512xbf16>
    %c224_77 = arith.constant 224 : index
    %c0_78 = arith.constant 0 : index
    %218 = vector.load %arg12[%c224_77, %c0_78] : memref<288x512xbf16, #tpu.memory_space<vmem>>, vector<32x512xbf16>
    tpu.vector_store %arg12[%c224_77, %c0_78], %217 {strides = array<i32>} : memref<288x512xbf16, #tpu.memory_space<vmem>>, vector<32x512xbf16>,
    %c495_i32_79 = arith.constant 495 : i32
    %219 = tpu.dynamic_rotate %171 by %c495_i32_79 dim 1 : vector<32x512xf32>, i32 -> vector<32x512xf32>
    %220 = vector.extract_strided_slice %56 {offsets = [8, 0], sizes = [1, 512], strides = [1, 1]} : vector<9x512xf32> to vector<1x512xf32>
    %221 = vector.broadcast %220 : vector<1x512xf32> to vector<32x512xf32>
    %222 = arith.mulf %219, %221 : vector<32x512xf32>
    %223 = arith.truncf %222 : vector<32x512xf32> to vector<32x512xbf16>
    %c256_80 = arith.constant 256 : index
    %c0_81 = arith.constant 0 : index
    %224 = vector.load %arg12[%c256_80, %c0_81] : memref<288x512xbf16, #tpu.memory_space<vmem>>, vector<32x512xbf16>
    tpu.vector_store %arg12[%c256_80, %c0_81], %223 {strides = array<i32>} : memref<288x512xbf16, #tpu.memory_space<vmem>>, vector<32x512xbf16>,
    %c0_82 = arith.constant 0 : index
    %c0_83 = arith.constant 0 : index
    %225 = vector.load %arg9[%c0_82, %c0_83] : memref<32x288xbf16, #tpu.memory_space<vmem>>, vector<32x288xbf16>
    %c0_84 = arith.constant 0 : index
    %c0_85 = arith.constant 0 : index
    %226 = vector.load %arg12[%c0_84, %c0_85] : memref<288x512xbf16, #tpu.memory_space<vmem>>, vector<288x512xbf16>
    %cst_86 = arith.constant dense<0.000000e+00> : vector<32x512xf32>
    %227 = tpu.matmul %225, %226, %cst_86 {dimension_numbers = #tpu.dot_dimension_numbers<[1], [0], [0], [1], [0, 0, 1, 1], [], []>} : vector<32x288xbf16>, vector<288x512xbf16>, vector<32x512xf32> -> vector<32x512xf32>
    %c0_87 = arith.constant 0 : index
    %c0_88 = arith.constant 0 : index
    %228 = vector.load %arg10[%c0_87, %c0_88] : memref<32x1xf32, #tpu.memory_space<vmem>>, vector<32x1xf32>
    %229 = vector.broadcast %228 : vector<32x1xf32> to vector<32x512xf32>
    %230 = arith.addf %227, %229 : vector<32x512xf32>
    %c0_89 = arith.constant 0 : index
    %c0_90 = arith.constant 0 : index
    %c0_91 = arith.constant 0 : index
    %231 = vector.load %arg1[%c0_89, %c0_90, %c0_91] : memref<2x32x256xbf16, #tpu.memory_space<vmem>>, vector<1x32x256xbf16>
    %232 = vector.shape_cast %231 : vector<1x32x256xbf16> to vector<32x256xbf16>
    %233 = arith.extf %232 : vector<32x256xbf16> to vector<32x256xf32>
    %234 = vector.extract_strided_slice %230 {offsets = [0, 0], sizes = [32, 256], strides = [1, 1]} : vector<32x512xf32> to vector<32x256xf32>
    %235 = arith.addf %233, %234 : vector<32x256xf32>
    %236 = arith.truncf %235 : vector<32x256xf32> to vector<32x256xbf16>
    %c0_92 = arith.constant 0 : index
    %c0_93 = arith.constant 0 : index
    %c0_94 = arith.constant 0 : index
    %237 = vector.load %arg11[%c0_92, %c0_93, %c0_94] : memref<2x32x256xbf16, #tpu.memory_space<vmem>>, vector<1x32x256xbf16>
    %238 = vector.shape_cast %237 : vector<1x32x256xbf16> to vector<32x256xbf16>
    %239 = vector.shape_cast %236 : vector<32x256xbf16> to vector<1x32x256xbf16>
    tpu.vector_store %arg11[%c0_92, %c0_93, %c0_94], %239 {strides = array<i32>} : memref<2x32x256xbf16, #tpu.memory_space<vmem>>, vector<1x32x256xbf16>,
    %c1_95 = arith.constant 1 : index
    %c0_96 = arith.constant 0 : index
    %c0_97 = arith.constant 0 : index
    %240 = vector.load %arg1[%c1_95, %c0_96, %c0_97] : memref<2x32x256xbf16, #tpu.memory_space<vmem>>, vector<1x32x256xbf16>
    %241 = vector.shape_cast %240 : vector<1x32x256xbf16> to vector<32x256xbf16>
    %242 = arith.extf %241 : vector<32x256xbf16> to vector<32x256xf32>
    %243 = vector.extract_strided_slice %230 {offsets = [0, 256], sizes = [32, 256], strides = [1, 1]} : vector<32x512xf32> to vector<32x256xf32>
    %244 = arith.addf %242, %243 : vector<32x256xf32>
    %245 = arith.truncf %244 : vector<32x256xf32> to vector<32x256xbf16>
    %c1_98 = arith.constant 1 : index
    %c0_99 = arith.constant 0 : index
    %c0_100 = arith.constant 0 : index
    %246 = vector.load %arg11[%c1_98, %c0_99, %c0_100] : memref<2x32x256xbf16, #tpu.memory_space<vmem>>, vector<1x32x256xbf16>
    %247 = vector.shape_cast %246 : vector<1x32x256xbf16> to vector<32x256xbf16>
    %248 = vector.shape_cast %245 : vector<32x256xbf16> to vector<1x32x256xbf16>
    tpu.vector_store %arg11[%c1_98, %c0_99, %c0_100], %248 {strides = array<i32>} : memref<2x32x256xbf16, #tpu.memory_space<vmem>>, vector<1x32x256xbf16>,
    return
  }
  func.func @transform_0(%arg0: i32) -> (i32, i32, i32) {
    %c0_i32 = arith.constant 0 : i32
    %c0_i32_0 = arith.constant 0 : i32
    %c0_i32_1 = arith.constant 0 : i32
    return %arg0, %c0_i32, %c0_i32_0 : i32, i32, i32
  }
  func.func @transform_1(%arg0: i32) -> (i32, i32, i32) {
    %c0_i32 = arith.constant 0 : i32
    %c0_i32_0 = arith.constant 0 : i32
    %c0_i32_1 = arith.constant 0 : i32
    return %arg0, %c0_i32, %c0_i32_0 : i32, i32, i32
  }
  func.func @transform_2(%arg0: i32) -> (i32, i32) {
    %c0_i32 = arith.constant 0 : i32
    %c0_i32_0 = arith.constant 0 : i32
    %c0_i32_1 = arith.constant 0 : i32
    return %c0_i32, %c0_i32_0 : i32, i32
  }
  func.func @transform_3(%arg0: i32) -> (i32, i32) {
    %c0_i32 = arith.constant 0 : i32
    %c0_i32_0 = arith.constant 0 : i32
    %c0_i32_1 = arith.constant 0 : i32
    return %c0_i32, %c0_i32_0 : i32, i32
  }
  func.func @transform_4(%arg0: i32) -> (i32, i32) {
    %c0_i32 = arith.constant 0 : i32
    %c0_i32_0 = arith.constant 0 : i32
    %c0_i32_1 = arith.constant 0 : i32
    return %c0_i32, %c0_i32_0 : i32, i32
  }
  func.func @transform_5(%arg0: i32) -> (i32, i32) {
    %c0_i32 = arith.constant 0 : i32
    %c0_i32_0 = arith.constant 0 : i32
    %c0_i32_1 = arith.constant 0 : i32
    return %c0_i32, %c0_i32_0 : i32, i32
  }
  func.func @transform_6(%arg0: i32) -> (i32, i32) {
    %c0_i32 = arith.constant 0 : i32
    %c0_i32_0 = arith.constant 0 : i32
    %c0_i32_1 = arith.constant 0 : i32
    return %c0_i32, %c0_i32_0 : i32, i32
  }
  func.func @transform_7(%arg0: i32) -> (i32, i32) {
    %c0_i32 = arith.constant 0 : i32
    %c0_i32_0 = arith.constant 0 : i32
    %c0_i32_1 = arith.constant 0 : i32
    return %c0_i32, %c0_i32_0 : i32, i32
  }
  func.func @transform_8(%arg0: i32) -> (i32, i32) {
    %c0_i32 = arith.constant 0 : i32
    %c0_i32_0 = arith.constant 0 : i32
    %c0_i32_1 = arith.constant 0 : i32
    return %c0_i32, %c0_i32_0 : i32, i32
  }
  func.func @transform_9(%arg0: i32) -> (i32, i32) {
    %c0_i32 = arith.constant 0 : i32
    %c0_i32_0 = arith.constant 0 : i32
    %c0_i32_1 = arith.constant 0 : i32
    return %c0_i32, %c0_i32_0 : i32, i32
  }
  func.func @transform_10(%arg0: i32) -> (i32, i32, i32) {
    %c0_i32 = arith.constant 0 : i32
    %c0_i32_0 = arith.constant 0 : i32
    %c0_i32_1 = arith.constant 0 : i32
    return %arg0, %c0_i32, %c0_i32_0 : i32, i32, i32
  }
}

</mosaic_0001>

<llo_original>
// kernel: tpu_custom_call.1
$region0: #{tpu_custom_call.1}
  #allocation0 [shape = 'u32[]', space=smem, size = 0x4, offset = 0x4, fixed_abs, tag = 'smem constant byte address 0x4 - core index']
  #allocation1 [shape = 'u32[72,128]{1,0:T(1,128)}', space=vmem, size = 0x9000, scoped, tag = 'internal scratch']
  #allocation2 [shape = 'bf16[288,512]{1,0:T(8,128)(2,1)}', space=vmem, size = 0x48000, scoped, tag = 'scratch operand']
  %s0 = inlined_call_operand.vmem [shape: bf16[2,32,256], index: 0, kind: input, shape index: {}]
  %s1 = inlined_call_operand.vmem [shape: f32[2,32,1], index: 1, kind: input, shape index: {}]
  %s2 = inlined_call_operand.vmem [shape: f32[9,256], index: 2, kind: input, shape index: {}]
  %s3 = inlined_call_operand.vmem [shape: f32[32,1], index: 3, kind: input, shape index: {}]
  %s4 = inlined_call_operand.vmem [shape: f32[32,1], index: 4, kind: input, shape index: {}]
  %s5 = inlined_call_operand.vmem [shape: bf16[32,288], index: 5, kind: input, shape index: {}]
  %s6 = inlined_call_operand.vmem [shape: f32[32,1], index: 6, kind: input, shape index: {}]
  %s7 = inlined_call_operand.vmem [shape: f32[32,1], index: 7, kind: input, shape index: {}]
  %s8 = inlined_call_operand.vmem [shape: bf16[32,288], index: 8, kind: input, shape index: {}]
  %s9 = inlined_call_operand.vmem [shape: f32[32,1], index: 9, kind: input, shape index: {}]
  %s10 = inlined_call_operand.hbm [shape: bf16[2,32,256], index: 10, kind: output, shape index: {}]
  %s11 = sld [smem:[#allocation0]]
  $region50: #{tpu_custom_call.1} parent=0
    _
  %s13 = ssub.s32 1, %s11
  %s14 = scalar_select 0, %s13, %s11
  $region1: #{tpu_custom_call.1} parent=0
    #allocation3 [shape = 'u8[32768]{0}', space=vmem, size = 0x8000, scoped, tag = 'output window, operand 0, single buffered']
    #allocation4 [shape = 's32[1]{0}', space=sflag, size = 0x4, scoped, tag = 'scoped memory for tpu_custom_call.1']
    %15 = vsyncpa [#allocation4], 0
    // Predicated region
    $region2: #{tpu_custom_call.1} parent=1 // pred_check
      _
    $region3: #{tpu_custom_call.1} parent=1 // pred_check_branch
      %17 = sbr.rel (0) target = $region5
    $region4: #{tpu_custom_call.1} parent=1 // pred_region
      _
    $region5: #{tpu_custom_call.1} parent=1 // pred_fallthru
      _
    // Predicated region
    $region6: #{tpu_custom_call.1} parent=1 // pred_check
      _
    $region7: #{tpu_custom_call.1} parent=1 // pred_check_branch
      %19 = sbr.rel (0) target = $region9
    $region8: #{tpu_custom_call.1} parent=1 // pred_region
      _
    $region9: #{tpu_custom_call.1} parent=1 // pred_fallthru
      _
    // Predicated region
    $region10: #{tpu_custom_call.1} parent=1 // pred_check
      _
    $region11: #{tpu_custom_call.1} parent=1 // pred_check_branch
      %21 = sbr.rel (0) target = $region13
    $region12: #{tpu_custom_call.1} parent=1 // pred_region
      _
    $region13: #{tpu_custom_call.1} parent=1 // pred_fallthru
      _
    // Predicated region
    $region14: #{tpu_custom_call.1} parent=1 // pred_check
      _
    $region15: #{tpu_custom_call.1} parent=1 // pred_check_branch
      %23 = sbr.rel (0) target = $region17
    $region16: #{tpu_custom_call.1} parent=1 // pred_region
      _
    $region17: #{tpu_custom_call.1} parent=1 // pred_fallthru
      _
    // Predicated region
    $region18: #{tpu_custom_call.1} parent=1 // pred_check
      _
    $region19: #{tpu_custom_call.1} parent=1 // pred_check_branch
      %25 = sbr.rel (0) target = $region21
    $region20: #{tpu_custom_call.1} parent=1 // pred_region
      _
    $region21: #{tpu_custom_call.1} parent=1 // pred_fallthru
      _
    // Predicated region
    $region22: #{tpu_custom_call.1} parent=1 // pred_check
      _
    $region23: #{tpu_custom_call.1} parent=1 // pred_check_branch
      %27 = sbr.rel (0) target = $region25
    $region24: #{tpu_custom_call.1} parent=1 // pred_region
      _
    $region25: #{tpu_custom_call.1} parent=1 // pred_fallthru
      _
    // Predicated region
    $region26: #{tpu_custom_call.1} parent=1 // pred_check
      _
    $region27: #{tpu_custom_call.1} parent=1 // pred_check_branch
      %29 = sbr.rel (0) target = $region29
    $region28: #{tpu_custom_call.1} parent=1 // pred_region
      _
    $region29: #{tpu_custom_call.1} parent=1 // pred_fallthru
      _
    // Predicated region
    $region30: #{tpu_custom_call.1} parent=1 // pred_check
      _
    $region31: #{tpu_custom_call.1} parent=1 // pred_check_branch
      %31 = sbr.rel (0) target = $region33
    $region32: #{tpu_custom_call.1} parent=1 // pred_region
      _
    $region33: #{tpu_custom_call.1} parent=1 // pred_fallthru
      _
    // Predicated region
    $region34: #{tpu_custom_call.1} parent=1 // pred_check
      _
    $region35: #{tpu_custom_call.1} parent=1 // pred_check_branch
      %33 = sbr.rel (0) target = $region37
    $region36: #{tpu_custom_call.1} parent=1 // pred_region
      _
    $region37: #{tpu_custom_call.1} parent=1 // pred_fallthru
      _
    // Predicated region
    $region38: #{tpu_custom_call.1} parent=1 // pred_check
      _
    $region39: #{tpu_custom_call.1} parent=1 // pred_check_branch
      %35 = sbr.rel (0) target = $region41
    $region40: #{tpu_custom_call.1} parent=1 // pred_region
      _
    $region41: #{tpu_custom_call.1} parent=1 // pred_fallthru
      _
    %v37 = vld [vmem:[%s0] sm:$0xff]
    %v38 = vld [vmem:[%s0 + $0x8] sm:$0xff]
    %v39 = vld [vmem:[%s0 + $0x10] sm:$0xff]
    %v40 = vld [vmem:[%s0 + $0x18] sm:$0xff]
    %v41 = vunpack.c.l.bf16 %v37
    %v42 = vunpack.c.h.bf16 %v37
    %v43 = vunpack.c.l.bf16 %v38
    %v44 = vunpack.c.h.bf16 %v38
    %v45 = vunpack.c.l.bf16 %v39
    %v46 = vunpack.c.h.bf16 %v39
    %v47 = vunpack.c.l.bf16 %v40
    %v48 = vunpack.c.h.bf16 %v40
    %v49 = vadd.f32 %v41, %v42
    %50 = vadd.xlane.f32.xlu0 %v49
    %v51 = vpop.xlane.xlu0 %50
    %v52 = vadd.f32 %v43, %v44
    %53 = vadd.xlane.f32.xlu0 %v52
    %v54 = vpop.xlane.xlu0 %53
    %v55 = vadd.f32 %v45, %v46
    %56 = vadd.xlane.f32.xlu0 %v55
    %v57 = vpop.xlane.xlu0 %56
    %v58 = vadd.f32 %v47, %v48
    %59 = vadd.xlane.f32.xlu0 %v58
    %v60 = vpop.xlane.xlu0 %59
    %v61 = vmul.f32 %v41, %v41
    %v62 = vmul.f32 %v42, %v42
    %v63 = vmul.f32 %v43, %v43
    %v64 = vmul.f32 %v44, %v44
    %v65 = vmul.f32 %v45, %v45
    %v66 = vmul.f32 %v46, %v46
    %v67 = vmul.f32 %v47, %v47
    %v68 = vmul.f32 %v48, %v48
    %v69 = vadd.f32 %v61, %v62
    %70 = vadd.xlane.f32.xlu0 %v69
    %v71 = vpop.xlane.xlu0 %70
    %v72 = vadd.f32 %v63, %v64
    %73 = vadd.xlane.f32.xlu0 %v72
    %v74 = vpop.xlane.xlu0 %73
    %v75 = vadd.f32 %v65, %v66
    %76 = vadd.xlane.f32.xlu0 %v75
    %v77 = vpop.xlane.xlu0 %76
    %v78 = vadd.f32 %v67, %v68
    %79 = vadd.xlane.f32.xlu0 %v78
    %v80 = vpop.xlane.xlu0 %79
    %v81 = vmul.f32 %v51, 0.00390625
    %v82 = vmul.f32 %v54, 0.00390625
    %v83 = vmul.f32 %v57, 0.00390625
    %v84 = vmul.f32 %v60, 0.00390625
    %v85 = vmul.f32 %v71, 0.00390625
    %v86 = vmul.f32 %v74, 0.00390625
    %v87 = vmul.f32 %v77, 0.00390625
    %v88 = vmul.f32 %v80, 0.00390625
    %v89 = vmul.f32 %v81, %v81
    %v90 = vmul.f32 %v82, %v82
    %v91 = vmul.f32 %v83, %v83
    %v92 = vmul.f32 %v84, %v84
    %v93 = vsub.f32 %v85, %v89
    %v94 = vsub.f32 %v86, %v90
    %v95 = vsub.f32 %v87, %v91
    %v96 = vsub.f32 %v88, %v92
    %v97 = vsub.f32 %v41, %v81
    %v98 = vsub.f32 %v42, %v81
    %v99 = vsub.f32 %v43, %v82
    %v100 = vsub.f32 %v44, %v82
    %v101 = vsub.f32 %v45, %v83
    %v102 = vsub.f32 %v46, %v83
    %v103 = vsub.f32 %v47, %v84
    %v104 = vsub.f32 %v48, %v84
    %v105 = vadd.f32 %v93, 1e-05
    %v106 = vadd.f32 %v94, 1e-05
    %v107 = vadd.f32 %v95, 1e-05
    %v108 = vadd.f32 %v96, 1e-05
    %v109 = vrsqrt.pop %v105
    %v110 = vmul.f32 %v109, %v105
    %v111 = vmul.f32 %v110, %v109
    %v112 = vmul.f32 0.5, %v111
    %v113 = vsub.f32 1.5, %v112
    %v114 = vmul.f32 %v109, %v113
    %vm115 = vweird.f32 %v105
    %vm116 = vweird.f32 %v109
    %vm117 = vmor %vm115, %vm116
    %v118 = vsel %vm117, %v109, %v114
    %v119 = vrsqrt.pop %v106
    %v120 = vmul.f32 %v119, %v106
    %v121 = vmul.f32 %v120, %v119
    %v122 = vmul.f32 0.5, %v121
    %v123 = vsub.f32 1.5, %v122
    %v124 = vmul.f32 %v119, %v123
    %vm125 = vweird.f32 %v106
    %vm126 = vweird.f32 %v119
    %vm127 = vmor %vm125, %vm126
    %v128 = vsel %vm127, %v119, %v124
    %v129 = vrsqrt.pop %v107
    %v130 = vmul.f32 %v129, %v107
    %v131 = vmul.f32 %v130, %v129
    %v132 = vmul.f32 0.5, %v131
    %v133 = vsub.f32 1.5, %v132
    %v134 = vmul.f32 %v129, %v133
    %vm135 = vweird.f32 %v107
    %vm136 = vweird.f32 %v129
    %vm137 = vmor %vm135, %vm136
    %v138 = vsel %vm137, %v129, %v134
    %v139 = vrsqrt.pop %v108
    %v140 = vmul.f32 %v139, %v108
    %v141 = vmul.f32 %v140, %v139
    %v142 = vmul.f32 0.5, %v141
    %v143 = vsub.f32 1.5, %v142
    %v144 = vmul.f32 %v139, %v143
    %vm145 = vweird.f32 %v108
    %vm146 = vweird.f32 %v139
    %vm147 = vmor %vm145, %vm146
    %v148 = vsel %vm147, %v139, %v144
    %v149 = vmul.f32 %v97, %v118
    %v150 = vmul.f32 %v98, %v118
    %v151 = vmul.f32 %v99, %v128
    %v152 = vmul.f32 %v100, %v128
    %v153 = vmul.f32 %v101, %v138
    %v154 = vmul.f32 %v102, %v138
    %v155 = vmul.f32 %v103, %v148
    %v156 = vmul.f32 %v104, %v148
    %s157 = scalar_lea.vmem %s0, 32
    %v158 = vld [vmem:[%s157] sm:$0xff]
    %v159 = vld [vmem:[%s157 + $0x8] sm:$0xff]
    %v160 = vld [vmem:[%s157 + $0x10] sm:$0xff]
    %v161 = vld [vmem:[%s157 + $0x18] sm:$0xff]
    %v162 = vunpack.c.l.bf16 %v158
    %v163 = vunpack.c.h.bf16 %v158
    %v164 = vunpack.c.l.bf16 %v159
    %v165 = vunpack.c.h.bf16 %v159
    %v166 = vunpack.c.l.bf16 %v160
    %v167 = vunpack.c.h.bf16 %v160
    %v168 = vunpack.c.l.bf16 %v161
    %v169 = vunpack.c.h.bf16 %v161
    %v170 = vadd.f32 %v162, %v163
    %171 = vadd.xlane.f32.xlu0 %v170
    %v172 = vpop.xlane.xlu0 %171
    %v173 = vadd.f32 %v164, %v165
    %174 = vadd.xlane.f32.xlu0 %v173
    %v175 = vpop.xlane.xlu0 %174
    %v176 = vadd.f32 %v166, %v167
    %177 = vadd.xlane.f32.xlu0 %v176
    %v178 = vpop.xlane.xlu0 %177
    %v179 = vadd.f32 %v168, %v169
    %180 = vadd.xlane.f32.xlu0 %v179
    %v181 = vpop.xlane.xlu0 %180
    %v182 = vmul.f32 %v162, %v162
    %v183 = vmul.f32 %v163, %v163
    %v184 = vmul.f32 %v164, %v164
    %v185 = vmul.f32 %v165, %v165
    %v186 = vmul.f32 %v166, %v166
    %v187 = vmul.f32 %v167, %v167
    %v188 = vmul.f32 %v168, %v168
    %v189 = vmul.f32 %v169, %v169
    %v190 = vadd.f32 %v182, %v183
    %191 = vadd.xlane.f32.xlu0 %v190
    %v192 = vpop.xlane.xlu0 %191
    %v193 = vadd.f32 %v184, %v185
    %194 = vadd.xlane.f32.xlu0 %v193
    %v195 = vpop.xlane.xlu0 %194
    %v196 = vadd.f32 %v186, %v187
    %197 = vadd.xlane.f32.xlu0 %v196
    %v198 = vpop.xlane.xlu0 %197
    %v199 = vadd.f32 %v188, %v189
    %200 = vadd.xlane.f32.xlu0 %v199
    %v201 = vpop.xlane.xlu0 %200
    %v202 = vmul.f32 %v172, 0.00390625
    %v203 = vmul.f32 %v175, 0.00390625
    %v204 = vmul.f32 %v178, 0.00390625
    %v205 = vmul.f32 %v181, 0.00390625
    %v206 = vmul.f32 %v192, 0.00390625
    %v207 = vmul.f32 %v195, 0.00390625
    %v208 = vmul.f32 %v198, 0.00390625
    %v209 = vmul.f32 %v201, 0.00390625
    %v210 = vmul.f32 %v202, %v202
    %v211 = vmul.f32 %v203, %v203
    %v212 = vmul.f32 %v204, %v204
    %v213 = vmul.f32 %v205, %v205
    %v214 = vsub.f32 %v206, %v210
    %v215 = vsub.f32 %v207, %v211
    %v216 = vsub.f32 %v208, %v212
    %v217 = vsub.f32 %v209, %v213
    %v218 = vsub.f32 %v162, %v202
    %v219 = vsub.f32 %v163, %v202
    %v220 = vsub.f32 %v164, %v203
    %v221 = vsub.f32 %v165, %v203
    %v222 = vsub.f32 %v166, %v204
    %v223 = vsub.f32 %v167, %v204
    %v224 = vsub.f32 %v168, %v205
    %v225 = vsub.f32 %v169, %v205
    %v226 = vadd.f32 %v214, 1e-05
    %v227 = vadd.f32 %v215, 1e-05
    %v228 = vadd.f32 %v216, 1e-05
    %v229 = vadd.f32 %v217, 1e-05
    %v230 = vrsqrt.pop %v226
    %v231 = vmul.f32 %v230, %v226
    %v232 = vmul.f32 %v231, %v230
    %v233 = vmul.f32 0.5, %v232
    %v234 = vsub.f32 1.5, %v233
    %v235 = vmul.f32 %v230, %v234
    %vm236 = vweird.f32 %v226
    %vm237 = vweird.f32 %v230
    %vm238 = vmor %vm236, %vm237
    %v239 = vsel %vm238, %v230, %v235
    %v240 = vrsqrt.pop %v227
    %v241 = vmul.f32 %v240, %v227
    %v242 = vmul.f32 %v241, %v240
    %v243 = vmul.f32 0.5, %v242
    %v244 = vsub.f32 1.5, %v243
    %v245 = vmul.f32 %v240, %v244
    %vm246 = vweird.f32 %v227
    %vm247 = vweird.f32 %v240
    %vm248 = vmor %vm246, %vm247
    %v249 = vsel %vm248, %v240, %v245
    %v250 = vrsqrt.pop %v228
    %v251 = vmul.f32 %v250, %v228
    %v252 = vmul.f32 %v251, %v250
    %v253 = vmul.f32 0.5, %v252
    %v254 = vsub.f32 1.5, %v253
    %v255 = vmul.f32 %v250, %v254
    %vm256 = vweird.f32 %v228
    %vm257 = vweird.f32 %v250
    %vm258 = vmor %vm256, %vm257
    %v259 = vsel %vm258, %v250, %v255
    %v260 = vrsqrt.pop %v229
    %v261 = vmul.f32 %v260, %v229
    %v262 = vmul.f32 %v261, %v260
    %v263 = vmul.f32 0.5, %v262
    %v264 = vsub.f32 1.5, %v263
    %v265 = vmul.f32 %v260, %v264
    %vm266 = vweird.f32 %v229
    %vm267 = vweird.f32 %v260
    %vm268 = vmor %vm266, %vm267
    %v269 = vsel %vm268, %v260, %v265
    %v270 = vmul.f32 %v218, %v239
    %v271 = vmul.f32 %v219, %v239
    %v272 = vmul.f32 %v220, %v249
    %v273 = vmul.f32 %v221, %v249
    %v274 = vmul.f32 %v222, %v259
    %v275 = vmul.f32 %v223, %v259
    %v276 = vmul.f32 %v224, %v269
    %v277 = vmul.f32 %v225, %v269
    %v278 = vld [vmem:[%s3] sm:$0xff]
    %v279 = vld [vmem:[%s3 + $0x8] sm:$0xff]
    %v280 = vld [vmem:[%s3 + $0x10] sm:$0xff]
    %v281 = vld [vmem:[%s3 + $0x18] sm:$0xff]
    %283 = vset.pattern.permute.xlu0 0
    %284 = vperm.xlu0 %283, %v278
    %v285 = vpop.permute.xlu0 %284
    %288 = vset.pattern.permute.xlu0 0
    %289 = vperm.xlu0 %288, %v279
    %v290 = vpop.permute.xlu0 %289
    %293 = vset.pattern.permute.xlu0 0
    %294 = vperm.xlu0 %293, %v280
    %v295 = vpop.permute.xlu0 %294
    %298 = vset.pattern.permute.xlu0 0
    %299 = vperm.xlu0 %298, %v281
    %v300 = vpop.permute.xlu0 %299
    %v302 = vmul.f32 %v149, %v285
    %v303 = vmul.f32 %v150, %v285
    %v304 = vmul.f32 %v270, %v285
    %v305 = vmul.f32 %v271, %v285
    %v306 = vmul.f32 %v151, %v290
    %v307 = vmul.f32 %v152, %v290
    %v308 = vmul.f32 %v272, %v290
    %v309 = vmul.f32 %v273, %v290
    %v310 = vmul.f32 %v153, %v295
    %v311 = vmul.f32 %v154, %v295
    %v312 = vmul.f32 %v274, %v295
    %v313 = vmul.f32 %v275, %v295
    %v314 = vmul.f32 %v155, %v300
    %v315 = vmul.f32 %v156, %v300
    %v316 = vmul.f32 %v276, %v300
    %v317 = vmul.f32 %v277, %v300
    %v318 = vld [vmem:[%s4] sm:$0xff]
    %v319 = vld [vmem:[%s4 + $0x8] sm:$0xff]
    %v320 = vld [vmem:[%s4 + $0x10] sm:$0xff]
    %v321 = vld [vmem:[%s4 + $0x18] sm:$0xff]
    %323 = vset.pattern.permute.xlu0 0
    %324 = vperm.xlu0 %323, %v318
    %v325 = vpop.permute.xlu0 %324
    %328 = vset.pattern.permute.xlu0 0
    %329 = vperm.xlu0 %328, %v319
    %v330 = vpop.permute.xlu0 %329
    %333 = vset.pattern.permute.xlu0 0
    %334 = vperm.xlu0 %333, %v320
    %v335 = vpop.permute.xlu0 %334
    %338 = vset.pattern.permute.xlu0 0
    %339 = vperm.xlu0 %338, %v321
    %v340 = vpop.permute.xlu0 %339
    %v342 = vadd.f32 %v302, %v325
    %v343 = vadd.f32 %v303, %v325
    %v344 = vadd.f32 %v304, %v325
    %v345 = vadd.f32 %v305, %v325
    %v346 = vadd.f32 %v306, %v330
    %v347 = vadd.f32 %v307, %v330
    %v348 = vadd.f32 %v308, %v330
    %v349 = vadd.f32 %v309, %v330
    %v350 = vadd.f32 %v310, %v335
    %v351 = vadd.f32 %v311, %v335
    %v352 = vadd.f32 %v312, %v335
    %v353 = vadd.f32 %v313, %v335
    %v354 = vadd.f32 %v314, %v340
    %v355 = vadd.f32 %v315, %v340
    %v356 = vadd.f32 %v316, %v340
    %v357 = vadd.f32 %v317, %v340
    %v358 = vxor.u32 %v342, 2147483648
    %v359 = vxor.u32 %v343, 2147483648
    %v360 = vxor.u32 %v344, 2147483648
    %v361 = vxor.u32 %v345, 2147483648
    %v362 = vxor.u32 %v346, 2147483648
    %v363 = vxor.u32 %v347, 2147483648
    %v364 = vxor.u32 %v348, 2147483648
    %v365 = vxor.u32 %v349, 2147483648
    %v366 = vxor.u32 %v350, 2147483648
    %v367 = vxor.u32 %v351, 2147483648
    %v368 = vxor.u32 %v352, 2147483648
    %v369 = vxor.u32 %v353, 2147483648
    %v370 = vxor.u32 %v354, 2147483648
    %v371 = vxor.u32 %v355, 2147483648
    %v372 = vxor.u32 %v356, 2147483648
    %v373 = vxor.u32 %v357, 2147483648
    %v374 = vmul.f32 %v358, 1.442695
    %v375 = vpow.pop %v374
    %v376 = vmul.f32 %v359, 1.442695
    %v377 = vpow.pop %v376
    %v378 = vmul.f32 %v360, 1.442695
    %v379 = vpow.pop %v378
    %v380 = vmul.f32 %v361, 1.442695
    %v381 = vpow.pop %v380
    %v382 = vmul.f32 %v362, 1.442695
    %v383 = vpow.pop %v382
    %v384 = vmul.f32 %v363, 1.442695
    %v385 = vpow.pop %v384
    %v386 = vmul.f32 %v364, 1.442695
    %v387 = vpow.pop %v386
    %v388 = vmul.f32 %v365, 1.442695
    %v389 = vpow.pop %v388
    %v390 = vmul.f32 %v366, 1.442695
    %v391 = vpow.pop %v390
    %v392 = vmul.f32 %v367, 1.442695
    %v393 = vpow.pop %v392
    %v394 = vmul.f32 %v368, 1.442695
    %v395 = vpow.pop %v394
    %v396 = vmul.f32 %v369, 1.442695
    %v397 = vpow.pop %v396
    %v398 = vmul.f32 %v370, 1.442695
    %v399 = vpow.pop %v398
    %v400 = vmul.f32 %v371, 1.442695
    %v401 = vpow.pop %v400
    %v402 = vmul.f32 %v372, 1.442695
    %v403 = vpow.pop %v402
    %v404 = vmul.f32 %v373, 1.442695
    %v405 = vpow.pop %v404
    %v406 = vadd.f32 %v375, 1.0
    %v407 = vadd.f32 %v377, 1.0
    %v408 = vadd.f32 %v379, 1.0
    %v409 = vadd.f32 %v381, 1.0
    %v410 = vadd.f32 %v383, 1.0
    %v411 = vadd.f32 %v385, 1.0
    %v412 = vadd.f32 %v387, 1.0
    %v413 = vadd.f32 %v389, 1.0
    %v414 = vadd.f32 %v391, 1.0
    %v415 = vadd.f32 %v393, 1.0
    %v416 = vadd.f32 %v395, 1.0
    %v417 = vadd.f32 %v397, 1.0
    %v418 = vadd.f32 %v399, 1.0
    %v419 = vadd.f32 %v401, 1.0
    %v420 = vadd.f32 %v403, 1.0
    %v421 = vadd.f32 %v405, 1.0
    %v422 = vrcp.pop %v406
    %v423 = vmul.f32 %v406, %v422
    %v424 = vsub.f32 1.0, %v423
    %v425 = vmul.f32 %v422, %v424
    %v426 = vadd.f32 %v422, %v425
    %vm427 = vweird.f32 %v406
    %vm428 = vweird.f32 %v422
    %vm429 = vmor %vm427, %vm428
    %v430 = vsel %vm429, %v422, %v426
    %v431 = vand.u32 2147483647, %v406
    %vm432 = vcmp.eq.f32.partialorder %v431, 8.507059e+37
    %v433 = vand.u32 %v406, 2147483648
    %v434 = vor.u32 1.1754944e-38, %v433
    %v435 = vsel %vm432, %v434, %v430
    %v436 = vmul.f32 1.0, %v435
    %v437 = vrcp.pop %v407
    %v438 = vmul.f32 %v407, %v437
    %v439 = vsub.f32 1.0, %v438
    %v440 = vmul.f32 %v437, %v439
    %v441 = vadd.f32 %v437, %v440
    %vm442 = vweird.f32 %v407
    %vm443 = vweird.f32 %v437
    %vm444 = vmor %vm442, %vm443
    %v445 = vsel %vm444, %v437, %v441
    %v446 = vand.u32 2147483647, %v407
    %vm447 = vcmp.eq.f32.partialorder %v446, 8.507059e+37
    %v448 = vand.u32 %v407, 2147483648
    %v449 = vor.u32 1.1754944e-38, %v448
    %v450 = vsel %vm447, %v449, %v445
    %v451 = vmul.f32 1.0, %v450
    %v452 = vrcp.pop %v408
    %v453 = vmul.f32 %v408, %v452
    %v454 = vsub.f32 1.0, %v453
    %v455 = vmul.f32 %v452, %v454
    %v456 = vadd.f32 %v452, %v455
    %vm457 = vweird.f32 %v408
    %vm458 = vweird.f32 %v452
    %vm459 = vmor %vm457, %vm458
    %v460 = vsel %vm459, %v452, %v456
    %v461 = vand.u32 2147483647, %v408
    %vm462 = vcmp.eq.f32.partialorder %v461, 8.507059e+37
    %v463 = vand.u32 %v408, 2147483648
    %v464 = vor.u32 1.1754944e-38, %v463
    %v465 = vsel %vm462, %v464, %v460
    %v466 = vmul.f32 1.0, %v465
    %v467 = vrcp.pop %v409
    %v468 = vmul.f32 %v409, %v467
    %v469 = vsub.f32 1.0, %v468
    %v470 = vmul.f32 %v467, %v469
    %v471 = vadd.f32 %v467, %v470
    %vm472 = vweird.f32 %v409
    %vm473 = vweird.f32 %v467
    %vm474 = vmor %vm472, %vm473
    %v475 = vsel %vm474, %v467, %v471
    %v476 = vand.u32 2147483647, %v409
    %vm477 = vcmp.eq.f32.partialorder %v476, 8.507059e+37
    %v478 = vand.u32 %v409, 2147483648
    %v479 = vor.u32 1.1754944e-38, %v478
    %v480 = vsel %vm477, %v479, %v475
    %v481 = vmul.f32 1.0, %v480
    %v482 = vrcp.pop %v410
    %v483 = vmul.f32 %v410, %v482
    %v484 = vsub.f32 1.0, %v483
    %v485 = vmul.f32 %v482, %v484
    %v486 = vadd.f32 %v482, %v485
    %vm487 = vweird.f32 %v410
    %vm488 = vweird.f32 %v482
    %vm489 = vmor %vm487, %vm488
    %v490 = vsel %vm489, %v482, %v486
    %v491 = vand.u32 2147483647, %v410
    %vm492 = vcmp.eq.f32.partialorder %v491, 8.507059e+37
    %v493 = vand.u32 %v410, 2147483648
    %v494 = vor.u32 1.1754944e-38, %v493
    %v495 = vsel %vm492, %v494, %v490
    %v496 = vmul.f32 1.0, %v495
    %v497 = vrcp.pop %v411
    %v498 = vmul.f32 %v411, %v497
    %v499 = vsub.f32 1.0, %v498
    %v500 = vmul.f32 %v497, %v499
    %v501 = vadd.f32 %v497, %v500
    %vm502 = vweird.f32 %v411
    %vm503 = vweird.f32 %v497
    %vm504 = vmor %vm502, %vm503
    %v505 = vsel %vm504, %v497, %v501
    %v506 = vand.u32 2147483647, %v411
    %vm507 = vcmp.eq.f32.partialorder %v506, 8.507059e+37
    %v508 = vand.u32 %v411, 2147483648
    %v509 = vor.u32 1.1754944e-38, %v508
    %v510 = vsel %vm507, %v509, %v505
    %v511 = vmul.f32 1.0, %v510
    %v512 = vrcp.pop %v412
    %v513 = vmul.f32 %v412, %v512
    %v514 = vsub.f32 1.0, %v513
    %v515 = vmul.f32 %v512, %v514
    %v516 = vadd.f32 %v512, %v515
    %vm517 = vweird.f32 %v412
    %vm518 = vweird.f32 %v512
    %vm519 = vmor %vm517, %vm518
    %v520 = vsel %vm519, %v512, %v516
    %v521 = vand.u32 2147483647, %v412
    %vm522 = vcmp.eq.f32.partialorder %v521, 8.507059e+37
    %v523 = vand.u32 %v412, 2147483648
    %v524 = vor.u32 1.1754944e-38, %v523
    %v525 = vsel %vm522, %v524, %v520
    %v526 = vmul.f32 1.0, %v525
    %v527 = vrcp.pop %v413
    %v528 = vmul.f32 %v413, %v527
    %v529 = vsub.f32 1.0, %v528
    %v530 = vmul.f32 %v527, %v529
    %v531 = vadd.f32 %v527, %v530
    %vm532 = vweird.f32 %v413
    %vm533 = vweird.f32 %v527
    %vm534 = vmor %vm532, %vm533
    %v535 = vsel %vm534, %v527, %v531
    %v536 = vand.u32 2147483647, %v413
    %vm537 = vcmp.eq.f32.partialorder %v536, 8.507059e+37
    %v538 = vand.u32 %v413, 2147483648
    %v539 = vor.u32 1.1754944e-38, %v538
    %v540 = vsel %vm537, %v539, %v535
    %v541 = vmul.f32 1.0, %v540
    %v542 = vrcp.pop %v414
    %v543 = vmul.f32 %v414, %v542
    %v544 = vsub.f32 1.0, %v543
    %v545 = vmul.f32 %v542, %v544
    %v546 = vadd.f32 %v542, %v545
    %vm547 = vweird.f32 %v414
    %vm548 = vweird.f32 %v542
    %vm549 = vmor %vm547, %vm548
    %v550 = vsel %vm549, %v542, %v546
    %v551 = vand.u32 2147483647, %v414
    %vm552 = vcmp.eq.f32.partialorder %v551, 8.507059e+37
    %v553 = vand.u32 %v414, 2147483648
    %v554 = vor.u32 1.1754944e-38, %v553
    %v555 = vsel %vm552, %v554, %v550
    %v556 = vmul.f32 1.0, %v555
    %v557 = vrcp.pop %v415
    %v558 = vmul.f32 %v415, %v557
    %v559 = vsub.f32 1.0, %v558
    %v560 = vmul.f32 %v557, %v559
    %v561 = vadd.f32 %v557, %v560
    %vm562 = vweird.f32 %v415
    %vm563 = vweird.f32 %v557
    %vm564 = vmor %vm562, %vm563
    %v565 = vsel %vm564, %v557, %v561
    %v566 = vand.u32 2147483647, %v415
    %vm567 = vcmp.eq.f32.partialorder %v566, 8.507059e+37
    %v568 = vand.u32 %v415, 2147483648
    %v569 = vor.u32 1.1754944e-38, %v568
    %v570 = vsel %vm567, %v569, %v565
    %v571 = vmul.f32 1.0, %v570
    %v572 = vrcp.pop %v416
    %v573 = vmul.f32 %v416, %v572
    %v574 = vsub.f32 1.0, %v573
    %v575 = vmul.f32 %v572, %v574
    %v576 = vadd.f32 %v572, %v575
    %vm577 = vweird.f32 %v416
    %vm578 = vweird.f32 %v572
    %vm579 = vmor %vm577, %vm578
    %v580 = vsel %vm579, %v572, %v576
    %v581 = vand.u32 2147483647, %v416
    %vm582 = vcmp.eq.f32.partialorder %v581, 8.507059e+37
    %v583 = vand.u32 %v416, 2147483648
    %v584 = vor.u32 1.1754944e-38, %v583
    %v585 = vsel %vm582, %v584, %v580
    %v586 = vmul.f32 1.0, %v585
    %v587 = vrcp.pop %v417
    %v588 = vmul.f32 %v417, %v587
    %v589 = vsub.f32 1.0, %v588
    %v590 = vmul.f32 %v587, %v589
    %v591 = vadd.f32 %v587, %v590
    %vm592 = vweird.f32 %v417
    %vm593 = vweird.f32 %v587
    %vm594 = vmor %vm592, %vm593
    %v595 = vsel %vm594, %v587, %v591
    %v596 = vand.u32 2147483647, %v417
    %vm597 = vcmp.eq.f32.partialorder %v596, 8.507059e+37
    %v598 = vand.u32 %v417, 2147483648
    %v599 = vor.u32 1.1754944e-38, %v598
    %v600 = vsel %vm597, %v599, %v595
    %v601 = vmul.f32 1.0, %v600
    %v602 = vrcp.pop %v418
    %v603 = vmul.f32 %v418, %v602
    %v604 = vsub.f32 1.0, %v603
    %v605 = vmul.f32 %v602, %v604
    %v606 = vadd.f32 %v602, %v605
    %vm607 = vweird.f32 %v418
    %vm608 = vweird.f32 %v602
    %vm609 = vmor %vm607, %vm608
    %v610 = vsel %vm609, %v602, %v606
    %v611 = vand.u32 2147483647, %v418
    %vm612 = vcmp.eq.f32.partialorder %v611, 8.507059e+37
    %v613 = vand.u32 %v418, 2147483648
    %v614 = vor.u32 1.1754944e-38, %v613
    %v615 = vsel %vm612, %v614, %v610
    %v616 = vmul.f32 1.0, %v615
    %v617 = vrcp.pop %v419
    %v618 = vmul.f32 %v419, %v617
    %v619 = vsub.f32 1.0, %v618
    %v620 = vmul.f32 %v617, %v619
    %v621 = vadd.f32 %v617, %v620
    %vm622 = vweird.f32 %v419
    %vm623 = vweird.f32 %v617
    %vm624 = vmor %vm622, %vm623
    %v625 = vsel %vm624, %v617, %v621
    %v626 = vand.u32 2147483647, %v419
    %vm627 = vcmp.eq.f32.partialorder %v626, 8.507059e+37
    %v628 = vand.u32 %v419, 2147483648
    %v629 = vor.u32 1.1754944e-38, %v628
    %v630 = vsel %vm627, %v629, %v625
    %v631 = vmul.f32 1.0, %v630
    %v632 = vrcp.pop %v420
    %v633 = vmul.f32 %v420, %v632
    %v634 = vsub.f32 1.0, %v633
    %v635 = vmul.f32 %v632, %v634
    %v636 = vadd.f32 %v632, %v635
    %vm637 = vweird.f32 %v420
    %vm638 = vweird.f32 %v632
    %vm639 = vmor %vm637, %vm638
    %v640 = vsel %vm639, %v632, %v636
    %v641 = vand.u32 2147483647, %v420
    %vm642 = vcmp.eq.f32.partialorder %v641, 8.507059e+37
    %v643 = vand.u32 %v420, 2147483648
    %v644 = vor.u32 1.1754944e-38, %v643
    %v645 = vsel %vm642, %v644, %v640
    %v646 = vmul.f32 1.0, %v645
    %v647 = vrcp.pop %v421
    %v648 = vmul.f32 %v421, %v647
    %v649 = vsub.f32 1.0, %v648
    %v650 = vmul.f32 %v647, %v649
    %v651 = vadd.f32 %v647, %v650
    %vm652 = vweird.f32 %v421
    %vm653 = vweird.f32 %v647
    %vm654 = vmor %vm652, %vm653
    %v655 = vsel %vm654, %v647, %v651
    %v656 = vand.u32 2147483647, %v421
    %vm657 = vcmp.eq.f32.partialorder %v656, 8.507059e+37
    %v658 = vand.u32 %v421, 2147483648
    %v659 = vor.u32 1.1754944e-38, %v658
    %v660 = vsel %vm657, %v659, %v655
    %v661 = vmul.f32 1.0, %v660
    %v662 = vmul.f32 %v342, %v436
    %v663 = vmul.f32 %v343, %v451
    %v664 = vmul.f32 %v344, %v466
    %v665 = vmul.f32 %v345, %v481
    %v666 = vmul.f32 %v346, %v496
    %v667 = vmul.f32 %v347, %v511
    %v668 = vmul.f32 %v348, %v526
    %v669 = vmul.f32 %v349, %v541
    %v670 = vmul.f32 %v350, %v556
    %v671 = vmul.f32 %v351, %v571
    %v672 = vmul.f32 %v352, %v586
    %v673 = vmul.f32 %v353, %v601
    %v674 = vmul.f32 %v354, %v616
    %v675 = vmul.f32 %v355, %v631
    %v676 = vmul.f32 %v356, %v646
    %v677 = vmul.f32 %v357, %v661
    %v678 = vld [vmem:[%s2] sm:$0xff]
    %v679 = vld [vmem:[%s2 + $0x8] sm:$0xff]
    %v680 = vld [vmem:[%s2 + $0x10] sm:$0x1]
    %v681 = vld [vmem:[%s2 + $0x18] sm:$0x1]
    %682 = vrot.lane.b32.xlu0 %v662, 17
    %v683 = vpop.permute.xlu0 %682
    %684 = vrot.lane.b32.xlu0 %v666, 17
    %v685 = vpop.permute.xlu0 %684
    %686 = vrot.lane.b32.xlu0 %v670, 17
    %v687 = vpop.permute.xlu0 %686
    %688 = vrot.lane.b32.xlu0 %v674, 17
    %v689 = vpop.permute.xlu0 %688
    %690 = vrot.lane.b32.xlu0 %v663, 17
    %v691 = vpop.permute.xlu0 %690
    %692 = vrot.lane.b32.xlu0 %v667, 17
    %v693 = vpop.permute.xlu0 %692
    %694 = vrot.lane.b32.xlu0 %v671, 17
    %v695 = vpop.permute.xlu0 %694
    %696 = vrot.lane.b32.xlu0 %v675, 17
    %v697 = vpop.permute.xlu0 %696
    %698 = vrot.lane.b32.xlu0 %v664, 17
    %v699 = vpop.permute.xlu0 %698
    %700 = vrot.lane.b32.xlu0 %v668, 17
    %v701 = vpop.permute.xlu0 %700
    %702 = vrot.lane.b32.xlu0 %v672, 17
    %v703 = vpop.permute.xlu0 %702
    %704 = vrot.lane.b32.xlu0 %v676, 17
    %v705 = vpop.permute.xlu0 %704
    %706 = vrot.lane.b32.xlu0 %v665, 17
    %v707 = vpop.permute.xlu0 %706
    %708 = vrot.lane.b32.xlu0 %v669, 17
    %v709 = vpop.permute.xlu0 %708
    %710 = vrot.lane.b32.xlu0 %v673, 17
    %v711 = vpop.permute.xlu0 %710
    %712 = vrot.lane.b32.xlu0 %v677, 17
    %v713 = vpop.permute.xlu0 %712
    %v714 = vlaneseq
    %v715 = vand.u32 %v714, 127
    %vm716 = vcmp.lt.s32.totalorder %v715, 17
    %v717 = vsel %vm716, %v699, %v707
    %v718 = vsel %vm716, %v701, %v709
    %v719 = vsel %vm716, %v703, %v711
    %v720 = vsel %vm716, %v705, %v713
    %v721 = vsel %vm716, %v691, %v699
    %v722 = vsel %vm716, %v693, %v701
    %v723 = vsel %vm716, %v695, %v703
    %v724 = vsel %vm716, %v697, %v705
    %v725 = vsel %vm716, %v683, %v691
    %v726 = vsel %vm716, %v685, %v693
    %v727 = vsel %vm716, %v687, %v695
    %v728 = vsel %vm716, %v689, %v697
    %v729 = vsel %vm716, %v707, %v683
    %v730 = vsel %vm716, %v709, %v685
    %v731 = vsel %vm716, %v711, %v687
    %v732 = vsel %vm716, %v713, %v689
    %v733 = vperm.slane %v678, 0
    %v734 = vperm.slane %v679, 0
    %v735 = vmul.f32 %v729, %v733
    %v736 = vmul.f32 %v725, %v734
    %v737 = vmul.f32 %v721, %v733
    %v738 = vmul.f32 %v717, %v734
    %v739 = vmul.f32 %v730, %v733
    %v740 = vmul.f32 %v726, %v734
    %v741 = vmul.f32 %v722, %v733
    %v742 = vmul.f32 %v718, %v734
    %v743 = vmul.f32 %v731, %v733
    %v744 = vmul.f32 %v727, %v734
    %v745 = vmul.f32 %v723, %v733
    %v746 = vmul.f32 %v719, %v734
    %v747 = vmul.f32 %v732, %v733
    %v748 = vmul.f32 %v728, %v734
    %v749 = vmul.f32 %v724, %v733
    %v750 = vmul.f32 %v720, %v734
    %v751 = vpack.c.bf16 %v736, %v735
    %v752 = vpack.c.bf16 %v738, %v737
    %v753 = vpack.c.bf16 %v740, %v739
    %v754 = vpack.c.bf16 %v742, %v741
    %v755 = vpack.c.bf16 %v744, %v743
    %v756 = vpack.c.bf16 %v746, %v745
    %v757 = vpack.c.bf16 %v748, %v747
    %v758 = vpack.c.bf16 %v750, %v749
    %759 = vst [vmem:[#allocation2] sm:$0xff] %v751
    %760 = vst [vmem:[#allocation2 + $0x8] sm:$0xff] %v752
    %761 = vst [vmem:[#allocation2 + $0x10] sm:$0xff] %v753
    %762 = vst [vmem:[#allocation2 + $0x18] sm:$0xff] %v754
    %763 = vst [vmem:[#allocation2 + $0x20] sm:$0xff] %v755
    %764 = vst [vmem:[#allocation2 + $0x28] sm:$0xff] %v756
    %765 = vst [vmem:[#allocation2 + $0x30] sm:$0xff] %v757
    %766 = vst [vmem:[#allocation2 + $0x38] sm:$0xff] %v758
    %767 = vrot.lane.b32.xlu0 %v662, 16
    %v768 = vpop.permute.xlu0 %767
    %769 = vrot.lane.b32.xlu0 %v666, 16
    %v770 = vpop.permute.xlu0 %769
    %771 = vrot.lane.b32.xlu0 %v670, 16
    %v772 = vpop.permute.xlu0 %771
    %773 = vrot.lane.b32.xlu0 %v674, 16
    %v774 = vpop.permute.xlu0 %773
    %775 = vrot.lane.b32.xlu0 %v663, 16
    %v776 = vpop.permute.xlu0 %775
    %777 = vrot.lane.b32.xlu0 %v667, 16
    %v778 = vpop.permute.xlu0 %777
    %779 = vrot.lane.b32.xlu0 %v671, 16
    %v780 = vpop.permute.xlu0 %779
    %781 = vrot.lane.b32.xlu0 %v675, 16
    %v782 = vpop.permute.xlu0 %781
    %783 = vrot.lane.b32.xlu0 %v664, 16
    %v784 = vpop.permute.xlu0 %783
    %785 = vrot.lane.b32.xlu0 %v668, 16
    %v786 = vpop.permute.xlu0 %785
    %787 = vrot.lane.b32.xlu0 %v672, 16
    %v788 = vpop.permute.xlu0 %787
    %789 = vrot.lane.b32.xlu0 %v676, 16
    %v790 = vpop.permute.xlu0 %789
    %791 = vrot.lane.b32.xlu0 %v665, 16
    %v792 = vpop.permute.xlu0 %791
    %793 = vrot.lane.b32.xlu0 %v669, 16
    %v794 = vpop.permute.xlu0 %793
    %795 = vrot.lane.b32.xlu0 %v673, 16
    %v796 = vpop.permute.xlu0 %795
    %797 = vrot.lane.b32.xlu0 %v677, 16
    %v798 = vpop.permute.xlu0 %797
    %vm799 = vcmp.lt.s32.totalorder %v715, 16
    %v800 = vsel %vm799, %v784, %v792
    %v801 = vsel %vm799, %v786, %v794
    %v802 = vsel %vm799, %v788, %v796
    %v803 = vsel %vm799, %v790, %v798
    %v804 = vsel %vm799, %v776, %v784
    %v805 = vsel %vm799, %v778, %v786
    %v806 = vsel %vm799, %v780, %v788
    %v807 = vsel %vm799, %v782, %v790
    %v808 = vsel %vm799, %v768, %v776
    %v809 = vsel %vm799, %v770, %v778
    %v810 = vsel %vm799, %v772, %v780
    %v811 = vsel %vm799, %v774, %v782
    %v812 = vsel %vm799, %v792, %v768
    %v813 = vsel %vm799, %v794, %v770
    %v814 = vsel %vm799, %v796, %v772
    %v815 = vsel %vm799, %v798, %v774
    %v816 = vperm.slane %v678, 1
    %v817 = vperm.slane %v679, 1
    %v818 = vmul.f32 %v812, %v816
    %v819 = vmul.f32 %v808, %v817
    %v820 = vmul.f32 %v804, %v816
    %v821 = vmul.f32 %v800, %v817
    %v822 = vmul.f32 %v813, %v816
    %v823 = vmul.f32 %v809, %v817
    %v824 = vmul.f32 %v805, %v816
    %v825 = vmul.f32 %v801, %v817
    %v826 = vmul.f32 %v814, %v816
    %v827 = vmul.f32 %v810, %v817
    %v828 = vmul.f32 %v806, %v816
    %v829 = vmul.f32 %v802, %v817
    %v830 = vmul.f32 %v815, %v816
    %v831 = vmul.f32 %v811, %v817
    %v832 = vmul.f32 %v807, %v816
    %v833 = vmul.f32 %v803, %v817
    %v834 = vpack.c.bf16 %v819, %v818
    %v835 = vpack.c.bf16 %v821, %v820
    %v836 = vpack.c.bf16 %v823, %v822
    %v837 = vpack.c.bf16 %v825, %v824
    %v838 = vpack.c.bf16 %v827, %v826
    %v839 = vpack.c.bf16 %v829, %v828
    %v840 = vpack.c.bf16 %v831, %v830
    %v841 = vpack.c.bf16 %v833, %v832
    %842 = vst [vmem:[#allocation2 + $0x40] sm:$0xff] %v834
    %843 = vst [vmem:[#allocation2 + $0x48] sm:$0xff] %v835
    %844 = vst [vmem:[#allocation2 + $0x50] sm:$0xff] %v836
    %845 = vst [vmem:[#allocation2 + $0x58] sm:$0xff] %v837
    %846 = vst [vmem:[#allocation2 + $0x60] sm:$0xff] %v838
    %847 = vst [vmem:[#allocation2 + $0x68] sm:$0xff] %v839
    %848 = vst [vmem:[#allocation2 + $0x70] sm:$0xff] %v840
    %849 = vst [vmem:[#allocation2 + $0x78] sm:$0xff] %v841
    %850 = vrot.lane.b32.xlu0 %v662, 15
    %v851 = vpop.permute.xlu0 %850
    %852 = vrot.lane.b32.xlu0 %v666, 15
    %v853 = vpop.permute.xlu0 %852
    %854 = vrot.lane.b32.xlu0 %v670, 15
    %v855 = vpop.permute.xlu0 %854
    %856 = vrot.lane.b32.xlu0 %v674, 15
    %v857 = vpop.permute.xlu0 %856
    %858 = vrot.lane.b32.xlu0 %v663, 15
    %v859 = vpop.permute.xlu0 %858
    %860 = vrot.lane.b32.xlu0 %v667, 15
    %v861 = vpop.permute.xlu0 %860
    %862 = vrot.lane.b32.xlu0 %v671, 15
    %v863 = vpop.permute.xlu0 %862
    %864 = vrot.lane.b32.xlu0 %v675, 15
    %v865 = vpop.permute.xlu0 %864
    %866 = vrot.lane.b32.xlu0 %v664, 15
    %v867 = vpop.permute.xlu0 %866
    %868 = vrot.lane.b32.xlu0 %v668, 15
    %v869 = vpop.permute.xlu0 %868
    %870 = vrot.lane.b32.xlu0 %v672, 15
    %v871 = vpop.permute.xlu0 %870
    %872 = vrot.lane.b32.xlu0 %v676, 15
    %v873 = vpop.permute.xlu0 %872
    %874 = vrot.lane.b32.xlu0 %v665, 15
    %v875 = vpop.permute.xlu0 %874
    %876 = vrot.lane.b32.xlu0 %v669, 15
    %v877 = vpop.permute.xlu0 %876
    %878 = vrot.lane.b32.xlu0 %v673, 15
    %v879 = vpop.permute.xlu0 %878
    %880 = vrot.lane.b32.xlu0 %v677, 15
    %v881 = vpop.permute.xlu0 %880
    %vm882 = vcmp.lt.s32.totalorder %v715, 15
    %v883 = vsel %vm882, %v867, %v875
    %v884 = vsel %vm882, %v869, %v877
    %v885 = vsel %vm882, %v871, %v879
    %v886 = vsel %vm882, %v873, %v881
    %v887 = vsel %vm882, %v859, %v867
    %v888 = vsel %vm882, %v861, %v869
    %v889 = vsel %vm882, %v863, %v871
    %v890 = vsel %vm882, %v865, %v873
    %v891 = vsel %vm882, %v851, %v859
    %v892 = vsel %vm882, %v853, %v861
    %v893 = vsel %vm882, %v855, %v863
    %v894 = vsel %vm882, %v857, %v865
    %v895 = vsel %vm882, %v875, %v851
    %v896 = vsel %vm882, %v877, %v853
    %v897 = vsel %vm882, %v879, %v855
    %v898 = vsel %vm882, %v881, %v857
    %v899 = vperm.slane %v678, 2
    %v900 = vperm.slane %v679, 2
    %v901 = vmul.f32 %v895, %v899
    %v902 = vmul.f32 %v891, %v900
    %v903 = vmul.f32 %v887, %v899
    %v904 = vmul.f32 %v883, %v900
    %v905 = vmul.f32 %v896, %v899
    %v906 = vmul.f32 %v892, %v900
    %v907 = vmul.f32 %v888, %v899
    %v908 = vmul.f32 %v884, %v900
    %v909 = vmul.f32 %v897, %v899
    %v910 = vmul.f32 %v893, %v900
    %v911 = vmul.f32 %v889, %v899
    %v912 = vmul.f32 %v885, %v900
    %v913 = vmul.f32 %v898, %v899
    %v914 = vmul.f32 %v894, %v900
    %v915 = vmul.f32 %v890, %v899
    %v916 = vmul.f32 %v886, %v900
    %v917 = vpack.c.bf16 %v902, %v901
    %v918 = vpack.c.bf16 %v904, %v903
    %v919 = vpack.c.bf16 %v906, %v905
    %v920 = vpack.c.bf16 %v908, %v907
    %v921 = vpack.c.bf16 %v910, %v909
    %v922 = vpack.c.bf16 %v912, %v911
    %v923 = vpack.c.bf16 %v914, %v913
    %v924 = vpack.c.bf16 %v916, %v915
    %925 = vst [vmem:[#allocation2 + $0x80] sm:$0xff] %v917
    %926 = vst [vmem:[#allocation2 + $0x88] sm:$0xff] %v918
    %927 = vst [vmem:[#allocation2 + $0x90] sm:$0xff] %v919
    %928 = vst [vmem:[#allocation2 + $0x98] sm:$0xff] %v920
    %929 = vst [vmem:[#allocation2 + $0xa0] sm:$0xff] %v921
    %930 = vst [vmem:[#allocation2 + $0xa8] sm:$0xff] %v922
    %931 = vst [vmem:[#allocation2 + $0xb0] sm:$0xff] %v923
    %932 = vst [vmem:[#allocation2 + $0xb8] sm:$0xff] %v924
    %933 = vrot.lane.b32.xlu0 %v662, 1
    %v934 = vpop.permute.xlu0 %933
    %935 = vrot.lane.b32.xlu0 %v666, 1
    %v936 = vpop.permute.xlu0 %935
    %937 = vrot.lane.b32.xlu0 %v670, 1
    %v938 = vpop.permute.xlu0 %937
    %939 = vrot.lane.b32.xlu0 %v674, 1
    %v940 = vpop.permute.xlu0 %939
    %941 = vrot.lane.b32.xlu0 %v663, 1
    %v942 = vpop.permute.xlu0 %941
    %943 = vrot.lane.b32.xlu0 %v667, 1
    %v944 = vpop.permute.xlu0 %943
    %945 = vrot.lane.b32.xlu0 %v671, 1
    %v946 = vpop.permute.xlu0 %945
    %947 = vrot.lane.b32.xlu0 %v675, 1
    %v948 = vpop.permute.xlu0 %947
    %949 = vrot.lane.b32.xlu0 %v664, 1
    %v950 = vpop.permute.xlu0 %949
    %951 = vrot.lane.b32.xlu0 %v668, 1
    %v952 = vpop.permute.xlu0 %951
    %953 = vrot.lane.b32.xlu0 %v672, 1
    %v954 = vpop.permute.xlu0 %953
    %955 = vrot.lane.b32.xlu0 %v676, 1
    %v956 = vpop.permute.xlu0 %955
    %957 = vrot.lane.b32.xlu0 %v665, 1
    %v958 = vpop.permute.xlu0 %957
    %959 = vrot.lane.b32.xlu0 %v669, 1
    %v960 = vpop.permute.xlu0 %959
    %961 = vrot.lane.b32.xlu0 %v673, 1
    %v962 = vpop.permute.xlu0 %961
    %963 = vrot.lane.b32.xlu0 %v677, 1
    %v964 = vpop.permute.xlu0 %963
    %vm965 = vcmp.lt.s32.totalorder %v715, 1
    %v966 = vsel %vm965, %v950, %v958
    %v967 = vsel %vm965, %v952, %v960
    %v968 = vsel %vm965, %v954, %v962
    %v969 = vsel %vm965, %v956, %v964
    %v970 = vsel %vm965, %v942, %v950
    %v971 = vsel %vm965, %v944, %v952
    %v972 = vsel %vm965, %v946, %v954
    %v973 = vsel %vm965, %v948, %v956
    %v974 = vsel %vm965, %v934, %v942
    %v975 = vsel %vm965, %v936, %v944
    %v976 = vsel %vm965, %v938, %v946
    %v977 = vsel %vm965, %v940, %v948
    %v978 = vsel %vm965, %v958, %v934
    %v979 = vsel %vm965, %v960, %v936
    %v980 = vsel %vm965, %v962, %v938
    %v981 = vsel %vm965, %v964, %v940
    %v982 = vperm.slane %v678, 3
    %v983 = vperm.slane %v679, 3
    %v984 = vmul.f32 %v978, %v982
    %v985 = vmul.f32 %v974, %v983
    %v986 = vmul.f32 %v970, %v982
    %v987 = vmul.f32 %v966, %v983
    %v988 = vmul.f32 %v979, %v982
    %v989 = vmul.f32 %v975, %v983
    %v990 = vmul.f32 %v971, %v982
    %v991 = vmul.f32 %v967, %v983
    %v992 = vmul.f32 %v980, %v982
    %v993 = vmul.f32 %v976, %v983
    %v994 = vmul.f32 %v972, %v982
    %v995 = vmul.f32 %v968, %v983
    %v996 = vmul.f32 %v981, %v982
    %v997 = vmul.f32 %v977, %v983
    %v998 = vmul.f32 %v973, %v982
    %v999 = vmul.f32 %v969, %v983
    %v1000 = vpack.c.bf16 %v985, %v984
    %v1001 = vpack.c.bf16 %v987, %v986
    %v1002 = vpack.c.bf16 %v989, %v988
    %v1003 = vpack.c.bf16 %v991, %v990
    %v1004 = vpack.c.bf16 %v993, %v992
    %v1005 = vpack.c.bf16 %v995, %v994
    %v1006 = vpack.c.bf16 %v997, %v996
    %v1007 = vpack.c.bf16 %v999, %v998
    %1008 = vst [vmem:[#allocation2 + $0xc0] sm:$0xff] %v1000
    %1009 = vst [vmem:[#allocation2 + $0xc8] sm:$0xff] %v1001
    %1010 = vst [vmem:[#allocation2 + $0xd0] sm:$0xff] %v1002
    %1011 = vst [vmem:[#allocation2 + $0xd8] sm:$0xff] %v1003
    %1012 = vst [vmem:[#allocation2 + $0xe0] sm:$0xff] %v1004
    %1013 = vst [vmem:[#allocation2 + $0xe8] sm:$0xff] %v1005
    %1014 = vst [vmem:[#allocation2 + $0xf0] sm:$0xff] %v1006
    %1015 = vst [vmem:[#allocation2 + $0xf8] sm:$0xff] %v1007
    %v1016 = vperm.slane %v678, 4
    %v1017 = vperm.slane %v679, 4
    %v1018 = vmul.f32 %v662, %v1016
    %v1019 = vmul.f32 %v663, %v1017
    %v1020 = vmul.f32 %v664, %v1016
    %v1021 = vmul.f32 %v665, %v1017
    %v1022 = vmul.f32 %v666, %v1016
    %v1023 = vmul.f32 %v667, %v1017
    %v1024 = vmul.f32 %v668, %v1016
    %v1025 = vmul.f32 %v669, %v1017
    %v1026 = vmul.f32 %v670, %v1016
    %v1027 = vmul.f32 %v671, %v1017
    %v1028 = vmul.f32 %v672, %v1016
    %v1029 = vmul.f32 %v673, %v1017
    %v1030 = vmul.f32 %v674, %v1016
    %v1031 = vmul.f32 %v675, %v1017
    %v1032 = vmul.f32 %v676, %v1016
    %v1033 = vmul.f32 %v677, %v1017
    %v1034 = vpack.c.bf16 %v1019, %v1018
    %v1035 = vpack.c.bf16 %v1021, %v1020
    %v1036 = vpack.c.bf16 %v1023, %v1022
    %v1037 = vpack.c.bf16 %v1025, %v1024
    %v1038 = vpack.c.bf16 %v1027, %v1026
    %v1039 = vpack.c.bf16 %v1029, %v1028
    %v1040 = vpack.c.bf16 %v1031, %v1030
    %v1041 = vpack.c.bf16 %v1033, %v1032
    %1042 = vst [vmem:[#allocation2 + $0x100] sm:$0xff] %v1034
    %1043 = vst [vmem:[#allocation2 + $0x108] sm:$0xff] %v1035
    %1044 = vst [vmem:[#allocation2 + $0x110] sm:$0xff] %v1036
    %1045 = vst [vmem:[#allocation2 + $0x118] sm:$0xff] %v1037
    %1046 = vst [vmem:[#allocation2 + $0x120] sm:$0xff] %v1038
    %1047 = vst [vmem:[#allocation2 + $0x128] sm:$0xff] %v1039
    %1048 = vst [vmem:[#allocation2 + $0x130] sm:$0xff] %v1040
    %1049 = vst [vmem:[#allocation2 + $0x138] sm:$0xff] %v1041
    %1050 = vrot.lane.b32.xlu0 %v662, 127
    %v1051 = vpop.permute.xlu0 %1050
    %1052 = vrot.lane.b32.xlu0 %v666, 127
    %v1053 = vpop.permute.xlu0 %1052
    %1054 = vrot.lane.b32.xlu0 %v670, 127
    %v1055 = vpop.permute.xlu0 %1054
    %1056 = vrot.lane.b32.xlu0 %v674, 127
    %v1057 = vpop.permute.xlu0 %1056
    %1058 = vrot.lane.b32.xlu0 %v663, 127
    %v1059 = vpop.permute.xlu0 %1058
    %1060 = vrot.lane.b32.xlu0 %v667, 127
    %v1061 = vpop.permute.xlu0 %1060
    %1062 = vrot.lane.b32.xlu0 %v671, 127
    %v1063 = vpop.permute.xlu0 %1062
    %1064 = vrot.lane.b32.xlu0 %v675, 127
    %v1065 = vpop.permute.xlu0 %1064
    %1066 = vrot.lane.b32.xlu0 %v664, 127
    %v1067 = vpop.permute.xlu0 %1066
    %1068 = vrot.lane.b32.xlu0 %v668, 127
    %v1069 = vpop.permute.xlu0 %1068
    %1070 = vrot.lane.b32.xlu0 %v672, 127
    %v1071 = vpop.permute.xlu0 %1070
    %1072 = vrot.lane.b32.xlu0 %v676, 127
    %v1073 = vpop.permute.xlu0 %1072
    %1074 = vrot.lane.b32.xlu0 %v665, 127
    %v1075 = vpop.permute.xlu0 %1074
    %1076 = vrot.lane.b32.xlu0 %v669, 127
    %v1077 = vpop.permute.xlu0 %1076
    %1078 = vrot.lane.b32.xlu0 %v673, 127
    %v1079 = vpop.permute.xlu0 %1078
    %1080 = vrot.lane.b32.xlu0 %v677, 127
    %v1081 = vpop.permute.xlu0 %1080
    %vm1082 = vcmp.lt.s32.totalorder %v715, 127
    %v1083 = vsel %vm1082, %v1067, %v1075
    %v1084 = vsel %vm1082, %v1069, %v1077
    %v1085 = vsel %vm1082, %v1071, %v1079
    %v1086 = vsel %vm1082, %v1073, %v1081
    %v1087 = vsel %vm1082, %v1059, %v1067
    %v1088 = vsel %vm1082, %v1061, %v1069
    %v1089 = vsel %vm1082, %v1063, %v1071
    %v1090 = vsel %vm1082, %v1065, %v1073
    %v1091 = vsel %vm1082, %v1051, %v1059
    %v1092 = vsel %vm1082, %v1053, %v1061
    %v1093 = vsel %vm1082, %v1055, %v1063
    %v1094 = vsel %vm1082, %v1057, %v1065
    %v1095 = vsel %vm1082, %v1075, %v1051
    %v1096 = vsel %vm1082, %v1077, %v1053
    %v1097 = vsel %vm1082, %v1079, %v1055
    %v1098 = vsel %vm1082, %v1081, %v1057
    %v1099 = vperm.slane %v678, 5
    %v1100 = vperm.slane %v679, 5
    %v1101 = vmul.f32 %v1091, %v1099
    %v1102 = vmul.f32 %v1087, %v1100
    %v1103 = vmul.f32 %v1083, %v1099
    %v1104 = vmul.f32 %v1095, %v1100
    %v1105 = vmul.f32 %v1092, %v1099
    %v1106 = vmul.f32 %v1088, %v1100
    %v1107 = vmul.f32 %v1084, %v1099
    %v1108 = vmul.f32 %v1096, %v1100
    %v1109 = vmul.f32 %v1093, %v1099
    %v1110 = vmul.f32 %v1089, %v1100
    %v1111 = vmul.f32 %v1085, %v1099
    %v1112 = vmul.f32 %v1097, %v1100
    %v1113 = vmul.f32 %v1094, %v1099
    %v1114 = vmul.f32 %v1090, %v1100
    %v1115 = vmul.f32 %v1086, %v1099
    %v1116 = vmul.f32 %v1098, %v1100
    %v1117 = vpack.c.bf16 %v1102, %v1101
    %v1118 = vpack.c.bf16 %v1104, %v1103
    %v1119 = vpack.c.bf16 %v1106, %v1105
    %v1120 = vpack.c.bf16 %v1108, %v1107
    %v1121 = vpack.c.bf16 %v1110, %v1109
    %v1122 = vpack.c.bf16 %v1112, %v1111
    %v1123 = vpack.c.bf16 %v1114, %v1113
    %v1124 = vpack.c.bf16 %v1116, %v1115
    %1125 = vst [vmem:[#allocation2 + $0x140] sm:$0xff] %v1117
    %1126 = vst [vmem:[#allocation2 + $0x148] sm:$0xff] %v1118
    %1127 = vst [vmem:[#allocation2 + $0x150] sm:$0xff] %v1119
    %1128 = vst [vmem:[#allocation2 + $0x158] sm:$0xff] %v1120
    %1129 = vst [vmem:[#allocation2 + $0x160] sm:$0xff] %v1121
    %1130 = vst [vmem:[#allocation2 + $0x168] sm:$0xff] %v1122
    %1131 = vst [vmem:[#allocation2 + $0x170] sm:$0xff] %v1123
    %1132 = vst [vmem:[#allocation2 + $0x178] sm:$0xff] %v1124
    %1133 = vrot.lane.b32.xlu0 %v662, 113
    %v1134 = vpop.permute.xlu0 %1133
    %1135 = vrot.lane.b32.xlu0 %v666, 113
    %v1136 = vpop.permute.xlu0 %1135
    %1137 = vrot.lane.b32.xlu0 %v670, 113
    %v1138 = vpop.permute.xlu0 %1137
    %1139 = vrot.lane.b32.xlu0 %v674, 113
    %v1140 = vpop.permute.xlu0 %1139
    %1141 = vrot.lane.b32.xlu0 %v663, 113
    %v1142 = vpop.permute.xlu0 %1141
    %1143 = vrot.lane.b32.xlu0 %v667, 113
    %v1144 = vpop.permute.xlu0 %1143
    %1145 = vrot.lane.b32.xlu0 %v671, 113
    %v1146 = vpop.permute.xlu0 %1145
    %1147 = vrot.lane.b32.xlu0 %v675, 113
    %v1148 = vpop.permute.xlu0 %1147
    %1149 = vrot.lane.b32.xlu0 %v664, 113
    %v1150 = vpop.permute.xlu0 %1149
    %1151 = vrot.lane.b32.xlu0 %v668, 113
    %v1152 = vpop.permute.xlu0 %1151
    %1153 = vrot.lane.b32.xlu0 %v672, 113
    %v1154 = vpop.permute.xlu0 %1153
    %1155 = vrot.lane.b32.xlu0 %v676, 113
    %v1156 = vpop.permute.xlu0 %1155
    %1157 = vrot.lane.b32.xlu0 %v665, 113
    %v1158 = vpop.permute.xlu0 %1157
    %1159 = vrot.lane.b32.xlu0 %v669, 113
    %v1160 = vpop.permute.xlu0 %1159
    %1161 = vrot.lane.b32.xlu0 %v673, 113
    %v1162 = vpop.permute.xlu0 %1161
    %1163 = vrot.lane.b32.xlu0 %v677, 113
    %v1164 = vpop.permute.xlu0 %1163
    %vm1165 = vcmp.lt.s32.totalorder %v715, 113
    %v1166 = vsel %vm1165, %v1150, %v1158
    %v1167 = vsel %vm1165, %v1152, %v1160
    %v1168 = vsel %vm1165, %v1154, %v1162
    %v1169 = vsel %vm1165, %v1156, %v1164
    %v1170 = vsel %vm1165, %v1142, %v1150
    %v1171 = vsel %vm1165, %v1144, %v1152
    %v1172 = vsel %vm1165, %v1146, %v1154
    %v1173 = vsel %vm1165, %v1148, %v1156
    %v1174 = vsel %vm1165, %v1134, %v1142
    %v1175 = vsel %vm1165, %v1136, %v1144
    %v1176 = vsel %vm1165, %v1138, %v1146
    %v1177 = vsel %vm1165, %v1140, %v1148
    %v1178 = vsel %vm1165, %v1158, %v1134
    %v1179 = vsel %vm1165, %v1160, %v1136
    %v1180 = vsel %vm1165, %v1162, %v1138
    %v1181 = vsel %vm1165, %v1164, %v1140
    %v1182 = vperm.slane %v678, 6
    %v1183 = vperm.slane %v679, 6
    %v1184 = vmul.f32 %v1174, %v1182
    %v1185 = vmul.f32 %v1170, %v1183
    %v1186 = vmul.f32 %v1166, %v1182
    %v1187 = vmul.f32 %v1178, %v1183
    %v1188 = vmul.f32 %v1175, %v1182
    %v1189 = vmul.f32 %v1171, %v1183
    %v1190 = vmul.f32 %v1167, %v1182
    %v1191 = vmul.f32 %v1179, %v1183
    %v1192 = vmul.f32 %v1176, %v1182
    %v1193 = vmul.f32 %v1172, %v1183
    %v1194 = vmul.f32 %v1168, %v1182
    %v1195 = vmul.f32 %v1180, %v1183
    %v1196 = vmul.f32 %v1177, %v1182
    %v1197 = vmul.f32 %v1173, %v1183
    %v1198 = vmul.f32 %v1169, %v1182
    %v1199 = vmul.f32 %v1181, %v1183
    %v1200 = vpack.c.bf16 %v1185, %v1184
    %v1201 = vpack.c.bf16 %v1187, %v1186
    %v1202 = vpack.c.bf16 %v1189, %v1188
    %v1203 = vpack.c.bf16 %v1191, %v1190
    %v1204 = vpack.c.bf16 %v1193, %v1192
    %v1205 = vpack.c.bf16 %v1195, %v1194
    %v1206 = vpack.c.bf16 %v1197, %v1196
    %v1207 = vpack.c.bf16 %v1199, %v1198
    %1208 = vst [vmem:[#allocation2 + $0x180] sm:$0xff] %v1200
    %1209 = vst [vmem:[#allocation2 + $0x188] sm:$0xff] %v1201
    %1210 = vst [vmem:[#allocation2 + $0x190] sm:$0xff] %v1202
    %1211 = vst [vmem:[#allocation2 + $0x198] sm:$0xff] %v1203
    %1212 = vst [vmem:[#allocation2 + $0x1a0] sm:$0xff] %v1204
    %1213 = vst [vmem:[#allocation2 + $0x1a8] sm:$0xff] %v1205
    %1214 = vst [vmem:[#allocation2 + $0x1b0] sm:$0xff] %v1206
    %1215 = vst [vmem:[#allocation2 + $0x1b8] sm:$0xff] %v1207
    %1216 = vrot.lane.b32.xlu0 %v662, 112
    %v1217 = vpop.permute.xlu0 %1216
    %1218 = vrot.lane.b32.xlu0 %v666, 112
    %v1219 = vpop.permute.xlu0 %1218
    %1220 = vrot.lane.b32.xlu0 %v670, 112
    %v1221 = vpop.permute.xlu0 %1220
    %1222 = vrot.lane.b32.xlu0 %v674, 112
    %v1223 = vpop.permute.xlu0 %1222
    %1224 = vrot.lane.b32.xlu0 %v663, 112
    %v1225 = vpop.permute.xlu0 %1224
    %1226 = vrot.lane.b32.xlu0 %v667, 112
    %v1227 = vpop.permute.xlu0 %1226
    %1228 = vrot.lane.b32.xlu0 %v671, 112
    %v1229 = vpop.permute.xlu0 %1228
    %1230 = vrot.lane.b32.xlu0 %v675, 112
    %v1231 = vpop.permute.xlu0 %1230
    %1232 = vrot.lane.b32.xlu0 %v664, 112
    %v1233 = vpop.permute.xlu0 %1232
    %1234 = vrot.lane.b32.xlu0 %v668, 112
    %v1235 = vpop.permute.xlu0 %1234
    %1236 = vrot.lane.b32.xlu0 %v672, 112
    %v1237 = vpop.permute.xlu0 %1236
    %1238 = vrot.lane.b32.xlu0 %v676, 112
    %v1239 = vpop.permute.xlu0 %1238
    %1240 = vrot.lane.b32.xlu0 %v665, 112
    %v1241 = vpop.permute.xlu0 %1240
    %1242 = vrot.lane.b32.xlu0 %v669, 112
    %v1243 = vpop.permute.xlu0 %1242
    %1244 = vrot.lane.b32.xlu0 %v673, 112
    %v1245 = vpop.permute.xlu0 %1244
    %1246 = vrot.lane.b32.xlu0 %v677, 112
    %v1247 = vpop.permute.xlu0 %1246
    %vm1248 = vcmp.lt.s32.totalorder %v715, 112
    %v1249 = vsel %vm1248, %v1233, %v1241
    %v1250 = vsel %vm1248, %v1235, %v1243
    %v1251 = vsel %vm1248, %v1237, %v1245
    %v1252 = vsel %vm1248, %v1239, %v1247
    %v1253 = vsel %vm1248, %v1225, %v1233
    %v1254 = vsel %vm1248, %v1227, %v1235
    %v1255 = vsel %vm1248, %v1229, %v1237
    %v1256 = vsel %vm1248, %v1231, %v1239
    %v1257 = vsel %vm1248, %v1217, %v1225
    %v1258 = vsel %vm1248, %v1219, %v1227
    %v1259 = vsel %vm1248, %v1221, %v1229
    %v1260 = vsel %vm1248, %v1223, %v1231
    %v1261 = vsel %vm1248, %v1241, %v1217
    %v1262 = vsel %vm1248, %v1243, %v1219
    %v1263 = vsel %vm1248, %v1245, %v1221
    %v1264 = vsel %vm1248, %v1247, %v1223
    %v1265 = vperm.slane %v678, 7
    %v1266 = vperm.slane %v679, 7
    %v1267 = vmul.f32 %v1257, %v1265
    %v1268 = vmul.f32 %v1253, %v1266
    %v1269 = vmul.f32 %v1249, %v1265
    %v1270 = vmul.f32 %v1261, %v1266
    %v1271 = vmul.f32 %v1258, %v1265
    %v1272 = vmul.f32 %v1254, %v1266
    %v1273 = vmul.f32 %v1250, %v1265
    %v1274 = vmul.f32 %v1262, %v1266
    %v1275 = vmul.f32 %v1259, %v1265
    %v1276 = vmul.f32 %v1255, %v1266
    %v1277 = vmul.f32 %v1251, %v1265
    %v1278 = vmul.f32 %v1263, %v1266
    %v1279 = vmul.f32 %v1260, %v1265
    %v1280 = vmul.f32 %v1256, %v1266
    %v1281 = vmul.f32 %v1252, %v1265
    %v1282 = vmul.f32 %v1264, %v1266
    %v1283 = vpack.c.bf16 %v1268, %v1267
    %v1284 = vpack.c.bf16 %v1270, %v1269
    %v1285 = vpack.c.bf16 %v1272, %v1271
    %v1286 = vpack.c.bf16 %v1274, %v1273
    %v1287 = vpack.c.bf16 %v1276, %v1275
    %v1288 = vpack.c.bf16 %v1278, %v1277
    %v1289 = vpack.c.bf16 %v1280, %v1279
    %v1290 = vpack.c.bf16 %v1282, %v1281
    %1291 = vst [vmem:[#allocation2 + $0x1c0] sm:$0xff] %v1283
    %1292 = vst [vmem:[#allocation2 + $0x1c8] sm:$0xff] %v1284
    %1293 = vst [vmem:[#allocation2 + $0x1d0] sm:$0xff] %v1285
    %1294 = vst [vmem:[#allocation2 + $0x1d8] sm:$0xff] %v1286
    %1295 = vst [vmem:[#allocation2 + $0x1e0] sm:$0xff] %v1287
    %1296 = vst [vmem:[#allocation2 + $0x1e8] sm:$0xff] %v1288
    %1297 = vst [vmem:[#allocation2 + $0x1f0] sm:$0xff] %v1289
    %1298 = vst [vmem:[#allocation2 + $0x1f8] sm:$0xff] %v1290
    %1299 = vrot.lane.b32.xlu0 %v662, 111
    %v1300 = vpop.permute.xlu0 %1299
    %1301 = vrot.lane.b32.xlu0 %v666, 111
    %v1302 = vpop.permute.xlu0 %1301
    %1303 = vrot.lane.b32.xlu0 %v670, 111
    %v1304 = vpop.permute.xlu0 %1303
    %1305 = vrot.lane.b32.xlu0 %v674, 111
    %v1306 = vpop.permute.xlu0 %1305
    %1307 = vrot.lane.b32.xlu0 %v663, 111
    %v1308 = vpop.permute.xlu0 %1307
    %1309 = vrot.lane.b32.xlu0 %v667, 111
    %v1310 = vpop.permute.xlu0 %1309
    %1311 = vrot.lane.b32.xlu0 %v671, 111
    %v1312 = vpop.permute.xlu0 %1311
    %1313 = vrot.lane.b32.xlu0 %v675, 111
    %v1314 = vpop.permute.xlu0 %1313
    %1315 = vrot.lane.b32.xlu0 %v664, 111
    %v1316 = vpop.permute.xlu0 %1315
    %1317 = vrot.lane.b32.xlu0 %v668, 111
    %v1318 = vpop.permute.xlu0 %1317
    %1319 = vrot.lane.b32.xlu0 %v672, 111
    %v1320 = vpop.permute.xlu0 %1319
    %1321 = vrot.lane.b32.xlu0 %v676, 111
    %v1322 = vpop.permute.xlu0 %1321
    %1323 = vrot.lane.b32.xlu0 %v665, 111
    %v1324 = vpop.permute.xlu0 %1323
    %1325 = vrot.lane.b32.xlu0 %v669, 111
    %v1326 = vpop.permute.xlu0 %1325
    %1327 = vrot.lane.b32.xlu0 %v673, 111
    %v1328 = vpop.permute.xlu0 %1327
    %1329 = vrot.lane.b32.xlu0 %v677, 111
    %v1330 = vpop.permute.xlu0 %1329
    %vm1331 = vcmp.lt.s32.totalorder %v715, 111
    %v1332 = vsel %vm1331, %v1316, %v1324
    %v1333 = vsel %vm1331, %v1318, %v1326
    %v1334 = vsel %vm1331, %v1320, %v1328
    %v1335 = vsel %vm1331, %v1322, %v1330
    %v1336 = vsel %vm1331, %v1308, %v1316
    %v1337 = vsel %vm1331, %v1310, %v1318
    %v1338 = vsel %vm1331, %v1312, %v1320
    %v1339 = vsel %vm1331, %v1314, %v1322
    %v1340 = vsel %vm1331, %v1300, %v1308
    %v1341 = vsel %vm1331, %v1302, %v1310
    %v1342 = vsel %vm1331, %v1304, %v1312
    %v1343 = vsel %vm1331, %v1306, %v1314
    %v1344 = vsel %vm1331, %v1324, %v1300
    %v1345 = vsel %vm1331, %v1326, %v1302
    %v1346 = vsel %vm1331, %v1328, %v1304
    %v1347 = vsel %vm1331, %v1330, %v1306
    %v1348 = vperm.slane %v680, 0
    %v1349 = vperm.slane %v681, 0
    %v1350 = vmul.f32 %v1340, %v1348
    %v1351 = vmul.f32 %v1336, %v1349
    %v1352 = vmul.f32 %v1332, %v1348
    %v1353 = vmul.f32 %v1344, %v1349
    %v1354 = vmul.f32 %v1341, %v1348
    %v1355 = vmul.f32 %v1337, %v1349
    %v1356 = vmul.f32 %v1333, %v1348
    %v1357 = vmul.f32 %v1345, %v1349
    %v1358 = vmul.f32 %v1342, %v1348
    %v1359 = vmul.f32 %v1338, %v1349
    %v1360 = vmul.f32 %v1334, %v1348
    %v1361 = vmul.f32 %v1346, %v1349
    %v1362 = vmul.f32 %v1343, %v1348
    %v1363 = vmul.f32 %v1339, %v1349
    %v1364 = vmul.f32 %v1335, %v1348
    %v1365 = vmul.f32 %v1347, %v1349
    %v1366 = vpack.c.bf16 %v1351, %v1350
    %v1367 = vpack.c.bf16 %v1353, %v1352
    %v1368 = vpack.c.bf16 %v1355, %v1354
    %v1369 = vpack.c.bf16 %v1357, %v1356
    %v1370 = vpack.c.bf16 %v1359, %v1358
    %v1371 = vpack.c.bf16 %v1361, %v1360
    %v1372 = vpack.c.bf16 %v1363, %v1362
    %v1373 = vpack.c.bf16 %v1365, %v1364
    %1374 = vst [vmem:[#allocation2 + $0x200] sm:$0xff] %v1366
    %1375 = vst [vmem:[#allocation2 + $0x208] sm:$0xff] %v1367
    %1376 = vst [vmem:[#allocation2 + $0x210] sm:$0xff] %v1368
    %1377 = vst [vmem:[#allocation2 + $0x218] sm:$0xff] %v1369
    %1378 = vst [vmem:[#allocation2 + $0x220] sm:$0xff] %v1370
    %1379 = vst [vmem:[#allocation2 + $0x228] sm:$0xff] %v1371
    %1380 = vst [vmem:[#allocation2 + $0x230] sm:$0xff] %v1372
    %1381 = vst [vmem:[#allocation2 + $0x238] sm:$0xff] %v1373
    %v1382 = vld [vmem:[%s5] sm:$0xff]
    %v1383 = vld [vmem:[%s5 + $0x8] sm:$0xf]
    %v1384 = vld [vmem:[%s5 + $0xc] sm:$0xff]
    %v1385 = vld [vmem:[%s5 + $0x14] sm:$0xf]
    %v1386 = vld [vmem:[%s5 + $0x18] sm:$0xff]
    %v1387 = vld [vmem:[%s5 + $0x20] sm:$0xf]
    %v1388 = vld [vmem:[%s5 + $0x24] sm:$0xff]
    %v1389 = vld [vmem:[%s5 + $0x2c] sm:$0xf]
    %v1390 = vld [vmem:[#allocation2] sm:$0xff]
    %v1391 = vld [vmem:[#allocation2 + $0x8] sm:$0xff]
    %v1392 = vld [vmem:[#allocation2 + $0x10] sm:$0xff]
    %v1393 = vld [vmem:[#allocation2 + $0x18] sm:$0xff]
    %v1394 = vld [vmem:[#allocation2 + $0x20] sm:$0xff]
    %v1395 = vld [vmem:[#allocation2 + $0x28] sm:$0xff]
    %v1396 = vld [vmem:[#allocation2 + $0x30] sm:$0xff]
    %v1397 = vld [vmem:[#allocation2 + $0x38] sm:$0xff]
    %v1398 = vld [vmem:[#allocation2 + $0x40] sm:$0xff]
    %v1399 = vld [vmem:[#allocation2 + $0x48] sm:$0xff]
    %v1400 = vld [vmem:[#allocation2 + $0x50] sm:$0xff]
    %v1401 = vld [vmem:[#allocation2 + $0x58] sm:$0xff]
    %v1402 = vld [vmem:[#allocation2 + $0x60] sm:$0xff]
    %v1403 = vld [vmem:[#allocation2 + $0x68] sm:$0xff]
    %v1404 = vld [vmem:[#allocation2 + $0x70] sm:$0xff]
    %v1405 = vld [vmem:[#allocation2 + $0x78] sm:$0xff]
    %v1406 = vld [vmem:[#allocation2 + $0x80] sm:$0xff]
    %v1407 = vld [vmem:[#allocation2 + $0x88] sm:$0xff]
    %v1408 = vld [vmem:[#allocation2 + $0x90] sm:$0xff]
    %v1409 = vld [vmem:[#allocation2 + $0x98] sm:$0xff]
    %v1410 = vld [vmem:[#allocation2 + $0xa0] sm:$0xff]
    %v1411 = vld [vmem:[#allocation2 + $0xa8] sm:$0xff]
    %v1412 = vld [vmem:[#allocation2 + $0xb0] sm:$0xff]
    %v1413 = vld [vmem:[#allocation2 + $0xb8] sm:$0xff]
    %v1414 = vld [vmem:[#allocation2 + $0xc0] sm:$0xff]
    %v1415 = vld [vmem:[#allocation2 + $0xc8] sm:$0xff]
    %v1416 = vld [vmem:[#allocation2 + $0xd0] sm:$0xff]
    %v1417 = vld [vmem:[#allocation2 + $0xd8] sm:$0xff]
    %v1418 = vld [vmem:[#allocation2 + $0xe0] sm:$0xff]
    %v1419 = vld [vmem:[#allocation2 + $0xe8] sm:$0xff]
    %v1420 = vld [vmem:[#allocation2 + $0xf0] sm:$0xff]
    %v1421 = vld [vmem:[#allocation2 + $0xf8] sm:$0xff]
    %v1422 = vld [vmem:[#allocation2 + $0x100] sm:$0xff]
    %v1423 = vld [vmem:[#allocation2 + $0x108] sm:$0xff]
    %v1424 = vld [vmem:[#allocation2 + $0x110] sm:$0xff]
    %v1425 = vld [vmem:[#allocation2 + $0x118] sm:$0xff]
    %v1426 = vld [vmem:[#allocation2 + $0x120] sm:$0xff]
    %v1427 = vld [vmem:[#allocation2 + $0x128] sm:$0xff]
    %v1428 = vld [vmem:[#allocation2 + $0x130] sm:$0xff]
    %v1429 = vld [vmem:[#allocation2 + $0x138] sm:$0xff]
    %v1430 = vld [vmem:[#allocation2 + $0x140] sm:$0xff]
    %v1431 = vld [vmem:[#allocation2 + $0x148] sm:$0xff]
    %v1432 = vld [vmem:[#allocation2 + $0x150] sm:$0xff]
    %v1433 = vld [vmem:[#allocation2 + $0x158] sm:$0xff]
    %v1434 = vld [vmem:[#allocation2 + $0x160] sm:$0xff]
    %v1435 = vld [vmem:[#allocation2 + $0x168] sm:$0xff]
    %v1436 = vld [vmem:[#allocation2 + $0x170] sm:$0xff]
    %v1437 = vld [vmem:[#allocation2 + $0x178] sm:$0xff]
    %v1438 = vld [vmem:[#allocation2 + $0x180] sm:$0xff]
    %v1439 = vld [vmem:[#allocation2 + $0x188] sm:$0xff]
    %v1440 = vld [vmem:[#allocation2 + $0x190] sm:$0xff]
    %v1441 = vld [vmem:[#allocation2 + $0x198] sm:$0xff]
    %v1442 = vld [vmem:[#allocation2 + $0x1a0] sm:$0xff]
    %v1443 = vld [vmem:[#allocation2 + $0x1a8] sm:$0xff]
    %v1444 = vld [vmem:[#allocation2 + $0x1b0] sm:$0xff]
    %v1445 = vld [vmem:[#allocation2 + $0x1b8] sm:$0xff]
    %v1446 = vld [vmem:[#allocation2 + $0x1c0] sm:$0xff]
    %v1447 = vld [vmem:[#allocation2 + $0x1c8] sm:$0xff]
    %v1448 = vld [vmem:[#allocation2 + $0x1d0] sm:$0xff]
    %v1449 = vld [vmem:[#allocation2 + $0x1d8] sm:$0xff]
    %v1450 = vld [vmem:[#allocation2 + $0x1e0] sm:$0xff]
    %v1451 = vld [vmem:[#allocation2 + $0x1e8] sm:$0xff]
    %v1452 = vld [vmem:[#allocation2 + $0x1f0] sm:$0xff]
    %v1453 = vld [vmem:[#allocation2 + $0x1f8] sm:$0xff]
    %v1454 = vld [vmem:[#allocation2 + $0x200] sm:$0xff]
    %v1455 = vld [vmem:[#allocation2 + $0x208] sm:$0xff]
    %v1456 = vld [vmem:[#allocation2 + $0x210] sm:$0xff]
    %v1457 = vld [vmem:[#allocation2 + $0x218] sm:$0xff]
    %v1458 = vld [vmem:[#allocation2 + $0x220] sm:$0xff]
    %v1459 = vld [vmem:[#allocation2 + $0x228] sm:$0xff]
    %v1460 = vld [vmem:[#allocation2 + $0x230] sm:$0xff]
    %v1461 = vld [vmem:[#allocation2 + $0x238] sm:$0xff]
    %v1470 = vunpack.c.l.b16 %v1382
    %v1471 = vunpack.c.h.b16 %v1382
    %v1472 = vunpack.c.l.b16 %v1383
    %v1473 = vunpack.c.l.b16 %v1384
    %v1474 = vunpack.c.h.b16 %v1384
    %v1475 = vunpack.c.l.b16 %v1385
    %v1476 = vunpack.c.l.b16 %v1386
    %v1477 = vunpack.c.h.b16 %v1386
    %v1478 = vunpack.c.l.b16 %v1387
    %v1479 = vunpack.c.l.b16 %v1388
    %v1480 = vunpack.c.h.b16 %v1388
    %v1481 = vunpack.c.l.b16 %v1389
    %v1482 = vpack.c.b16 %v1473, %v1470
    %v1483 = vpack.c.b16 %v1474, %v1471
    %v1484 = vpack.c.b16 %v1475, %v1472
    %v1485 = vpack.c.b16 %v1479, %v1476
    %v1486 = vpack.c.b16 %v1480, %v1477
    %v1487 = vpack.c.b16 %v1481, %v1478
    %v1564 = vunpack.c.l.b16 %v1390
    %v1565 = vunpack.c.h.b16 %v1390
    %v1566 = vunpack.c.l.b16 %v1391
    %v1567 = vunpack.c.h.b16 %v1391
    %v1568 = vunpack.c.l.b16 %v1392
    %v1569 = vunpack.c.h.b16 %v1392
    %v1570 = vunpack.c.l.b16 %v1393
    %v1571 = vunpack.c.h.b16 %v1393
    %v1572 = vunpack.c.l.b16 %v1394
    %v1573 = vunpack.c.h.b16 %v1394
    %v1574 = vunpack.c.l.b16 %v1395
    %v1575 = vunpack.c.h.b16 %v1395
    %v1576 = vunpack.c.l.b16 %v1396
    %v1577 = vunpack.c.h.b16 %v1396
    %v1578 = vunpack.c.l.b16 %v1397
    %v1579 = vunpack.c.h.b16 %v1397
    %v1580 = vunpack.c.l.b16 %v1398
    %v1581 = vunpack.c.h.b16 %v1398
    %v1582 = vunpack.c.l.b16 %v1399
    %v1583 = vunpack.c.h.b16 %v1399
    %v1584 = vunpack.c.l.b16 %v1400
    %v1585 = vunpack.c.h.b16 %v1400
    %v1586 = vunpack.c.l.b16 %v1401
    %v1587 = vunpack.c.h.b16 %v1401
    %v1588 = vunpack.c.l.b16 %v1402
    %v1589 = vunpack.c.h.b16 %v1402
    %v1590 = vunpack.c.l.b16 %v1403
    %v1591 = vunpack.c.h.b16 %v1403
    %v1592 = vunpack.c.l.b16 %v1404
    %v1593 = vunpack.c.h.b16 %v1404
    %v1594 = vunpack.c.l.b16 %v1405
    %v1595 = vunpack.c.h.b16 %v1405
    %v1596 = vunpack.c.l.b16 %v1406
    %v1597 = vunpack.c.h.b16 %v1406
    %v1598 = vunpack.c.l.b16 %v1407
    %v1599 = vunpack.c.h.b16 %v1407
    %v1600 = vunpack.c.l.b16 %v1408
    %v1601 = vunpack.c.h.b16 %v1408
    %v1602 = vunpack.c.l.b16 %v1409
    %v1603 = vunpack.c.h.b16 %v1409
    %v1604 = vunpack.c.l.b16 %v1410
    %v1605 = vunpack.c.h.b16 %v1410
    %v1606 = vunpack.c.l.b16 %v1411
    %v1607 = vunpack.c.h.b16 %v1411
    %v1608 = vunpack.c.l.b16 %v1412
    %v1609 = vunpack.c.h.b16 %v1412
    %v1610 = vunpack.c.l.b16 %v1413
    %v1611 = vunpack.c.h.b16 %v1413
    %v1612 = vunpack.c.l.b16 %v1414
    %v1613 = vunpack.c.h.b16 %v1414
    %v1614 = vunpack.c.l.b16 %v1415
    %v1615 = vunpack.c.h.b16 %v1415
    %v1616 = vunpack.c.l.b16 %v1416
    %v1617 = vunpack.c.h.b16 %v1416
    %v1618 = vunpack.c.l.b16 %v1417
    %v1619 = vunpack.c.h.b16 %v1417
    %v1620 = vunpack.c.l.b16 %v1418
    %v1621 = vunpack.c.h.b16 %v1418
    %v1622 = vunpack.c.l.b16 %v1419
    %v1623 = vunpack.c.h.b16 %v1419
    %v1624 = vunpack.c.l.b16 %v1420
    %v1625 = vunpack.c.h.b16 %v1420
    %v1626 = vunpack.c.l.b16 %v1421
    %v1627 = vunpack.c.h.b16 %v1421
    %v1628 = vunpack.c.l.b16 %v1422
    %v1629 = vunpack.c.h.b16 %v1422
    %v1630 = vunpack.c.l.b16 %v1423
    %v1631 = vunpack.c.h.b16 %v1423
    %v1632 = vunpack.c.l.b16 %v1424
    %v1633 = vunpack.c.h.b16 %v1424
    %v1634 = vunpack.c.l.b16 %v1425
    %v1635 = vunpack.c.h.b16 %v1425
    %v1636 = vunpack.c.l.b16 %v1426
    %v1637 = vunpack.c.h.b16 %v1426
    %v1638 = vunpack.c.l.b16 %v1427
    %v1639 = vunpack.c.h.b16 %v1427
    %v1640 = vunpack.c.l.b16 %v1428
    %v1641 = vunpack.c.h.b16 %v1428
    %v1642 = vunpack.c.l.b16 %v1429
    %v1643 = vunpack.c.h.b16 %v1429
    %v1644 = vunpack.c.l.b16 %v1430
    %v1645 = vunpack.c.h.b16 %v1430
    %v1646 = vunpack.c.l.b16 %v1431
    %v1647 = vunpack.c.h.b16 %v1431
    %v1648 = vunpack.c.l.b16 %v1432
    %v1649 = vunpack.c.h.b16 %v1432
    %v1650 = vunpack.c.l.b16 %v1433
    %v1651 = vunpack.c.h.b16 %v1433
    %v1652 = vunpack.c.l.b16 %v1434
    %v1653 = vunpack.c.h.b16 %v1434
    %v1654 = vunpack.c.l.b16 %v1435
    %v1655 = vunpack.c.h.b16 %v1435
    %v1656 = vunpack.c.l.b16 %v1436
    %v1657 = vunpack.c.h.b16 %v1436
    %v1658 = vunpack.c.l.b16 %v1437
    %v1659 = vunpack.c.h.b16 %v1437
    %v1660 = vunpack.c.l.b16 %v1438
    %v1661 = vunpack.c.h.b16 %v1438
    %v1662 = vunpack.c.l.b16 %v1439
    %v1663 = vunpack.c.h.b16 %v1439
    %v1664 = vunpack.c.l.b16 %v1440
    %v1665 = vunpack.c.h.b16 %v1440
    %v1666 = vunpack.c.l.b16 %v1441
    %v1667 = vunpack.c.h.b16 %v1441
    %v1668 = vunpack.c.l.b16 %v1442
    %v1669 = vunpack.c.h.b16 %v1442
    %v1670 = vunpack.c.l.b16 %v1443
    %v1671 = vunpack.c.h.b16 %v1443
    %v1672 = vunpack.c.l.b16 %v1444
    %v1673 = vunpack.c.h.b16 %v1444
    %v1674 = vunpack.c.l.b16 %v1445
    %v1675 = vunpack.c.h.b16 %v1445
    %v1676 = vunpack.c.l.b16 %v1446
    %v1677 = vunpack.c.h.b16 %v1446
    %v1678 = vunpack.c.l.b16 %v1447
    %v1679 = vunpack.c.h.b16 %v1447
    %v1680 = vunpack.c.l.b16 %v1448
    %v1681 = vunpack.c.h.b16 %v1448
    %v1682 = vunpack.c.l.b16 %v1449
    %v1683 = vunpack.c.h.b16 %v1449
    %v1684 = vunpack.c.l.b16 %v1450
    %v1685 = vunpack.c.h.b16 %v1450
    %v1686 = vunpack.c.l.b16 %v1451
    %v1687 = vunpack.c.h.b16 %v1451
    %v1688 = vunpack.c.l.b16 %v1452
    %v1689 = vunpack.c.h.b16 %v1452
    %v1690 = vunpack.c.l.b16 %v1453
    %v1691 = vunpack.c.h.b16 %v1453
    %v1692 = vunpack.c.l.b16 %v1454
    %v1693 = vunpack.c.h.b16 %v1454
    %v1694 = vunpack.c.l.b16 %v1455
    %v1695 = vunpack.c.h.b16 %v1455
    %v1696 = vunpack.c.l.b16 %v1456
    %v1697 = vunpack.c.h.b16 %v1456
    %v1698 = vunpack.c.l.b16 %v1457
    %v1699 = vunpack.c.h.b16 %v1457
    %v1700 = vunpack.c.l.b16 %v1458
    %v1701 = vunpack.c.h.b16 %v1458
    %v1702 = vunpack.c.l.b16 %v1459
    %v1703 = vunpack.c.h.b16 %v1459
    %v1704 = vunpack.c.l.b16 %v1460
    %v1705 = vunpack.c.h.b16 %v1460
    %v1706 = vunpack.c.l.b16 %v1461
    %v1707 = vunpack.c.h.b16 %v1461
    %v1708 = vpack.c.b16 %v1568, %v1564
    %v1709 = vpack.c.b16 %v1569, %v1565
    %v1710 = vpack.c.b16 %v1570, %v1566
    %v1711 = vpack.c.b16 %v1571, %v1567
    %v1712 = vpack.c.b16 %v1576, %v1572
    %v1713 = vpack.c.b16 %v1577, %v1573
    %v1714 = vpack.c.b16 %v1578, %v1574
    %v1715 = vpack.c.b16 %v1579, %v1575
    %v1716 = vpack.c.b16 %v1584, %v1580
    %v1717 = vpack.c.b16 %v1585, %v1581
    %v1718 = vpack.c.b16 %v1586, %v1582
    %v1719 = vpack.c.b16 %v1587, %v1583
    %v1720 = vpack.c.b16 %v1592, %v1588
    %v1721 = vpack.c.b16 %v1593, %v1589
    %v1722 = vpack.c.b16 %v1594, %v1590
    %v1723 = vpack.c.b16 %v1595, %v1591
    %v1724 = vpack.c.b16 %v1600, %v1596
    %v1725 = vpack.c.b16 %v1601, %v1597
    %v1726 = vpack.c.b16 %v1602, %v1598
    %v1727 = vpack.c.b16 %v1603, %v1599
    %v1728 = vpack.c.b16 %v1608, %v1604
    %v1729 = vpack.c.b16 %v1609, %v1605
    %v1730 = vpack.c.b16 %v1610, %v1606
    %v1731 = vpack.c.b16 %v1611, %v1607
    %v1732 = vpack.c.b16 %v1616, %v1612
    %v1733 = vpack.c.b16 %v1617, %v1613
    %v1734 = vpack.c.b16 %v1618, %v1614
    %v1735 = vpack.c.b16 %v1619, %v1615
    %v1736 = vpack.c.b16 %v1624, %v1620
    %v1737 = vpack.c.b16 %v1625, %v1621
    %v1738 = vpack.c.b16 %v1626, %v1622
    %v1739 = vpack.c.b16 %v1627, %v1623
    %v1740 = vpack.c.b16 %v1632, %v1628
    %v1741 = vpack.c.b16 %v1633, %v1629
    %v1742 = vpack.c.b16 %v1634, %v1630
    %v1743 = vpack.c.b16 %v1635, %v1631
    %v1744 = vpack.c.b16 %v1640, %v1636
    %v1745 = vpack.c.b16 %v1641, %v1637
    %v1746 = vpack.c.b16 %v1642, %v1638
    %v1747 = vpack.c.b16 %v1643, %v1639
    %v1748 = vpack.c.b16 %v1648, %v1644
    %v1749 = vpack.c.b16 %v1649, %v1645
    %v1750 = vpack.c.b16 %v1650, %v1646
    %v1751 = vpack.c.b16 %v1651, %v1647
    %v1752 = vpack.c.b16 %v1656, %v1652
    %v1753 = vpack.c.b16 %v1657, %v1653
    %v1754 = vpack.c.b16 %v1658, %v1654
    %v1755 = vpack.c.b16 %v1659, %v1655
    %v1756 = vpack.c.b16 %v1664, %v1660
    %v1757 = vpack.c.b16 %v1665, %v1661
    %v1758 = vpack.c.b16 %v1666, %v1662
    %v1759 = vpack.c.b16 %v1667, %v1663
    %v1760 = vpack.c.b16 %v1672, %v1668
    %v1761 = vpack.c.b16 %v1673, %v1669
    %v1762 = vpack.c.b16 %v1674, %v1670
    %v1763 = vpack.c.b16 %v1675, %v1671
    %v1764 = vpack.c.b16 %v1680, %v1676
    %v1765 = vpack.c.b16 %v1681, %v1677
    %v1766 = vpack.c.b16 %v1682, %v1678
    %v1767 = vpack.c.b16 %v1683, %v1679
    %v1768 = vpack.c.b16 %v1688, %v1684
    %v1769 = vpack.c.b16 %v1689, %v1685
    %v1770 = vpack.c.b16 %v1690, %v1686
    %v1771 = vpack.c.b16 %v1691, %v1687
    %v1772 = vpack.c.b16 %v1696, %v1692
    %v1773 = vpack.c.b16 %v1697, %v1693
    %v1774 = vpack.c.b16 %v1698, %v1694
    %v1775 = vpack.c.b16 %v1699, %v1695
    %v1776 = vpack.c.b16 %v1704, %v1700
    %v1777 = vpack.c.b16 %v1705, %v1701
    %v1778 = vpack.c.b16 %v1706, %v1702
    %v1779 = vpack.c.b16 %v1707, %v1703
    %vm1852 = vcmask 261120
    %v1854 = vsel %vm1852, %v1484, 0
    %v1857 = vsel %vm1852, %v1487, 0
    %1859 = vmatpush.bf16.msra.mxu0 %v1736
    %1860 = vmatpush.bf16.msra.mxu0 %v1732
    %1861 = vmatpush.bf16.msra.mxu0 %v1728
    %1862 = vmatpush.bf16.msra.mxu0 %v1724
    %1863 = vmatpush.bf16.msra.mxu0 %v1720
    %1864 = vmatpush.bf16.msra.mxu0 %v1716
    %1865 = vmatpush.bf16.msra.mxu0 %v1712
    %1866 = vmatpush.bf16.msra.mxu0 %v1708
    %1867 = vmatmul.bf16.gmra.mxu0 %v1482
    %v1868 = vpop.f32.mrf.mxu0
    %v1869 = vadd.f32 0.0, %v1868
    %v1870 = vpop.f32.mrf.mxu0
    %v1871 = vadd.f32 0.0, %v1870
    %1872 = vmatmul.bf16.gmra.mxu0 %v1485
    %v1873 = vpop.f32.mrf.mxu0
    %v1874 = vadd.f32 0.0, %v1873
    %v1875 = vpop.f32.mrf.mxu0
    %v1876 = vadd.f32 0.0, %v1875
    %1877 = vdwg.mxu0
    %1878 = vmatpush.bf16.msra.mxu0 %v1768
    %1879 = vmatpush.bf16.msra.mxu0 %v1764
    %1880 = vmatpush.bf16.msra.mxu0 %v1760
    %1881 = vmatpush.bf16.msra.mxu0 %v1756
    %1882 = vmatpush.bf16.msra.mxu0 %v1752
    %1883 = vmatpush.bf16.msra.mxu0 %v1748
    %1884 = vmatpush.bf16.msra.mxu0 %v1744
    %1885 = vmatpush.bf16.msra.mxu0 %v1740
    %1886 = vmatmul.bf16.gmra.mxu0 %v1483
    %v1887 = vpop.f32.mrf.mxu0
    %v1888 = vadd.f32 %v1869, %v1887
    %v1889 = vpop.f32.mrf.mxu0
    %v1890 = vadd.f32 %v1871, %v1889
    %1891 = vmatmul.bf16.gmra.mxu0 %v1486
    %v1892 = vpop.f32.mrf.mxu0
    %v1893 = vadd.f32 %v1874, %v1892
    %v1894 = vpop.f32.mrf.mxu0
    %v1895 = vadd.f32 %v1876, %v1894
    %1896 = vdwg.mxu0
    %1897 = vmatpush.bf16.msra.mxu0 0
    %1898 = vmatpush.bf16.msra.mxu0 0
    %1899 = vmatpush.bf16.msra.mxu0 0
    %1900 = vmatpush.bf16.msra.mxu0 0
    %1901 = vmatpush.bf16.msra.mxu0 0
    %1902 = vmatpush.bf16.msra.mxu0 0
    %1903 = vmatpush.bf16.msra.mxu0 %v1776
    %1904 = vmatpush.bf16.msra.mxu0 %v1772
    %1905 = vmatmul.bf16.gmra.mxu0 %v1854
    %v1906 = vpop.f32.mrf.mxu0
    %v1907 = vadd.f32 %v1888, %v1906
    %v1908 = vpop.f32.mrf.mxu0
    %v1909 = vadd.f32 %v1890, %v1908
    %1910 = vmatmul.bf16.gmra.mxu0 %v1857
    %v1911 = vpop.f32.mrf.mxu0
    %v1912 = vadd.f32 %v1893, %v1911
    %v1913 = vpop.f32.mrf.mxu0
    %v1914 = vadd.f32 %v1895, %v1913
    %1915 = vdwg.mxu0
    %1916 = vmatpush.bf16.msra.mxu0 %v1737
    %1917 = vmatpush.bf16.msra.mxu0 %v1733
    %1918 = vmatpush.bf16.msra.mxu0 %v1729
    %1919 = vmatpush.bf16.msra.mxu0 %v1725
    %1920 = vmatpush.bf16.msra.mxu0 %v1721
    %1921 = vmatpush.bf16.msra.mxu0 %v1717
    %1922 = vmatpush.bf16.msra.mxu0 %v1713
    %1923 = vmatpush.bf16.msra.mxu0 %v1709
    %1924 = vmatmul.bf16.gmra.mxu0 %v1482
    %v1925 = vpop.f32.mrf.mxu0
    %v1926 = vadd.f32 0.0, %v1925
    %v1927 = vpop.f32.mrf.mxu0
    %v1928 = vadd.f32 0.0, %v1927
    %1929 = vmatmul.bf16.gmra.mxu0 %v1485
    %v1930 = vpop.f32.mrf.mxu0
    %v1931 = vadd.f32 0.0, %v1930
    %v1932 = vpop.f32.mrf.mxu0
    %v1933 = vadd.f32 0.0, %v1932
    %1934 = vdwg.mxu0
    %1935 = vmatpush.bf16.msra.mxu0 %v1769
    %1936 = vmatpush.bf16.msra.mxu0 %v1765
    %1937 = vmatpush.bf16.msra.mxu0 %v1761
    %1938 = vmatpush.bf16.msra.mxu0 %v1757
    %1939 = vmatpush.bf16.msra.mxu0 %v1753
    %1940 = vmatpush.bf16.msra.mxu0 %v1749
    %1941 = vmatpush.bf16.msra.mxu0 %v1745
    %1942 = vmatpush.bf16.msra.mxu0 %v1741
    %1943 = vmatmul.bf16.gmra.mxu0 %v1483
    %v1944 = vpop.f32.mrf.mxu0
    %v1945 = vadd.f32 %v1926, %v1944
    %v1946 = vpop.f32.mrf.mxu0
    %v1947 = vadd.f32 %v1928, %v1946
    %1948 = vmatmul.bf16.gmra.mxu0 %v1486
    %v1949 = vpop.f32.mrf.mxu0
    %v1950 = vadd.f32 %v1931, %v1949
    %v1951 = vpop.f32.mrf.mxu0
    %v1952 = vadd.f32 %v1933, %v1951
    %1953 = vdwg.mxu0
    %1954 = vmatpush.bf16.msra.mxu0 0
    %1955 = vmatpush.bf16.msra.mxu0 0
    %1956 = vmatpush.bf16.msra.mxu0 0
    %1957 = vmatpush.bf16.msra.mxu0 0
    %1958 = vmatpush.bf16.msra.mxu0 0
    %1959 = vmatpush.bf16.msra.mxu0 0
    %1960 = vmatpush.bf16.msra.mxu0 %v1777
    %1961 = vmatpush.bf16.msra.mxu0 %v1773
    %1962 = vmatmul.bf16.gmra.mxu0 %v1854
    %v1963 = vpop.f32.mrf.mxu0
    %v1964 = vadd.f32 %v1945, %v1963
    %v1965 = vpop.f32.mrf.mxu0
    %v1966 = vadd.f32 %v1947, %v1965
    %1967 = vmatmul.bf16.gmra.mxu0 %v1857
    %v1968 = vpop.f32.mrf.mxu0
    %v1969 = vadd.f32 %v1950, %v1968
    %v1970 = vpop.f32.mrf.mxu0
    %v1971 = vadd.f32 %v1952, %v1970
    %1972 = vdwg.mxu0
    %1973 = vmatpush.bf16.msra.mxu0 %v1738
    %1974 = vmatpush.bf16.msra.mxu0 %v1734
    %1975 = vmatpush.bf16.msra.mxu0 %v1730
    %1976 = vmatpush.bf16.msra.mxu0 %v1726
    %1977 = vmatpush.bf16.msra.mxu0 %v1722
    %1978 = vmatpush.bf16.msra.mxu0 %v1718
    %1979 = vmatpush.bf16.msra.mxu0 %v1714
    %1980 = vmatpush.bf16.msra.mxu0 %v1710
    %1981 = vmatmul.bf16.gmra.mxu0 %v1482
    %v1982 = vpop.f32.mrf.mxu0
    %v1983 = vadd.f32 0.0, %v1982
    %v1984 = vpop.f32.mrf.mxu0
    %v1985 = vadd.f32 0.0, %v1984
    %1986 = vmatmul.bf16.gmra.mxu0 %v1485
    %v1987 = vpop.f32.mrf.mxu0
    %v1988 = vadd.f32 0.0, %v1987
    %v1989 = vpop.f32.mrf.mxu0
    %v1990 = vadd.f32 0.0, %v1989
    %1991 = vdwg.mxu0
    %1992 = vmatpush.bf16.msra.mxu0 %v1770
    %1993 = vmatpush.bf16.msra.mxu0 %v1766
    %1994 = vmatpush.bf16.msra.mxu0 %v1762
    %1995 = vmatpush.bf16.msra.mxu0 %v1758
    %1996 = vmatpush.bf16.msra.mxu0 %v1754
    %1997 = vmatpush.bf16.msra.mxu0 %v1750
    %1998 = vmatpush.bf16.msra.mxu0 %v1746
    %1999 = vmatpush.bf16.msra.mxu0 %v1742
    %2000 = vmatmul.bf16.gmra.mxu0 %v1483
    %v2001 = vpop.f32.mrf.mxu0
    %v2002 = vadd.f32 %v1983, %v2001
    %v2003 = vpop.f32.mrf.mxu0
    %v2004 = vadd.f32 %v1985, %v2003
    %2005 = vmatmul.bf16.gmra.mxu0 %v1486
    %v2006 = vpop.f32.mrf.mxu0
    %v2007 = vadd.f32 %v1988, %v2006
    %v2008 = vpop.f32.mrf.mxu0
    %v2009 = vadd.f32 %v1990, %v2008
    %2010 = vdwg.mxu0
    %2011 = vmatpush.bf16.msra.mxu0 0
    %2012 = vmatpush.bf16.msra.mxu0 0
    %2013 = vmatpush.bf16.msra.mxu0 0
    %2014 = vmatpush.bf16.msra.mxu0 0
    %2015 = vmatpush.bf16.msra.mxu0 0
    %2016 = vmatpush.bf16.msra.mxu0 0
    %2017 = vmatpush.bf16.msra.mxu0 %v1778
    %2018 = vmatpush.bf16.msra.mxu0 %v1774
    %2019 = vmatmul.bf16.gmra.mxu0 %v1854
    %v2020 = vpop.f32.mrf.mxu0
    %v2021 = vadd.f32 %v2002, %v2020
    %v2022 = vpop.f32.mrf.mxu0
    %v2023 = vadd.f32 %v2004, %v2022
    %2024 = vmatmul.bf16.gmra.mxu0 %v1857
    %v2025 = vpop.f32.mrf.mxu0
    %v2026 = vadd.f32 %v2007, %v2025
    %v2027 = vpop.f32.mrf.mxu0
    %v2028 = vadd.f32 %v2009, %v2027
    %2029 = vdwg.mxu0
    %2030 = vmatpush.bf16.msra.mxu0 %v1739
    %2031 = vmatpush.bf16.msra.mxu0 %v1735
    %2032 = vmatpush.bf16.msra.mxu0 %v1731
    %2033 = vmatpush.bf16.msra.mxu0 %v1727
    %2034 = vmatpush.bf16.msra.mxu0 %v1723
    %2035 = vmatpush.bf16.msra.mxu0 %v1719
    %2036 = vmatpush.bf16.msra.mxu0 %v1715
    %2037 = vmatpush.bf16.msra.mxu0 %v1711
    %2038 = vmatmul.bf16.gmra.mxu0 %v1482
    %v2039 = vpop.f32.mrf.mxu0
    %v2040 = vadd.f32 0.0, %v2039
    %v2041 = vpop.f32.mrf.mxu0
    %v2042 = vadd.f32 0.0, %v2041
    %2043 = vmatmul.bf16.gmra.mxu0 %v1485
    %v2044 = vpop.f32.mrf.mxu0
    %v2045 = vadd.f32 0.0, %v2044
    %v2046 = vpop.f32.mrf.mxu0
    %v2047 = vadd.f32 0.0, %v2046
    %2048 = vdwg.mxu0
    %2049 = vmatpush.bf16.msra.mxu0 %v1771
    %2050 = vmatpush.bf16.msra.mxu0 %v1767
    %2051 = vmatpush.bf16.msra.mxu0 %v1763
    %2052 = vmatpush.bf16.msra.mxu0 %v1759
    %2053 = vmatpush.bf16.msra.mxu0 %v1755
    %2054 = vmatpush.bf16.msra.mxu0 %v1751
    %2055 = vmatpush.bf16.msra.mxu0 %v1747
    %2056 = vmatpush.bf16.msra.mxu0 %v1743
    %2057 = vmatmul.bf16.gmra.mxu0 %v1483
    %v2058 = vpop.f32.mrf.mxu0
    %v2059 = vadd.f32 %v2040, %v2058
    %v2060 = vpop.f32.mrf.mxu0
    %v2061 = vadd.f32 %v2042, %v2060
    %2062 = vmatmul.bf16.gmra.mxu0 %v1486
    %v2063 = vpop.f32.mrf.mxu0
    %v2064 = vadd.f32 %v2045, %v2063
    %v2065 = vpop.f32.mrf.mxu0
    %v2066 = vadd.f32 %v2047, %v2065
    %2067 = vdwg.mxu0
    %2068 = vmatpush.bf16.msra.mxu0 0
    %2069 = vmatpush.bf16.msra.mxu0 0
    %2070 = vmatpush.bf16.msra.mxu0 0
    %2071 = vmatpush.bf16.msra.mxu0 0
    %2072 = vmatpush.bf16.msra.mxu0 0
    %2073 = vmatpush.bf16.msra.mxu0 0
    %2074 = vmatpush.bf16.msra.mxu0 %v1779
    %2075 = vmatpush.bf16.msra.mxu0 %v1775
    %2076 = vmatmul.bf16.gmra.mxu0 %v1854
    %v2077 = vpop.f32.mrf.mxu0
    %v2078 = vadd.f32 %v2059, %v2077
    %v2079 = vpop.f32.mrf.mxu0
    %v2080 = vadd.f32 %v2061, %v2079
    %2081 = vmatmul.bf16.gmra.mxu0 %v1857
    %v2082 = vpop.f32.mrf.mxu0
    %v2083 = vadd.f32 %v2064, %v2082
    %v2084 = vpop.f32.mrf.mxu0
    %v2085 = vadd.f32 %v2066, %v2084
    %2086 = vdwg.mxu0
    %v2087 = vld [vmem:[%s1] sm:$0xff]
    %v2088 = vld [vmem:[%s1 + $0x8] sm:$0xff]
    %v2089 = vld [vmem:[%s1 + $0x10] sm:$0xff]
    %v2090 = vld [vmem:[%s1 + $0x18] sm:$0xff]
    %2092 = vset.pattern.permute.xlu0 0
    %2093 = vperm.xlu0 %2092, %v2087
    %v2094 = vpop.permute.xlu0 %2093
    %2097 = vset.pattern.permute.xlu0 0
    %2098 = vperm.xlu0 %2097, %v2088
    %v2099 = vpop.permute.xlu0 %2098
    %2102 = vset.pattern.permute.xlu0 0
    %2103 = vperm.xlu0 %2102, %v2089
    %v2104 = vpop.permute.xlu0 %2103
    %2107 = vset.pattern.permute.xlu0 0
    %2108 = vperm.xlu0 %2107, %v2090
    %v2109 = vpop.permute.xlu0 %2108
    %v2111 = vadd.f32 %v1907, %v2094
    %v2112 = vadd.f32 %v1964, %v2094
    %v2113 = vadd.f32 %v1909, %v2099
    %v2114 = vadd.f32 %v1966, %v2099
    %v2115 = vadd.f32 %v1912, %v2104
    %v2116 = vadd.f32 %v1969, %v2104
    %v2117 = vadd.f32 %v1914, %v2109
    %v2118 = vadd.f32 %v1971, %v2109
    %v2119 = vadd.f32 %v2111, %v2112
    %2120 = vadd.xlane.f32.xlu0 %v2119
    %v2121 = vpop.xlane.xlu0 %2120
    %v2122 = vadd.f32 %v2113, %v2114
    %2123 = vadd.xlane.f32.xlu0 %v2122
    %v2124 = vpop.xlane.xlu0 %2123
    %v2125 = vadd.f32 %v2115, %v2116
    %2126 = vadd.xlane.f32.xlu0 %v2125
    %v2127 = vpop.xlane.xlu0 %2126
    %v2128 = vadd.f32 %v2117, %v2118
    %2129 = vadd.xlane.f32.xlu0 %v2128
    %v2130 = vpop.xlane.xlu0 %2129
    %v2131 = vmul.f32 %v2111, %v2111
    %v2132 = vmul.f32 %v2112, %v2112
    %v2133 = vmul.f32 %v2113, %v2113
    %v2134 = vmul.f32 %v2114, %v2114
    %v2135 = vmul.f32 %v2115, %v2115
    %v2136 = vmul.f32 %v2116, %v2116
    %v2137 = vmul.f32 %v2117, %v2117
    %v2138 = vmul.f32 %v2118, %v2118
    %v2139 = vadd.f32 %v2131, %v2132
    %2140 = vadd.xlane.f32.xlu0 %v2139
    %v2141 = vpop.xlane.xlu0 %2140
    %v2142 = vadd.f32 %v2133, %v2134
    %2143 = vadd.xlane.f32.xlu0 %v2142
    %v2144 = vpop.xlane.xlu0 %2143
    %v2145 = vadd.f32 %v2135, %v2136
    %2146 = vadd.xlane.f32.xlu0 %v2145
    %v2147 = vpop.xlane.xlu0 %2146
    %v2148 = vadd.f32 %v2137, %v2138
    %2149 = vadd.xlane.f32.xlu0 %v2148
    %v2150 = vpop.xlane.xlu0 %2149
    %v2151 = vmul.f32 %v2121, 0.00390625
    %v2152 = vmul.f32 %v2124, 0.00390625
    %v2153 = vmul.f32 %v2127, 0.00390625
    %v2154 = vmul.f32 %v2130, 0.00390625
    %v2155 = vmul.f32 %v2141, 0.00390625
    %v2156 = vmul.f32 %v2144, 0.00390625
    %v2157 = vmul.f32 %v2147, 0.00390625
    %v2158 = vmul.f32 %v2150, 0.00390625
    %v2159 = vmul.f32 %v2151, %v2151
    %v2160 = vmul.f32 %v2152, %v2152
    %v2161 = vmul.f32 %v2153, %v2153
    %v2162 = vmul.f32 %v2154, %v2154
    %v2163 = vsub.f32 %v2155, %v2159
    %v2164 = vsub.f32 %v2156, %v2160
    %v2165 = vsub.f32 %v2157, %v2161
    %v2166 = vsub.f32 %v2158, %v2162
    %v2167 = vsub.f32 %v2111, %v2151
    %v2168 = vsub.f32 %v2112, %v2151
    %v2169 = vsub.f32 %v2113, %v2152
    %v2170 = vsub.f32 %v2114, %v2152
    %v2171 = vsub.f32 %v2115, %v2153
    %v2172 = vsub.f32 %v2116, %v2153
    %v2173 = vsub.f32 %v2117, %v2154
    %v2174 = vsub.f32 %v2118, %v2154
    %v2175 = vadd.f32 %v2163, 1e-05
    %v2176 = vadd.f32 %v2164, 1e-05
    %v2177 = vadd.f32 %v2165, 1e-05
    %v2178 = vadd.f32 %v2166, 1e-05
    %v2179 = vrsqrt.pop %v2175
    %v2180 = vmul.f32 %v2179, %v2175
    %v2181 = vmul.f32 %v2180, %v2179
    %v2182 = vmul.f32 0.5, %v2181
    %v2183 = vsub.f32 1.5, %v2182
    %v2184 = vmul.f32 %v2179, %v2183
    %vm2185 = vweird.f32 %v2175
    %vm2186 = vweird.f32 %v2179
    %vm2187 = vmor %vm2185, %vm2186
    %v2188 = vsel %vm2187, %v2179, %v2184
    %v2189 = vrsqrt.pop %v2176
    %v2190 = vmul.f32 %v2189, %v2176
    %v2191 = vmul.f32 %v2190, %v2189
    %v2192 = vmul.f32 0.5, %v2191
    %v2193 = vsub.f32 1.5, %v2192
    %v2194 = vmul.f32 %v2189, %v2193
    %vm2195 = vweird.f32 %v2176
    %vm2196 = vweird.f32 %v2189
    %vm2197 = vmor %vm2195, %vm2196
    %v2198 = vsel %vm2197, %v2189, %v2194
    %v2199 = vrsqrt.pop %v2177
    %v2200 = vmul.f32 %v2199, %v2177
    %v2201 = vmul.f32 %v2200, %v2199
    %v2202 = vmul.f32 0.5, %v2201
    %v2203 = vsub.f32 1.5, %v2202
    %v2204 = vmul.f32 %v2199, %v2203
    %vm2205 = vweird.f32 %v2177
    %vm2206 = vweird.f32 %v2199
    %vm2207 = vmor %vm2205, %vm2206
    %v2208 = vsel %vm2207, %v2199, %v2204
    %v2209 = vrsqrt.pop %v2178
    %v2210 = vmul.f32 %v2209, %v2178
    %v2211 = vmul.f32 %v2210, %v2209
    %v2212 = vmul.f32 0.5, %v2211
    %v2213 = vsub.f32 1.5, %v2212
    %v2214 = vmul.f32 %v2209, %v2213
    %vm2215 = vweird.f32 %v2178
    %vm2216 = vweird.f32 %v2209
    %vm2217 = vmor %vm2215, %vm2216
    %v2218 = vsel %vm2217, %v2209, %v2214
    %v2219 = vmul.f32 %v2167, %v2188
    %v2220 = vmul.f32 %v2168, %v2188
    %v2221 = vmul.f32 %v2169, %v2198
    %v2222 = vmul.f32 %v2170, %v2198
    %v2223 = vmul.f32 %v2171, %v2208
    %v2224 = vmul.f32 %v2172, %v2208
    %v2225 = vmul.f32 %v2173, %v2218
    %v2226 = vmul.f32 %v2174, %v2218
    %s2227 = scalar_lea.vmem %s1, 32
    %v2228 = vld [vmem:[%s2227] sm:$0xff]
    %v2229 = vld [vmem:[%s2227 + $0x8] sm:$0xff]
    %v2230 = vld [vmem:[%s2227 + $0x10] sm:$0xff]
    %v2231 = vld [vmem:[%s2227 + $0x18] sm:$0xff]
    %2233 = vset.pattern.permute.xlu0 0
    %2234 = vperm.xlu0 %2233, %v2228
    %v2235 = vpop.permute.xlu0 %2234
    %2238 = vset.pattern.permute.xlu0 0
    %2239 = vperm.xlu0 %2238, %v2229
    %v2240 = vpop.permute.xlu0 %2239
    %2243 = vset.pattern.permute.xlu0 0
    %2244 = vperm.xlu0 %2243, %v2230
    %v2245 = vpop.permute.xlu0 %2244
    %2248 = vset.pattern.permute.xlu0 0
    %2249 = vperm.xlu0 %2248, %v2231
    %v2250 = vpop.permute.xlu0 %2249
    %v2252 = vadd.f32 %v2021, %v2235
    %v2253 = vadd.f32 %v2078, %v2235
    %v2254 = vadd.f32 %v2023, %v2240
    %v2255 = vadd.f32 %v2080, %v2240
    %v2256 = vadd.f32 %v2026, %v2245
    %v2257 = vadd.f32 %v2083, %v2245
    %v2258 = vadd.f32 %v2028, %v2250
    %v2259 = vadd.f32 %v2085, %v2250
    %v2260 = vadd.f32 %v2252, %v2253
    %2261 = vadd.xlane.f32.xlu0 %v2260
    %v2262 = vpop.xlane.xlu0 %2261
    %v2263 = vadd.f32 %v2254, %v2255
    %2264 = vadd.xlane.f32.xlu0 %v2263
    %v2265 = vpop.xlane.xlu0 %2264
    %v2266 = vadd.f32 %v2256, %v2257
    %2267 = vadd.xlane.f32.xlu0 %v2266
    %v2268 = vpop.xlane.xlu0 %2267
    %v2269 = vadd.f32 %v2258, %v2259
    %2270 = vadd.xlane.f32.xlu0 %v2269
    %v2271 = vpop.xlane.xlu0 %2270
    %v2272 = vmul.f32 %v2252, %v2252
    %v2273 = vmul.f32 %v2253, %v2253
    %v2274 = vmul.f32 %v2254, %v2254
    %v2275 = vmul.f32 %v2255, %v2255
    %v2276 = vmul.f32 %v2256, %v2256
    %v2277 = vmul.f32 %v2257, %v2257
    %v2278 = vmul.f32 %v2258, %v2258
    %v2279 = vmul.f32 %v2259, %v2259
    %v2280 = vadd.f32 %v2272, %v2273
    %2281 = vadd.xlane.f32.xlu0 %v2280
    %v2282 = vpop.xlane.xlu0 %2281
    %v2283 = vadd.f32 %v2274, %v2275
    %2284 = vadd.xlane.f32.xlu0 %v2283
    %v2285 = vpop.xlane.xlu0 %2284
    %v2286 = vadd.f32 %v2276, %v2277
    %2287 = vadd.xlane.f32.xlu0 %v2286
    %v2288 = vpop.xlane.xlu0 %2287
    %v2289 = vadd.f32 %v2278, %v2279
    %2290 = vadd.xlane.f32.xlu0 %v2289
    %v2291 = vpop.xlane.xlu0 %2290
    %v2292 = vmul.f32 %v2262, 0.00390625
    %v2293 = vmul.f32 %v2265, 0.00390625
    %v2294 = vmul.f32 %v2268, 0.00390625
    %v2295 = vmul.f32 %v2271, 0.00390625
    %v2296 = vmul.f32 %v2282, 0.00390625
    %v2297 = vmul.f32 %v2285, 0.00390625
    %v2298 = vmul.f32 %v2288, 0.00390625
    %v2299 = vmul.f32 %v2291, 0.00390625
    %v2300 = vmul.f32 %v2292, %v2292
    %v2301 = vmul.f32 %v2293, %v2293
    %v2302 = vmul.f32 %v2294, %v2294
    %v2303 = vmul.f32 %v2295, %v2295
    %v2304 = vsub.f32 %v2296, %v2300
    %v2305 = vsub.f32 %v2297, %v2301
    %v2306 = vsub.f32 %v2298, %v2302
    %v2307 = vsub.f32 %v2299, %v2303
    %v2308 = vsub.f32 %v2252, %v2292
    %v2309 = vsub.f32 %v2253, %v2292
    %v2310 = vsub.f32 %v2254, %v2293
    %v2311 = vsub.f32 %v2255, %v2293
    %v2312 = vsub.f32 %v2256, %v2294
    %v2313 = vsub.f32 %v2257, %v2294
    %v2314 = vsub.f32 %v2258, %v2295
    %v2315 = vsub.f32 %v2259, %v2295
    %v2316 = vadd.f32 %v2304, 1e-05
    %v2317 = vadd.f32 %v2305, 1e-05
    %v2318 = vadd.f32 %v2306, 1e-05
    %v2319 = vadd.f32 %v2307, 1e-05
    %v2320 = vrsqrt.pop %v2316
    %v2321 = vmul.f32 %v2320, %v2316
    %v2322 = vmul.f32 %v2321, %v2320
    %v2323 = vmul.f32 0.5, %v2322
    %v2324 = vsub.f32 1.5, %v2323
    %v2325 = vmul.f32 %v2320, %v2324
    %vm2326 = vweird.f32 %v2316
    %vm2327 = vweird.f32 %v2320
    %vm2328 = vmor %vm2326, %vm2327
    %v2329 = vsel %vm2328, %v2320, %v2325
    %v2330 = vrsqrt.pop %v2317
    %v2331 = vmul.f32 %v2330, %v2317
    %v2332 = vmul.f32 %v2331, %v2330
    %v2333 = vmul.f32 0.5, %v2332
    %v2334 = vsub.f32 1.5, %v2333
    %v2335 = vmul.f32 %v2330, %v2334
    %vm2336 = vweird.f32 %v2317
    %vm2337 = vweird.f32 %v2330
    %vm2338 = vmor %vm2336, %vm2337
    %v2339 = vsel %vm2338, %v2330, %v2335
    %v2340 = vrsqrt.pop %v2318
    %v2341 = vmul.f32 %v2340, %v2318
    %v2342 = vmul.f32 %v2341, %v2340
    %v2343 = vmul.f32 0.5, %v2342
    %v2344 = vsub.f32 1.5, %v2343
    %v2345 = vmul.f32 %v2340, %v2344
    %vm2346 = vweird.f32 %v2318
    %vm2347 = vweird.f32 %v2340
    %vm2348 = vmor %vm2346, %vm2347
    %v2349 = vsel %vm2348, %v2340, %v2345
    %v2350 = vrsqrt.pop %v2319
    %v2351 = vmul.f32 %v2350, %v2319
    %v2352 = vmul.f32 %v2351, %v2350
    %v2353 = vmul.f32 0.5, %v2352
    %v2354 = vsub.f32 1.5, %v2353
    %v2355 = vmul.f32 %v2350, %v2354
    %vm2356 = vweird.f32 %v2319
    %vm2357 = vweird.f32 %v2350
    %vm2358 = vmor %vm2356, %vm2357
    %v2359 = vsel %vm2358, %v2350, %v2355
    %v2360 = vmul.f32 %v2308, %v2329
    %v2361 = vmul.f32 %v2309, %v2329
    %v2362 = vmul.f32 %v2310, %v2339
    %v2363 = vmul.f32 %v2311, %v2339
    %v2364 = vmul.f32 %v2312, %v2349
    %v2365 = vmul.f32 %v2313, %v2349
    %v2366 = vmul.f32 %v2314, %v2359
    %v2367 = vmul.f32 %v2315, %v2359
    %v2368 = vld [vmem:[%s6] sm:$0xff]
    %v2369 = vld [vmem:[%s6 + $0x8] sm:$0xff]
    %v2370 = vld [vmem:[%s6 + $0x10] sm:$0xff]
    %v2371 = vld [vmem:[%s6 + $0x18] sm:$0xff]
    %2373 = vset.pattern.permute.xlu0 0
    %2374 = vperm.xlu0 %2373, %v2368
    %v2375 = vpop.permute.xlu0 %2374
    %2378 = vset.pattern.permute.xlu0 0
    %2379 = vperm.xlu0 %2378, %v2369
    %v2380 = vpop.permute.xlu0 %2379
    %2383 = vset.pattern.permute.xlu0 0
    %2384 = vperm.xlu0 %2383, %v2370
    %v2385 = vpop.permute.xlu0 %2384
    %2388 = vset.pattern.permute.xlu0 0
    %2389 = vperm.xlu0 %2388, %v2371
    %v2390 = vpop.permute.xlu0 %2389
    %v2392 = vmul.f32 %v2219, %v2375
    %v2393 = vmul.f32 %v2220, %v2375
    %v2394 = vmul.f32 %v2360, %v2375
    %v2395 = vmul.f32 %v2361, %v2375
    %v2396 = vmul.f32 %v2221, %v2380
    %v2397 = vmul.f32 %v2222, %v2380
    %v2398 = vmul.f32 %v2362, %v2380
    %v2399 = vmul.f32 %v2363, %v2380
    %v2400 = vmul.f32 %v2223, %v2385
    %v2401 = vmul.f32 %v2224, %v2385
    %v2402 = vmul.f32 %v2364, %v2385
    %v2403 = vmul.f32 %v2365, %v2385
    %v2404 = vmul.f32 %v2225, %v2390
    %v2405 = vmul.f32 %v2226, %v2390
    %v2406 = vmul.f32 %v2366, %v2390
    %v2407 = vmul.f32 %v2367, %v2390
    %v2408 = vld [vmem:[%s7] sm:$0xff]
    %v2409 = vld [vmem:[%s7 + $0x8] sm:$0xff]
    %v2410 = vld [vmem:[%s7 + $0x10] sm:$0xff]
    %v2411 = vld [vmem:[%s7 + $0x18] sm:$0xff]
    %2413 = vset.pattern.permute.xlu0 0
    %2414 = vperm.xlu0 %2413, %v2408
    %v2415 = vpop.permute.xlu0 %2414
    %2418 = vset.pattern.permute.xlu0 0
    %2419 = vperm.xlu0 %2418, %v2409
    %v2420 = vpop.permute.xlu0 %2419
    %2423 = vset.pattern.permute.xlu0 0
    %2424 = vperm.xlu0 %2423, %v2410
    %v2425 = vpop.permute.xlu0 %2424
    %2428 = vset.pattern.permute.xlu0 0
    %2429 = vperm.xlu0 %2428, %v2411
    %v2430 = vpop.permute.xlu0 %2429
    %v2432 = vadd.f32 %v2392, %v2415
    %v2433 = vadd.f32 %v2393, %v2415
    %v2434 = vadd.f32 %v2394, %v2415
    %v2435 = vadd.f32 %v2395, %v2415
    %v2436 = vadd.f32 %v2396, %v2420
    %v2437 = vadd.f32 %v2397, %v2420
    %v2438 = vadd.f32 %v2398, %v2420
    %v2439 = vadd.f32 %v2399, %v2420
    %v2440 = vadd.f32 %v2400, %v2425
    %v2441 = vadd.f32 %v2401, %v2425
    %v2442 = vadd.f32 %v2402, %v2425
    %v2443 = vadd.f32 %v2403, %v2425
    %v2444 = vadd.f32 %v2404, %v2430
    %v2445 = vadd.f32 %v2405, %v2430
    %v2446 = vadd.f32 %v2406, %v2430
    %v2447 = vadd.f32 %v2407, %v2430
    %v2448 = vxor.u32 %v2432, 2147483648
    %v2449 = vxor.u32 %v2433, 2147483648
    %v2450 = vxor.u32 %v2434, 2147483648
    %v2451 = vxor.u32 %v2435, 2147483648
    %v2452 = vxor.u32 %v2436, 2147483648
    %v2453 = vxor.u32 %v2437, 2147483648
    %v2454 = vxor.u32 %v2438, 2147483648
    %v2455 = vxor.u32 %v2439, 2147483648
    %v2456 = vxor.u32 %v2440, 2147483648
    %v2457 = vxor.u32 %v2441, 2147483648
    %v2458 = vxor.u32 %v2442, 2147483648
    %v2459 = vxor.u32 %v2443, 2147483648
    %v2460 = vxor.u32 %v2444, 2147483648
    %v2461 = vxor.u32 %v2445, 2147483648
    %v2462 = vxor.u32 %v2446, 2147483648
    %v2463 = vxor.u32 %v2447, 2147483648
    %v2464 = vmul.f32 %v2448, 1.442695
    %v2465 = vpow.pop %v2464
    %v2466 = vmul.f32 %v2449, 1.442695
    %v2467 = vpow.pop %v2466
    %v2468 = vmul.f32 %v2450, 1.442695
    %v2469 = vpow.pop %v2468
    %v2470 = vmul.f32 %v2451, 1.442695
    %v2471 = vpow.pop %v2470
    %v2472 = vmul.f32 %v2452, 1.442695
    %v2473 = vpow.pop %v2472
    %v2474 = vmul.f32 %v2453, 1.442695
    %v2475 = vpow.pop %v2474
    %v2476 = vmul.f32 %v2454, 1.442695
    %v2477 = vpow.pop %v2476
    %v2478 = vmul.f32 %v2455, 1.442695
    %v2479 = vpow.pop %v2478
    %v2480 = vmul.f32 %v2456, 1.442695
    %v2481 = vpow.pop %v2480
    %v2482 = vmul.f32 %v2457, 1.442695
    %v2483 = vpow.pop %v2482
    %v2484 = vmul.f32 %v2458, 1.442695
    %v2485 = vpow.pop %v2484
    %v2486 = vmul.f32 %v2459, 1.442695
    %v2487 = vpow.pop %v2486
    %v2488 = vmul.f32 %v2460, 1.442695
    %v2489 = vpow.pop %v2488
    %v2490 = vmul.f32 %v2461, 1.442695
    %v2491 = vpow.pop %v2490
    %v2492 = vmul.f32 %v2462, 1.442695
    %v2493 = vpow.pop %v2492
    %v2494 = vmul.f32 %v2463, 1.442695
    %v2495 = vpow.pop %v2494
    %v2496 = vadd.f32 %v2465, 1.0
    %v2497 = vadd.f32 %v2467, 1.0
    %v2498 = vadd.f32 %v2469, 1.0
    %v2499 = vadd.f32 %v2471, 1.0
    %v2500 = vadd.f32 %v2473, 1.0
    %v2501 = vadd.f32 %v2475, 1.0
    %v2502 = vadd.f32 %v2477, 1.0
    %v2503 = vadd.f32 %v2479, 1.0
    %v2504 = vadd.f32 %v2481, 1.0
    %v2505 = vadd.f32 %v2483, 1.0
    %v2506 = vadd.f32 %v2485, 1.0
    %v2507 = vadd.f32 %v2487, 1.0
    %v2508 = vadd.f32 %v2489, 1.0
    %v2509 = vadd.f32 %v2491, 1.0
    %v2510 = vadd.f32 %v2493, 1.0
    %v2511 = vadd.f32 %v2495, 1.0
    %v2512 = vrcp.pop %v2496
    %v2513 = vmul.f32 %v2496, %v2512
    %v2514 = vsub.f32 1.0, %v2513
    %v2515 = vmul.f32 %v2512, %v2514
    %v2516 = vadd.f32 %v2512, %v2515
    %vm2517 = vweird.f32 %v2496
    %vm2518 = vweird.f32 %v2512
    %vm2519 = vmor %vm2517, %vm2518
    %v2520 = vsel %vm2519, %v2512, %v2516
    %v2521 = vand.u32 2147483647, %v2496
    %vm2522 = vcmp.eq.f32.partialorder %v2521, 8.507059e+37
    %v2523 = vand.u32 %v2496, 2147483648
    %v2524 = vor.u32 1.1754944e-38, %v2523
    %v2525 = vsel %vm2522, %v2524, %v2520
    %v2526 = vmul.f32 1.0, %v2525
    %v2527 = vrcp.pop %v2497
    %v2528 = vmul.f32 %v2497, %v2527
    %v2529 = vsub.f32 1.0, %v2528
    %v2530 = vmul.f32 %v2527, %v2529
    %v2531 = vadd.f32 %v2527, %v2530
    %vm2532 = vweird.f32 %v2497
    %vm2533 = vweird.f32 %v2527
    %vm2534 = vmor %vm2532, %vm2533
    %v2535 = vsel %vm2534, %v2527, %v2531
    %v2536 = vand.u32 2147483647, %v2497
    %vm2537 = vcmp.eq.f32.partialorder %v2536, 8.507059e+37
    %v2538 = vand.u32 %v2497, 2147483648
    %v2539 = vor.u32 1.1754944e-38, %v2538
    %v2540 = vsel %vm2537, %v2539, %v2535
    %v2541 = vmul.f32 1.0, %v2540
    %v2542 = vrcp.pop %v2498
    %v2543 = vmul.f32 %v2498, %v2542
    %v2544 = vsub.f32 1.0, %v2543
    %v2545 = vmul.f32 %v2542, %v2544
    %v2546 = vadd.f32 %v2542, %v2545
    %vm2547 = vweird.f32 %v2498
    %vm2548 = vweird.f32 %v2542
    %vm2549 = vmor %vm2547, %vm2548
    %v2550 = vsel %vm2549, %v2542, %v2546
    %v2551 = vand.u32 2147483647, %v2498
    %vm2552 = vcmp.eq.f32.partialorder %v2551, 8.507059e+37
    %v2553 = vand.u32 %v2498, 2147483648
    %v2554 = vor.u32 1.1754944e-38, %v2553
    %v2555 = vsel %vm2552, %v2554, %v2550
    %v2556 = vmul.f32 1.0, %v2555
    %v2557 = vrcp.pop %v2499
    %v2558 = vmul.f32 %v2499, %v2557
    %v2559 = vsub.f32 1.0, %v2558
    %v2560 = vmul.f32 %v2557, %v2559
    %v2561 = vadd.f32 %v2557, %v2560
    %vm2562 = vweird.f32 %v2499
    %vm2563 = vweird.f32 %v2557
    %vm2564 = vmor %vm2562, %vm2563
    %v2565 = vsel %vm2564, %v2557, %v2561
    %v2566 = vand.u32 2147483647, %v2499
    %vm2567 = vcmp.eq.f32.partialorder %v2566, 8.507059e+37
    %v2568 = vand.u32 %v2499, 2147483648
    %v2569 = vor.u32 1.1754944e-38, %v2568
    %v2570 = vsel %vm2567, %v2569, %v2565
    %v2571 = vmul.f32 1.0, %v2570
    %v2572 = vrcp.pop %v2500
    %v2573 = vmul.f32 %v2500, %v2572
    %v2574 = vsub.f32 1.0, %v2573
    %v2575 = vmul.f32 %v2572, %v2574
    %v2576 = vadd.f32 %v2572, %v2575
    %vm2577 = vweird.f32 %v2500
    %vm2578 = vweird.f32 %v2572
    %vm2579 = vmor %vm2577, %vm2578
    %v2580 = vsel %vm2579, %v2572, %v2576
    %v2581 = vand.u32 2147483647, %v2500
    %vm2582 = vcmp.eq.f32.partialorder %v2581, 8.507059e+37
    %v2583 = vand.u32 %v2500, 2147483648
    %v2584 = vor.u32 1.1754944e-38, %v2583
    %v2585 = vsel %vm2582, %v2584, %v2580
    %v2586 = vmul.f32 1.0, %v2585
    %v2587 = vrcp.pop %v2501
    %v2588 = vmul.f32 %v2501, %v2587
    %v2589 = vsub.f32 1.0, %v2588
    %v2590 = vmul.f32 %v2587, %v2589
    %v2591 = vadd.f32 %v2587, %v2590
    %vm2592 = vweird.f32 %v2501
    %vm2593 = vweird.f32 %v2587
    %vm2594 = vmor %vm2592, %vm2593
    %v2595 = vsel %vm2594, %v2587, %v2591
    %v2596 = vand.u32 2147483647, %v2501
    %vm2597 = vcmp.eq.f32.partialorder %v2596, 8.507059e+37
    %v2598 = vand.u32 %v2501, 2147483648
    %v2599 = vor.u32 1.1754944e-38, %v2598
    %v2600 = vsel %vm2597, %v2599, %v2595
    %v2601 = vmul.f32 1.0, %v2600
    %v2602 = vrcp.pop %v2502
    %v2603 = vmul.f32 %v2502, %v2602
    %v2604 = vsub.f32 1.0, %v2603
    %v2605 = vmul.f32 %v2602, %v2604
    %v2606 = vadd.f32 %v2602, %v2605
    %vm2607 = vweird.f32 %v2502
    %vm2608 = vweird.f32 %v2602
    %vm2609 = vmor %vm2607, %vm2608
    %v2610 = vsel %vm2609, %v2602, %v2606
    %v2611 = vand.u32 2147483647, %v2502
    %vm2612 = vcmp.eq.f32.partialorder %v2611, 8.507059e+37
    %v2613 = vand.u32 %v2502, 2147483648
    %v2614 = vor.u32 1.1754944e-38, %v2613
    %v2615 = vsel %vm2612, %v2614, %v2610
    %v2616 = vmul.f32 1.0, %v2615
    %v2617 = vrcp.pop %v2503
    %v2618 = vmul.f32 %v2503, %v2617
    %v2619 = vsub.f32 1.0, %v2618
    %v2620 = vmul.f32 %v2617, %v2619
    %v2621 = vadd.f32 %v2617, %v2620
    %vm2622 = vweird.f32 %v2503
    %vm2623 = vweird.f32 %v2617
    %vm2624 = vmor %vm2622, %vm2623
    %v2625 = vsel %vm2624, %v2617, %v2621
    %v2626 = vand.u32 2147483647, %v2503
    %vm2627 = vcmp.eq.f32.partialorder %v2626, 8.507059e+37
    %v2628 = vand.u32 %v2503, 2147483648
    %v2629 = vor.u32 1.1754944e-38, %v2628
    %v2630 = vsel %vm2627, %v2629, %v2625
    %v2631 = vmul.f32 1.0, %v2630
    %v2632 = vrcp.pop %v2504
    %v2633 = vmul.f32 %v2504, %v2632
    %v2634 = vsub.f32 1.0, %v2633
    %v2635 = vmul.f32 %v2632, %v2634
    %v2636 = vadd.f32 %v2632, %v2635
    %vm2637 = vweird.f32 %v2504
    %vm2638 = vweird.f32 %v2632
    %vm2639 = vmor %vm2637, %vm2638
    %v2640 = vsel %vm2639, %v2632, %v2636
    %v2641 = vand.u32 2147483647, %v2504
    %vm2642 = vcmp.eq.f32.partialorder %v2641, 8.507059e+37
    %v2643 = vand.u32 %v2504, 2147483648
    %v2644 = vor.u32 1.1754944e-38, %v2643
    %v2645 = vsel %vm2642, %v2644, %v2640
    %v2646 = vmul.f32 1.0, %v2645
    %v2647 = vrcp.pop %v2505
    %v2648 = vmul.f32 %v2505, %v2647
    %v2649 = vsub.f32 1.0, %v2648
    %v2650 = vmul.f32 %v2647, %v2649
    %v2651 = vadd.f32 %v2647, %v2650
    %vm2652 = vweird.f32 %v2505
    %vm2653 = vweird.f32 %v2647
    %vm2654 = vmor %vm2652, %vm2653
    %v2655 = vsel %vm2654, %v2647, %v2651
    %v2656 = vand.u32 2147483647, %v2505
    %vm2657 = vcmp.eq.f32.partialorder %v2656, 8.507059e+37
    %v2658 = vand.u32 %v2505, 2147483648
    %v2659 = vor.u32 1.1754944e-38, %v2658
    %v2660 = vsel %vm2657, %v2659, %v2655
    %v2661 = vmul.f32 1.0, %v2660
    %v2662 = vrcp.pop %v2506
    %v2663 = vmul.f32 %v2506, %v2662
    %v2664 = vsub.f32 1.0, %v2663
    %v2665 = vmul.f32 %v2662, %v2664
    %v2666 = vadd.f32 %v2662, %v2665
    %vm2667 = vweird.f32 %v2506
    %vm2668 = vweird.f32 %v2662
    %vm2669 = vmor %vm2667, %vm2668
    %v2670 = vsel %vm2669, %v2662, %v2666
    %v2671 = vand.u32 2147483647, %v2506
    %vm2672 = vcmp.eq.f32.partialorder %v2671, 8.507059e+37
    %v2673 = vand.u32 %v2506, 2147483648
    %v2674 = vor.u32 1.1754944e-38, %v2673
    %v2675 = vsel %vm2672, %v2674, %v2670
    %v2676 = vmul.f32 1.0, %v2675
    %v2677 = vrcp.pop %v2507
    %v2678 = vmul.f32 %v2507, %v2677
    %v2679 = vsub.f32 1.0, %v2678
    %v2680 = vmul.f32 %v2677, %v2679
    %v2681 = vadd.f32 %v2677, %v2680
    %vm2682 = vweird.f32 %v2507
    %vm2683 = vweird.f32 %v2677
    %vm2684 = vmor %vm2682, %vm2683
    %v2685 = vsel %vm2684, %v2677, %v2681
    %v2686 = vand.u32 2147483647, %v2507
    %vm2687 = vcmp.eq.f32.partialorder %v2686, 8.507059e+37
    %v2688 = vand.u32 %v2507, 2147483648
    %v2689 = vor.u32 1.1754944e-38, %v2688
    %v2690 = vsel %vm2687, %v2689, %v2685
    %v2691 = vmul.f32 1.0, %v2690
    %v2692 = vrcp.pop %v2508
    %v2693 = vmul.f32 %v2508, %v2692
    %v2694 = vsub.f32 1.0, %v2693
    %v2695 = vmul.f32 %v2692, %v2694
    %v2696 = vadd.f32 %v2692, %v2695
    %vm2697 = vweird.f32 %v2508
    %vm2698 = vweird.f32 %v2692
    %vm2699 = vmor %vm2697, %vm2698
    %v2700 = vsel %vm2699, %v2692, %v2696
    %v2701 = vand.u32 2147483647, %v2508
    %vm2702 = vcmp.eq.f32.partialorder %v2701, 8.507059e+37
    %v2703 = vand.u32 %v2508, 2147483648
    %v2704 = vor.u32 1.1754944e-38, %v2703
    %v2705 = vsel %vm2702, %v2704, %v2700
    %v2706 = vmul.f32 1.0, %v2705
    %v2707 = vrcp.pop %v2509
    %v2708 = vmul.f32 %v2509, %v2707
    %v2709 = vsub.f32 1.0, %v2708
    %v2710 = vmul.f32 %v2707, %v2709
    %v2711 = vadd.f32 %v2707, %v2710
    %vm2712 = vweird.f32 %v2509
    %vm2713 = vweird.f32 %v2707
    %vm2714 = vmor %vm2712, %vm2713
    %v2715 = vsel %vm2714, %v2707, %v2711
    %v2716 = vand.u32 2147483647, %v2509
    %vm2717 = vcmp.eq.f32.partialorder %v2716, 8.507059e+37
    %v2718 = vand.u32 %v2509, 2147483648
    %v2719 = vor.u32 1.1754944e-38, %v2718
    %v2720 = vsel %vm2717, %v2719, %v2715
    %v2721 = vmul.f32 1.0, %v2720
    %v2722 = vrcp.pop %v2510
    %v2723 = vmul.f32 %v2510, %v2722
    %v2724 = vsub.f32 1.0, %v2723
    %v2725 = vmul.f32 %v2722, %v2724
    %v2726 = vadd.f32 %v2722, %v2725
    %vm2727 = vweird.f32 %v2510
    %vm2728 = vweird.f32 %v2722
    %vm2729 = vmor %vm2727, %vm2728
    %v2730 = vsel %vm2729, %v2722, %v2726
    %v2731 = vand.u32 2147483647, %v2510
    %vm2732 = vcmp.eq.f32.partialorder %v2731, 8.507059e+37
    %v2733 = vand.u32 %v2510, 2147483648
    %v2734 = vor.u32 1.1754944e-38, %v2733
    %v2735 = vsel %vm2732, %v2734, %v2730
    %v2736 = vmul.f32 1.0, %v2735
    %v2737 = vrcp.pop %v2511
    %v2738 = vmul.f32 %v2511, %v2737
    %v2739 = vsub.f32 1.0, %v2738
    %v2740 = vmul.f32 %v2737, %v2739
    %v2741 = vadd.f32 %v2737, %v2740
    %vm2742 = vweird.f32 %v2511
    %vm2743 = vweird.f32 %v2737
    %vm2744 = vmor %vm2742, %vm2743
    %v2745 = vsel %vm2744, %v2737, %v2741
    %v2746 = vand.u32 2147483647, %v2511
    %vm2747 = vcmp.eq.f32.partialorder %v2746, 8.507059e+37
    %v2748 = vand.u32 %v2511, 2147483648
    %v2749 = vor.u32 1.1754944e-38, %v2748
    %v2750 = vsel %vm2747, %v2749, %v2745
    %v2751 = vmul.f32 1.0, %v2750
    %v2752 = vmul.f32 %v2432, %v2526
    %v2753 = vmul.f32 %v2433, %v2541
    %v2754 = vmul.f32 %v2434, %v2556
    %v2755 = vmul.f32 %v2435, %v2571
    %v2756 = vmul.f32 %v2436, %v2586
    %v2757 = vmul.f32 %v2437, %v2601
    %v2758 = vmul.f32 %v2438, %v2616
    %v2759 = vmul.f32 %v2439, %v2631
    %v2760 = vmul.f32 %v2440, %v2646
    %v2761 = vmul.f32 %v2441, %v2661
    %v2762 = vmul.f32 %v2442, %v2676
    %v2763 = vmul.f32 %v2443, %v2691
    %v2764 = vmul.f32 %v2444, %v2706
    %v2765 = vmul.f32 %v2445, %v2721
    %v2766 = vmul.f32 %v2446, %v2736
    %v2767 = vmul.f32 %v2447, %v2751
    %2768 = vrot.lane.b32.xlu0 %v2752, 17
    %v2769 = vpop.permute.xlu0 %2768
    %2770 = vrot.lane.b32.xlu0 %v2756, 17
    %v2771 = vpop.permute.xlu0 %2770
    %2772 = vrot.lane.b32.xlu0 %v2760, 17
    %v2773 = vpop.permute.xlu0 %2772
    %2774 = vrot.lane.b32.xlu0 %v2764, 17
    %v2775 = vpop.permute.xlu0 %2774
    %2776 = vrot.lane.b32.xlu0 %v2753, 17
    %v2777 = vpop.permute.xlu0 %2776
    %2778 = vrot.lane.b32.xlu0 %v2757, 17
    %v2779 = vpop.permute.xlu0 %2778
    %2780 = vrot.lane.b32.xlu0 %v2761, 17
    %v2781 = vpop.permute.xlu0 %2780
    %2782 = vrot.lane.b32.xlu0 %v2765, 17
    %v2783 = vpop.permute.xlu0 %2782
    %2784 = vrot.lane.b32.xlu0 %v2754, 17
    %v2785 = vpop.permute.xlu0 %2784
    %2786 = vrot.lane.b32.xlu0 %v2758, 17
    %v2787 = vpop.permute.xlu0 %2786
    %2788 = vrot.lane.b32.xlu0 %v2762, 17
    %v2789 = vpop.permute.xlu0 %2788
    %2790 = vrot.lane.b32.xlu0 %v2766, 17
    %v2791 = vpop.permute.xlu0 %2790
    %2792 = vrot.lane.b32.xlu0 %v2755, 17
    %v2793 = vpop.permute.xlu0 %2792
    %2794 = vrot.lane.b32.xlu0 %v2759, 17
    %v2795 = vpop.permute.xlu0 %2794
    %2796 = vrot.lane.b32.xlu0 %v2763, 17
    %v2797 = vpop.permute.xlu0 %2796
    %2798 = vrot.lane.b32.xlu0 %v2767, 17
    %v2799 = vpop.permute.xlu0 %2798
    %v2800 = vsel %vm716, %v2785, %v2793
    %v2801 = vsel %vm716, %v2787, %v2795
    %v2802 = vsel %vm716, %v2789, %v2797
    %v2803 = vsel %vm716, %v2791, %v2799
    %v2804 = vsel %vm716, %v2777, %v2785
    %v2805 = vsel %vm716, %v2779, %v2787
    %v2806 = vsel %vm716, %v2781, %v2789
    %v2807 = vsel %vm716, %v2783, %v2791
    %v2808 = vsel %vm716, %v2769, %v2777
    %v2809 = vsel %vm716, %v2771, %v2779
    %v2810 = vsel %vm716, %v2773, %v2781
    %v2811 = vsel %vm716, %v2775, %v2783
    %v2812 = vsel %vm716, %v2793, %v2769
    %v2813 = vsel %vm716, %v2795, %v2771
    %v2814 = vsel %vm716, %v2797, %v2773
    %v2815 = vsel %vm716, %v2799, %v2775
    %v2816 = vmul.f32 %v2812, %v733
    %v2817 = vmul.f32 %v2808, %v734
    %v2818 = vmul.f32 %v2804, %v733
    %v2819 = vmul.f32 %v2800, %v734
    %v2820 = vmul.f32 %v2813, %v733
    %v2821 = vmul.f32 %v2809, %v734
    %v2822 = vmul.f32 %v2805, %v733
    %v2823 = vmul.f32 %v2801, %v734
    %v2824 = vmul.f32 %v2814, %v733
    %v2825 = vmul.f32 %v2810, %v734
    %v2826 = vmul.f32 %v2806, %v733
    %v2827 = vmul.f32 %v2802, %v734
    %v2828 = vmul.f32 %v2815, %v733
    %v2829 = vmul.f32 %v2811, %v734
    %v2830 = vmul.f32 %v2807, %v733
    %v2831 = vmul.f32 %v2803, %v734
    %v2832 = vpack.c.bf16 %v2817, %v2816
    %v2833 = vpack.c.bf16 %v2819, %v2818
    %v2834 = vpack.c.bf16 %v2821, %v2820
    %v2835 = vpack.c.bf16 %v2823, %v2822
    %v2836 = vpack.c.bf16 %v2825, %v2824
    %v2837 = vpack.c.bf16 %v2827, %v2826
    %v2838 = vpack.c.bf16 %v2829, %v2828
    %v2839 = vpack.c.bf16 %v2831, %v2830
    %2840 = vst [vmem:[#allocation2] sm:$0xff] %v2832
    %2841 = vst [vmem:[#allocation2 + $0x8] sm:$0xff] %v2833
    %2842 = vst [vmem:[#allocation2 + $0x10] sm:$0xff] %v2834
    %2843 = vst [vmem:[#allocation2 + $0x18] sm:$0xff] %v2835
    %2844 = vst [vmem:[#allocation2 + $0x20] sm:$0xff] %v2836
    %2845 = vst [vmem:[#allocation2 + $0x28] sm:$0xff] %v2837
    %2846 = vst [vmem:[#allocation2 + $0x30] sm:$0xff] %v2838
    %2847 = vst [vmem:[#allocation2 + $0x38] sm:$0xff] %v2839
    %2848 = vrot.lane.b32.xlu0 %v2752, 16
    %v2849 = vpop.permute.xlu0 %2848
    %2850 = vrot.lane.b32.xlu0 %v2756, 16
    %v2851 = vpop.permute.xlu0 %2850
    %2852 = vrot.lane.b32.xlu0 %v2760, 16
    %v2853 = vpop.permute.xlu0 %2852
    %2854 = vrot.lane.b32.xlu0 %v2764, 16
    %v2855 = vpop.permute.xlu0 %2854
    %2856 = vrot.lane.b32.xlu0 %v2753, 16
    %v2857 = vpop.permute.xlu0 %2856
    %2858 = vrot.lane.b32.xlu0 %v2757, 16
    %v2859 = vpop.permute.xlu0 %2858
    %2860 = vrot.lane.b32.xlu0 %v2761, 16
    %v2861 = vpop.permute.xlu0 %2860
    %2862 = vrot.lane.b32.xlu0 %v2765, 16
    %v2863 = vpop.permute.xlu0 %2862
    %2864 = vrot.lane.b32.xlu0 %v2754, 16
    %v2865 = vpop.permute.xlu0 %2864
    %2866 = vrot.lane.b32.xlu0 %v2758, 16
    %v2867 = vpop.permute.xlu0 %2866
    %2868 = vrot.lane.b32.xlu0 %v2762, 16
    %v2869 = vpop.permute.xlu0 %2868
    %2870 = vrot.lane.b32.xlu0 %v2766, 16
    %v2871 = vpop.permute.xlu0 %2870
    %2872 = vrot.lane.b32.xlu0 %v2755, 16
    %v2873 = vpop.permute.xlu0 %2872
    %2874 = vrot.lane.b32.xlu0 %v2759, 16
    %v2875 = vpop.permute.xlu0 %2874
    %2876 = vrot.lane.b32.xlu0 %v2763, 16
    %v2877 = vpop.permute.xlu0 %2876
    %2878 = vrot.lane.b32.xlu0 %v2767, 16
    %v2879 = vpop.permute.xlu0 %2878
    %v2880 = vsel %vm799, %v2865, %v2873
    %v2881 = vsel %vm799, %v2867, %v2875
    %v2882 = vsel %vm799, %v2869, %v2877
    %v2883 = vsel %vm799, %v2871, %v2879
    %v2884 = vsel %vm799, %v2857, %v2865
    %v2885 = vsel %vm799, %v2859, %v2867
    %v2886 = vsel %vm799, %v2861, %v2869
    %v2887 = vsel %vm799, %v2863, %v2871
    %v2888 = vsel %vm799, %v2849, %v2857
    %v2889 = vsel %vm799, %v2851, %v2859
    %v2890 = vsel %vm799, %v2853, %v2861
    %v2891 = vsel %vm799, %v2855, %v2863
    %v2892 = vsel %vm799, %v2873, %v2849
    %v2893 = vsel %vm799, %v2875, %v2851
    %v2894 = vsel %vm799, %v2877, %v2853
    %v2895 = vsel %vm799, %v2879, %v2855
    %v2896 = vmul.f32 %v2892, %v816
    %v2897 = vmul.f32 %v2888, %v817
    %v2898 = vmul.f32 %v2884, %v816
    %v2899 = vmul.f32 %v2880, %v817
    %v2900 = vmul.f32 %v2893, %v816
    %v2901 = vmul.f32 %v2889, %v817
    %v2902 = vmul.f32 %v2885, %v816
    %v2903 = vmul.f32 %v2881, %v817
    %v2904 = vmul.f32 %v2894, %v816
    %v2905 = vmul.f32 %v2890, %v817
    %v2906 = vmul.f32 %v2886, %v816
    %v2907 = vmul.f32 %v2882, %v817
    %v2908 = vmul.f32 %v2895, %v816
    %v2909 = vmul.f32 %v2891, %v817
    %v2910 = vmul.f32 %v2887, %v816
    %v2911 = vmul.f32 %v2883, %v817
    %v2912 = vpack.c.bf16 %v2897, %v2896
    %v2913 = vpack.c.bf16 %v2899, %v2898
    %v2914 = vpack.c.bf16 %v2901, %v2900
    %v2915 = vpack.c.bf16 %v2903, %v2902
    %v2916 = vpack.c.bf16 %v2905, %v2904
    %v2917 = vpack.c.bf16 %v2907, %v2906
    %v2918 = vpack.c.bf16 %v2909, %v2908
    %v2919 = vpack.c.bf16 %v2911, %v2910
    %2920 = vst [vmem:[#allocation2 + $0x40] sm:$0xff] %v2912
    %2921 = vst [vmem:[#allocation2 + $0x48] sm:$0xff] %v2913
    %2922 = vst [vmem:[#allocation2 + $0x50] sm:$0xff] %v2914
    %2923 = vst [vmem:[#allocation2 + $0x58] sm:$0xff] %v2915
    %2924 = vst [vmem:[#allocation2 + $0x60] sm:$0xff] %v2916
    %2925 = vst [vmem:[#allocation2 + $0x68] sm:$0xff] %v2917
    %2926 = vst [vmem:[#allocation2 + $0x70] sm:$0xff] %v2918
    %2927 = vst [vmem:[#allocation2 + $0x78] sm:$0xff] %v2919
    %2928 = vrot.lane.b32.xlu0 %v2752, 15
    %v2929 = vpop.permute.xlu0 %2928
    %2930 = vrot.lane.b32.xlu0 %v2756, 15
    %v2931 = vpop.permute.xlu0 %2930
    %2932 = vrot.lane.b32.xlu0 %v2760, 15
    %v2933 = vpop.permute.xlu0 %2932
    %2934 = vrot.lane.b32.xlu0 %v2764, 15
    %v2935 = vpop.permute.xlu0 %2934
    %2936 = vrot.lane.b32.xlu0 %v2753, 15
    %v2937 = vpop.permute.xlu0 %2936
    %2938 = vrot.lane.b32.xlu0 %v2757, 15
    %v2939 = vpop.permute.xlu0 %2938
    %2940 = vrot.lane.b32.xlu0 %v2761, 15
    %v2941 = vpop.permute.xlu0 %2940
    %2942 = vrot.lane.b32.xlu0 %v2765, 15
    %v2943 = vpop.permute.xlu0 %2942
    %2944 = vrot.lane.b32.xlu0 %v2754, 15
    %v2945 = vpop.permute.xlu0 %2944
    %2946 = vrot.lane.b32.xlu0 %v2758, 15
    %v2947 = vpop.permute.xlu0 %2946
    %2948 = vrot.lane.b32.xlu0 %v2762, 15
    %v2949 = vpop.permute.xlu0 %2948
    %2950 = vrot.lane.b32.xlu0 %v2766, 15
    %v2951 = vpop.permute.xlu0 %2950
    %2952 = vrot.lane.b32.xlu0 %v2755, 15
    %v2953 = vpop.permute.xlu0 %2952
    %2954 = vrot.lane.b32.xlu0 %v2759, 15
    %v2955 = vpop.permute.xlu0 %2954
    %2956 = vrot.lane.b32.xlu0 %v2763, 15
    %v2957 = vpop.permute.xlu0 %2956
    %2958 = vrot.lane.b32.xlu0 %v2767, 15
    %v2959 = vpop.permute.xlu0 %2958
    %v2960 = vsel %vm882, %v2945, %v2953
    %v2961 = vsel %vm882, %v2947, %v2955
    %v2962 = vsel %vm882, %v2949, %v2957
    %v2963 = vsel %vm882, %v2951, %v2959
    %v2964 = vsel %vm882, %v2937, %v2945
    %v2965 = vsel %vm882, %v2939, %v2947
    %v2966 = vsel %vm882, %v2941, %v2949
    %v2967 = vsel %vm882, %v2943, %v2951
    %v2968 = vsel %vm882, %v2929, %v2937
    %v2969 = vsel %vm882, %v2931, %v2939
    %v2970 = vsel %vm882, %v2933, %v2941
    %v2971 = vsel %vm882, %v2935, %v2943
    %v2972 = vsel %vm882, %v2953, %v2929
    %v2973 = vsel %vm882, %v2955, %v2931
    %v2974 = vsel %vm882, %v2957, %v2933
    %v2975 = vsel %vm882, %v2959, %v2935
    %v2976 = vmul.f32 %v2972, %v899
    %v2977 = vmul.f32 %v2968, %v900
    %v2978 = vmul.f32 %v2964, %v899
    %v2979 = vmul.f32 %v2960, %v900
    %v2980 = vmul.f32 %v2973, %v899
    %v2981 = vmul.f32 %v2969, %v900
    %v2982 = vmul.f32 %v2965, %v899
    %v2983 = vmul.f32 %v2961, %v900
    %v2984 = vmul.f32 %v2974, %v899
    %v2985 = vmul.f32 %v2970, %v900
    %v2986 = vmul.f32 %v2966, %v899
    %v2987 = vmul.f32 %v2962, %v900
    %v2988 = vmul.f32 %v2975, %v899
    %v2989 = vmul.f32 %v2971, %v900
    %v2990 = vmul.f32 %v2967, %v899
    %v2991 = vmul.f32 %v2963, %v900
    %v2992 = vpack.c.bf16 %v2977, %v2976
    %v2993 = vpack.c.bf16 %v2979, %v2978
    %v2994 = vpack.c.bf16 %v2981, %v2980
    %v2995 = vpack.c.bf16 %v2983, %v2982
    %v2996 = vpack.c.bf16 %v2985, %v2984
    %v2997 = vpack.c.bf16 %v2987, %v2986
    %v2998 = vpack.c.bf16 %v2989, %v2988
    %v2999 = vpack.c.bf16 %v2991, %v2990
    %3000 = vst [vmem:[#allocation2 + $0x80] sm:$0xff] %v2992
    %3001 = vst [vmem:[#allocation2 + $0x88] sm:$0xff] %v2993
    %3002 = vst [vmem:[#allocation2 + $0x90] sm:$0xff] %v2994
    %3003 = vst [vmem:[#allocation2 + $0x98] sm:$0xff] %v2995
    %3004 = vst [vmem:[#allocation2 + $0xa0] sm:$0xff] %v2996
    %3005 = vst [vmem:[#allocation2 + $0xa8] sm:$0xff] %v2997
    %3006 = vst [vmem:[#allocation2 + $0xb0] sm:$0xff] %v2998
    %3007 = vst [vmem:[#allocation2 + $0xb8] sm:$0xff] %v2999
    %3008 = vrot.lane.b32.xlu0 %v2752, 1
    %v3009 = vpop.permute.xlu0 %3008
    %3010 = vrot.lane.b32.xlu0 %v2756, 1
    %v3011 = vpop.permute.xlu0 %3010
    %3012 = vrot.lane.b32.xlu0 %v2760, 1
    %v3013 = vpop.permute.xlu0 %3012
    %3014 = vrot.lane.b32.xlu0 %v2764, 1
    %v3015 = vpop.permute.xlu0 %3014
    %3016 = vrot.lane.b32.xlu0 %v2753, 1
    %v3017 = vpop.permute.xlu0 %3016
    %3018 = vrot.lane.b32.xlu0 %v2757, 1
    %v3019 = vpop.permute.xlu0 %3018
    %3020 = vrot.lane.b32.xlu0 %v2761, 1
    %v3021 = vpop.permute.xlu0 %3020
    %3022 = vrot.lane.b32.xlu0 %v2765, 1
    %v3023 = vpop.permute.xlu0 %3022
    %3024 = vrot.lane.b32.xlu0 %v2754, 1
    %v3025 = vpop.permute.xlu0 %3024
    %3026 = vrot.lane.b32.xlu0 %v2758, 1
    %v3027 = vpop.permute.xlu0 %3026
    %3028 = vrot.lane.b32.xlu0 %v2762, 1
    %v3029 = vpop.permute.xlu0 %3028
    %3030 = vrot.lane.b32.xlu0 %v2766, 1
    %v3031 = vpop.permute.xlu0 %3030
    %3032 = vrot.lane.b32.xlu0 %v2755, 1
    %v3033 = vpop.permute.xlu0 %3032
    %3034 = vrot.lane.b32.xlu0 %v2759, 1
    %v3035 = vpop.permute.xlu0 %3034
    %3036 = vrot.lane.b32.xlu0 %v2763, 1
    %v3037 = vpop.permute.xlu0 %3036
    %3038 = vrot.lane.b32.xlu0 %v2767, 1
    %v3039 = vpop.permute.xlu0 %3038
    %v3040 = vsel %vm965, %v3025, %v3033
    %v3041 = vsel %vm965, %v3027, %v3035
    %v3042 = vsel %vm965, %v3029, %v3037
    %v3043 = vsel %vm965, %v3031, %v3039
    %v3044 = vsel %vm965, %v3017, %v3025
    %v3045 = vsel %vm965, %v3019, %v3027
    %v3046 = vsel %vm965, %v3021, %v3029
    %v3047 = vsel %vm965, %v3023, %v3031
    %v3048 = vsel %vm965, %v3009, %v3017
    %v3049 = vsel %vm965, %v3011, %v3019
    %v3050 = vsel %vm965, %v3013, %v3021
    %v3051 = vsel %vm965, %v3015, %v3023
    %v3052 = vsel %vm965, %v3033, %v3009
    %v3053 = vsel %vm965, %v3035, %v3011
    %v3054 = vsel %vm965, %v3037, %v3013
    %v3055 = vsel %vm965, %v3039, %v3015
    %v3056 = vmul.f32 %v3052, %v982
    %v3057 = vmul.f32 %v3048, %v983
    %v3058 = vmul.f32 %v3044, %v982
    %v3059 = vmul.f32 %v3040, %v983
    %v3060 = vmul.f32 %v3053, %v982
    %v3061 = vmul.f32 %v3049, %v983
    %v3062 = vmul.f32 %v3045, %v982
    %v3063 = vmul.f32 %v3041, %v983
    %v3064 = vmul.f32 %v3054, %v982
    %v3065 = vmul.f32 %v3050, %v983
    %v3066 = vmul.f32 %v3046, %v982
    %v3067 = vmul.f32 %v3042, %v983
    %v3068 = vmul.f32 %v3055, %v982
    %v3069 = vmul.f32 %v3051, %v983
    %v3070 = vmul.f32 %v3047, %v982
    %v3071 = vmul.f32 %v3043, %v983
    %v3072 = vpack.c.bf16 %v3057, %v3056
    %v3073 = vpack.c.bf16 %v3059, %v3058
    %v3074 = vpack.c.bf16 %v3061, %v3060
    %v3075 = vpack.c.bf16 %v3063, %v3062
    %v3076 = vpack.c.bf16 %v3065, %v3064
    %v3077 = vpack.c.bf16 %v3067, %v3066
    %v3078 = vpack.c.bf16 %v3069, %v3068
    %v3079 = vpack.c.bf16 %v3071, %v3070
    %3080 = vst [vmem:[#allocation2 + $0xc0] sm:$0xff] %v3072
    %3081 = vst [vmem:[#allocation2 + $0xc8] sm:$0xff] %v3073
    %3082 = vst [vmem:[#allocation2 + $0xd0] sm:$0xff] %v3074
    %3083 = vst [vmem:[#allocation2 + $0xd8] sm:$0xff] %v3075
    %3084 = vst [vmem:[#allocation2 + $0xe0] sm:$0xff] %v3076
    %3085 = vst [vmem:[#allocation2 + $0xe8] sm:$0xff] %v3077
    %3086 = vst [vmem:[#allocation2 + $0xf0] sm:$0xff] %v3078
    %3087 = vst [vmem:[#allocation2 + $0xf8] sm:$0xff] %v3079
    %v3088 = vmul.f32 %v2752, %v1016
    %v3089 = vmul.f32 %v2753, %v1017
    %v3090 = vmul.f32 %v2754, %v1016
    %v3091 = vmul.f32 %v2755, %v1017
    %v3092 = vmul.f32 %v2756, %v1016
    %v3093 = vmul.f32 %v2757, %v1017
    %v3094 = vmul.f32 %v2758, %v1016
    %v3095 = vmul.f32 %v2759, %v1017
    %v3096 = vmul.f32 %v2760, %v1016
    %v3097 = vmul.f32 %v2761, %v1017
    %v3098 = vmul.f32 %v2762, %v1016
    %v3099 = vmul.f32 %v2763, %v1017
    %v3100 = vmul.f32 %v2764, %v1016
    %v3101 = vmul.f32 %v2765, %v1017
    %v3102 = vmul.f32 %v2766, %v1016
    %v3103 = vmul.f32 %v2767, %v1017
    %v3104 = vpack.c.bf16 %v3089, %v3088
    %v3105 = vpack.c.bf16 %v3091, %v3090
    %v3106 = vpack.c.bf16 %v3093, %v3092
    %v3107 = vpack.c.bf16 %v3095, %v3094
    %v3108 = vpack.c.bf16 %v3097, %v3096
    %v3109 = vpack.c.bf16 %v3099, %v3098
    %v3110 = vpack.c.bf16 %v3101, %v3100
    %v3111 = vpack.c.bf16 %v3103, %v3102
    %3112 = vst [vmem:[#allocation2 + $0x100] sm:$0xff] %v3104
    %3113 = vst [vmem:[#allocation2 + $0x108] sm:$0xff] %v3105
    %3114 = vst [vmem:[#allocation2 + $0x110] sm:$0xff] %v3106
    %3115 = vst [vmem:[#allocation2 + $0x118] sm:$0xff] %v3107
    %3116 = vst [vmem:[#allocation2 + $0x120] sm:$0xff] %v3108
    %3117 = vst [vmem:[#allocation2 + $0x128] sm:$0xff] %v3109
    %3118 = vst [vmem:[#allocation2 + $0x130] sm:$0xff] %v3110
    %3119 = vst [vmem:[#allocation2 + $0x138] sm:$0xff] %v3111
    %3120 = vrot.lane.b32.xlu0 %v2752, 127
    %v3121 = vpop.permute.xlu0 %3120
    %3122 = vrot.lane.b32.xlu0 %v2756, 127
    %v3123 = vpop.permute.xlu0 %3122
    %3124 = vrot.lane.b32.xlu0 %v2760, 127
    %v3125 = vpop.permute.xlu0 %3124
    %3126 = vrot.lane.b32.xlu0 %v2764, 127
    %v3127 = vpop.permute.xlu0 %3126
    %3128 = vrot.lane.b32.xlu0 %v2753, 127
    %v3129 = vpop.permute.xlu0 %3128
    %3130 = vrot.lane.b32.xlu0 %v2757, 127
    %v3131 = vpop.permute.xlu0 %3130
    %3132 = vrot.lane.b32.xlu0 %v2761, 127
    %v3133 = vpop.permute.xlu0 %3132
    %3134 = vrot.lane.b32.xlu0 %v2765, 127
    %v3135 = vpop.permute.xlu0 %3134
    %3136 = vrot.lane.b32.xlu0 %v2754, 127
    %v3137 = vpop.permute.xlu0 %3136
    %3138 = vrot.lane.b32.xlu0 %v2758, 127
    %v3139 = vpop.permute.xlu0 %3138
    %3140 = vrot.lane.b32.xlu0 %v2762, 127
    %v3141 = vpop.permute.xlu0 %3140
    %3142 = vrot.lane.b32.xlu0 %v2766, 127
    %v3143 = vpop.permute.xlu0 %3142
    %3144 = vrot.lane.b32.xlu0 %v2755, 127
    %v3145 = vpop.permute.xlu0 %3144
    %3146 = vrot.lane.b32.xlu0 %v2759, 127
    %v3147 = vpop.permute.xlu0 %3146
    %3148 = vrot.lane.b32.xlu0 %v2763, 127
    %v3149 = vpop.permute.xlu0 %3148
    %3150 = vrot.lane.b32.xlu0 %v2767, 127
    %v3151 = vpop.permute.xlu0 %3150
    %v3152 = vsel %vm1082, %v3137, %v3145
    %v3153 = vsel %vm1082, %v3139, %v3147
    %v3154 = vsel %vm1082, %v3141, %v3149
    %v3155 = vsel %vm1082, %v3143, %v3151
    %v3156 = vsel %vm1082, %v3129, %v3137
    %v3157 = vsel %vm1082, %v3131, %v3139
    %v3158 = vsel %vm1082, %v3133, %v3141
    %v3159 = vsel %vm1082, %v3135, %v3143
    %v3160 = vsel %vm1082, %v3121, %v3129
    %v3161 = vsel %vm1082, %v3123, %v3131
    %v3162 = vsel %vm1082, %v3125, %v3133
    %v3163 = vsel %vm1082, %v3127, %v3135
    %v3164 = vsel %vm1082, %v3145, %v3121
    %v3165 = vsel %vm1082, %v3147, %v3123
    %v3166 = vsel %vm1082, %v3149, %v3125
    %v3167 = vsel %vm1082, %v3151, %v3127
    %v3168 = vmul.f32 %v3160, %v1099
    %v3169 = vmul.f32 %v3156, %v1100
    %v3170 = vmul.f32 %v3152, %v1099
    %v3171 = vmul.f32 %v3164, %v1100
    %v3172 = vmul.f32 %v3161, %v1099
    %v3173 = vmul.f32 %v3157, %v1100
    %v3174 = vmul.f32 %v3153, %v1099
    %v3175 = vmul.f32 %v3165, %v1100
    %v3176 = vmul.f32 %v3162, %v1099
    %v3177 = vmul.f32 %v3158, %v1100
    %v3178 = vmul.f32 %v3154, %v1099
    %v3179 = vmul.f32 %v3166, %v1100
    %v3180 = vmul.f32 %v3163, %v1099
    %v3181 = vmul.f32 %v3159, %v1100
    %v3182 = vmul.f32 %v3155, %v1099
    %v3183 = vmul.f32 %v3167, %v1100
    %v3184 = vpack.c.bf16 %v3169, %v3168
    %v3185 = vpack.c.bf16 %v3171, %v3170
    %v3186 = vpack.c.bf16 %v3173, %v3172
    %v3187 = vpack.c.bf16 %v3175, %v3174
    %v3188 = vpack.c.bf16 %v3177, %v3176
    %v3189 = vpack.c.bf16 %v3179, %v3178
    %v3190 = vpack.c.bf16 %v3181, %v3180
    %v3191 = vpack.c.bf16 %v3183, %v3182
    %3192 = vst [vmem:[#allocation2 + $0x140] sm:$0xff] %v3184
    %3193 = vst [vmem:[#allocation2 + $0x148] sm:$0xff] %v3185
    %3194 = vst [vmem:[#allocation2 + $0x150] sm:$0xff] %v3186
    %3195 = vst [vmem:[#allocation2 + $0x158] sm:$0xff] %v3187
    %3196 = vst [vmem:[#allocation2 + $0x160] sm:$0xff] %v3188
    %3197 = vst [vmem:[#allocation2 + $0x168] sm:$0xff] %v3189
    %3198 = vst [vmem:[#allocation2 + $0x170] sm:$0xff] %v3190
    %3199 = vst [vmem:[#allocation2 + $0x178] sm:$0xff] %v3191
    %3200 = vrot.lane.b32.xlu0 %v2752, 113
    %v3201 = vpop.permute.xlu0 %3200
    %3202 = vrot.lane.b32.xlu0 %v2756, 113
    %v3203 = vpop.permute.xlu0 %3202
    %3204 = vrot.lane.b32.xlu0 %v2760, 113
    %v3205 = vpop.permute.xlu0 %3204
    %3206 = vrot.lane.b32.xlu0 %v2764, 113
    %v3207 = vpop.permute.xlu0 %3206
    %3208 = vrot.lane.b32.xlu0 %v2753, 113
    %v3209 = vpop.permute.xlu0 %3208
    %3210 = vrot.lane.b32.xlu0 %v2757, 113
    %v3211 = vpop.permute.xlu0 %3210
    %3212 = vrot.lane.b32.xlu0 %v2761, 113
    %v3213 = vpop.permute.xlu0 %3212
    %3214 = vrot.lane.b32.xlu0 %v2765, 113
    %v3215 = vpop.permute.xlu0 %3214
    %3216 = vrot.lane.b32.xlu0 %v2754, 113
    %v3217 = vpop.permute.xlu0 %3216
    %3218 = vrot.lane.b32.xlu0 %v2758, 113
    %v3219 = vpop.permute.xlu0 %3218
    %3220 = vrot.lane.b32.xlu0 %v2762, 113
    %v3221 = vpop.permute.xlu0 %3220
    %3222 = vrot.lane.b32.xlu0 %v2766, 113
    %v3223 = vpop.permute.xlu0 %3222
    %3224 = vrot.lane.b32.xlu0 %v2755, 113
    %v3225 = vpop.permute.xlu0 %3224
    %3226 = vrot.lane.b32.xlu0 %v2759, 113
    %v3227 = vpop.permute.xlu0 %3226
    %3228 = vrot.lane.b32.xlu0 %v2763, 113
    %v3229 = vpop.permute.xlu0 %3228
    %3230 = vrot.lane.b32.xlu0 %v2767, 113
    %v3231 = vpop.permute.xlu0 %3230
    %v3232 = vsel %vm1165, %v3217, %v3225
    %v3233 = vsel %vm1165, %v3219, %v3227
    %v3234 = vsel %vm1165, %v3221, %v3229
    %v3235 = vsel %vm1165, %v3223, %v3231
    %v3236 = vsel %vm1165, %v3209, %v3217
    %v3237 = vsel %vm1165, %v3211, %v3219
    %v3238 = vsel %vm1165, %v3213, %v3221
    %v3239 = vsel %vm1165, %v3215, %v3223
    %v3240 = vsel %vm1165, %v3201, %v3209
    %v3241 = vsel %vm1165, %v3203, %v3211
    %v3242 = vsel %vm1165, %v3205, %v3213
    %v3243 = vsel %vm1165, %v3207, %v3215
    %v3244 = vsel %vm1165, %v3225, %v3201
    %v3245 = vsel %vm1165, %v3227, %v3203
    %v3246 = vsel %vm1165, %v3229, %v3205
    %v3247 = vsel %vm1165, %v3231, %v3207
    %v3248 = vmul.f32 %v3240, %v1182
    %v3249 = vmul.f32 %v3236, %v1183
    %v3250 = vmul.f32 %v3232, %v1182
    %v3251 = vmul.f32 %v3244, %v1183
    %v3252 = vmul.f32 %v3241, %v1182
    %v3253 = vmul.f32 %v3237, %v1183
    %v3254 = vmul.f32 %v3233, %v1182
    %v3255 = vmul.f32 %v3245, %v1183
    %v3256 = vmul.f32 %v3242, %v1182
    %v3257 = vmul.f32 %v3238, %v1183
    %v3258 = vmul.f32 %v3234, %v1182
    %v3259 = vmul.f32 %v3246, %v1183
    %v3260 = vmul.f32 %v3243, %v1182
    %v3261 = vmul.f32 %v3239, %v1183
    %v3262 = vmul.f32 %v3235, %v1182
    %v3263 = vmul.f32 %v3247, %v1183
    %v3264 = vpack.c.bf16 %v3249, %v3248
    %v3265 = vpack.c.bf16 %v3251, %v3250
    %v3266 = vpack.c.bf16 %v3253, %v3252
    %v3267 = vpack.c.bf16 %v3255, %v3254
    %v3268 = vpack.c.bf16 %v3257, %v3256
    %v3269 = vpack.c.bf16 %v3259, %v3258
    %v3270 = vpack.c.bf16 %v3261, %v3260
    %v3271 = vpack.c.bf16 %v3263, %v3262
    %3272 = vst [vmem:[#allocation2 + $0x180] sm:$0xff] %v3264
    %3273 = vst [vmem:[#allocation2 + $0x188] sm:$0xff] %v3265
    %3274 = vst [vmem:[#allocation2 + $0x190] sm:$0xff] %v3266
    %3275 = vst [vmem:[#allocation2 + $0x198] sm:$0xff] %v3267
    %3276 = vst [vmem:[#allocation2 + $0x1a0] sm:$0xff] %v3268
    %3277 = vst [vmem:[#allocation2 + $0x1a8] sm:$0xff] %v3269
    %3278 = vst [vmem:[#allocation2 + $0x1b0] sm:$0xff] %v3270
    %3279 = vst [vmem:[#allocation2 + $0x1b8] sm:$0xff] %v3271
    %3280 = vrot.lane.b32.xlu0 %v2752, 112
    %v3281 = vpop.permute.xlu0 %3280
    %3282 = vrot.lane.b32.xlu0 %v2756, 112
    %v3283 = vpop.permute.xlu0 %3282
    %3284 = vrot.lane.b32.xlu0 %v2760, 112
    %v3285 = vpop.permute.xlu0 %3284
    %3286 = vrot.lane.b32.xlu0 %v2764, 112
    %v3287 = vpop.permute.xlu0 %3286
    %3288 = vrot.lane.b32.xlu0 %v2753, 112
    %v3289 = vpop.permute.xlu0 %3288
    %3290 = vrot.lane.b32.xlu0 %v2757, 112
    %v3291 = vpop.permute.xlu0 %3290
    %3292 = vrot.lane.b32.xlu0 %v2761, 112
    %v3293 = vpop.permute.xlu0 %3292
    %3294 = vrot.lane.b32.xlu0 %v2765, 112
    %v3295 = vpop.permute.xlu0 %3294
    %3296 = vrot.lane.b32.xlu0 %v2754, 112
    %v3297 = vpop.permute.xlu0 %3296
    %3298 = vrot.lane.b32.xlu0 %v2758, 112
    %v3299 = vpop.permute.xlu0 %3298
    %3300 = vrot.lane.b32.xlu0 %v2762, 112
    %v3301 = vpop.permute.xlu0 %3300
    %3302 = vrot.lane.b32.xlu0 %v2766, 112
    %v3303 = vpop.permute.xlu0 %3302
    %3304 = vrot.lane.b32.xlu0 %v2755, 112
    %v3305 = vpop.permute.xlu0 %3304
    %3306 = vrot.lane.b32.xlu0 %v2759, 112
    %v3307 = vpop.permute.xlu0 %3306
    %3308 = vrot.lane.b32.xlu0 %v2763, 112
    %v3309 = vpop.permute.xlu0 %3308
    %3310 = vrot.lane.b32.xlu0 %v2767, 112
    %v3311 = vpop.permute.xlu0 %3310
    %v3312 = vsel %vm1248, %v3297, %v3305
    %v3313 = vsel %vm1248, %v3299, %v3307
    %v3314 = vsel %vm1248, %v3301, %v3309
    %v3315 = vsel %vm1248, %v3303, %v3311
    %v3316 = vsel %vm1248, %v3289, %v3297
    %v3317 = vsel %vm1248, %v3291, %v3299
    %v3318 = vsel %vm1248, %v3293, %v3301
    %v3319 = vsel %vm1248, %v3295, %v3303
    %v3320 = vsel %vm1248, %v3281, %v3289
    %v3321 = vsel %vm1248, %v3283, %v3291
    %v3322 = vsel %vm1248, %v3285, %v3293
    %v3323 = vsel %vm1248, %v3287, %v3295
    %v3324 = vsel %vm1248, %v3305, %v3281
    %v3325 = vsel %vm1248, %v3307, %v3283
    %v3326 = vsel %vm1248, %v3309, %v3285
    %v3327 = vsel %vm1248, %v3311, %v3287
    %v3328 = vmul.f32 %v3320, %v1265
    %v3329 = vmul.f32 %v3316, %v1266
    %v3330 = vmul.f32 %v3312, %v1265
    %v3331 = vmul.f32 %v3324, %v1266
    %v3332 = vmul.f32 %v3321, %v1265
    %v3333 = vmul.f32 %v3317, %v1266
    %v3334 = vmul.f32 %v3313, %v1265
    %v3335 = vmul.f32 %v3325, %v1266
    %v3336 = vmul.f32 %v3322, %v1265
    %v3337 = vmul.f32 %v3318, %v1266
    %v3338 = vmul.f32 %v3314, %v1265
    %v3339 = vmul.f32 %v3326, %v1266
    %v3340 = vmul.f32 %v3323, %v1265
    %v3341 = vmul.f32 %v3319, %v1266
    %v3342 = vmul.f32 %v3315, %v1265
    %v3343 = vmul.f32 %v3327, %v1266
    %v3344 = vpack.c.bf16 %v3329, %v3328
    %v3345 = vpack.c.bf16 %v3331, %v3330
    %v3346 = vpack.c.bf16 %v3333, %v3332
    %v3347 = vpack.c.bf16 %v3335, %v3334
    %v3348 = vpack.c.bf16 %v3337, %v3336
    %v3349 = vpack.c.bf16 %v3339, %v3338
    %v3350 = vpack.c.bf16 %v3341, %v3340
    %v3351 = vpack.c.bf16 %v3343, %v3342
    %3352 = vst [vmem:[#allocation2 + $0x1c0] sm:$0xff] %v3344
    %3353 = vst [vmem:[#allocation2 + $0x1c8] sm:$0xff] %v3345
    %3354 = vst [vmem:[#allocation2 + $0x1d0] sm:$0xff] %v3346
    %3355 = vst [vmem:[#allocation2 + $0x1d8] sm:$0xff] %v3347
    %3356 = vst [vmem:[#allocation2 + $0x1e0] sm:$0xff] %v3348
    %3357 = vst [vmem:[#allocation2 + $0x1e8] sm:$0xff] %v3349
    %3358 = vst [vmem:[#allocation2 + $0x1f0] sm:$0xff] %v3350
    %3359 = vst [vmem:[#allocation2 + $0x1f8] sm:$0xff] %v3351
    %3360 = vrot.lane.b32.xlu0 %v2752, 111
    %v3361 = vpop.permute.xlu0 %3360
    %3362 = vrot.lane.b32.xlu0 %v2756, 111
    %v3363 = vpop.permute.xlu0 %3362
    %3364 = vrot.lane.b32.xlu0 %v2760, 111
    %v3365 = vpop.permute.xlu0 %3364
    %3366 = vrot.lane.b32.xlu0 %v2764, 111
    %v3367 = vpop.permute.xlu0 %3366
    %3368 = vrot.lane.b32.xlu0 %v2753, 111
    %v3369 = vpop.permute.xlu0 %3368
    %3370 = vrot.lane.b32.xlu0 %v2757, 111
    %v3371 = vpop.permute.xlu0 %3370
    %3372 = vrot.lane.b32.xlu0 %v2761, 111
    %v3373 = vpop.permute.xlu0 %3372
    %3374 = vrot.lane.b32.xlu0 %v2765, 111
    %v3375 = vpop.permute.xlu0 %3374
    %3376 = vrot.lane.b32.xlu0 %v2754, 111
    %v3377 = vpop.permute.xlu0 %3376
    %3378 = vrot.lane.b32.xlu0 %v2758, 111
    %v3379 = vpop.permute.xlu0 %3378
    %3380 = vrot.lane.b32.xlu0 %v2762, 111
    %v3381 = vpop.permute.xlu0 %3380
    %3382 = vrot.lane.b32.xlu0 %v2766, 111
    %v3383 = vpop.permute.xlu0 %3382
    %3384 = vrot.lane.b32.xlu0 %v2755, 111
    %v3385 = vpop.permute.xlu0 %3384
    %3386 = vrot.lane.b32.xlu0 %v2759, 111
    %v3387 = vpop.permute.xlu0 %3386
    %3388 = vrot.lane.b32.xlu0 %v2763, 111
    %v3389 = vpop.permute.xlu0 %3388
    %3390 = vrot.lane.b32.xlu0 %v2767, 111
    %v3391 = vpop.permute.xlu0 %3390
    %v3392 = vsel %vm1331, %v3377, %v3385
    %v3393 = vsel %vm1331, %v3379, %v3387
    %v3394 = vsel %vm1331, %v3381, %v3389
    %v3395 = vsel %vm1331, %v3383, %v3391
    %v3396 = vsel %vm1331, %v3369, %v3377
    %v3397 = vsel %vm1331, %v3371, %v3379
    %v3398 = vsel %vm1331, %v3373, %v3381
    %v3399 = vsel %vm1331, %v3375, %v3383
    %v3400 = vsel %vm1331, %v3361, %v3369
    %v3401 = vsel %vm1331, %v3363, %v3371
    %v3402 = vsel %vm1331, %v3365, %v3373
    %v3403 = vsel %vm1331, %v3367, %v3375
    %v3404 = vsel %vm1331, %v3385, %v3361
    %v3405 = vsel %vm1331, %v3387, %v3363
    %v3406 = vsel %vm1331, %v3389, %v3365
    %v3407 = vsel %vm1331, %v3391, %v3367
    %v3408 = vmul.f32 %v3400, %v1348
    %v3409 = vmul.f32 %v3396, %v1349
    %v3410 = vmul.f32 %v3392, %v1348
    %v3411 = vmul.f32 %v3404, %v1349
    %v3412 = vmul.f32 %v3401, %v1348
    %v3413 = vmul.f32 %v3397, %v1349
    %v3414 = vmul.f32 %v3393, %v1348
    %v3415 = vmul.f32 %v3405, %v1349
    %v3416 = vmul.f32 %v3402, %v1348
    %v3417 = vmul.f32 %v3398, %v1349
    %v3418 = vmul.f32 %v3394, %v1348
    %v3419 = vmul.f32 %v3406, %v1349
    %v3420 = vmul.f32 %v3403, %v1348
    %v3421 = vmul.f32 %v3399, %v1349
    %v3422 = vmul.f32 %v3395, %v1348
    %v3423 = vmul.f32 %v3407, %v1349
    %v3424 = vpack.c.bf16 %v3409, %v3408
    %v3425 = vpack.c.bf16 %v3411, %v3410
    %v3426 = vpack.c.bf16 %v3413, %v3412
    %v3427 = vpack.c.bf16 %v3415, %v3414
    %v3428 = vpack.c.bf16 %v3417, %v3416
    %v3429 = vpack.c.bf16 %v3419, %v3418
    %v3430 = vpack.c.bf16 %v3421, %v3420
    %v3431 = vpack.c.bf16 %v3423, %v3422
    %3432 = vst [vmem:[#allocation2 + $0x200] sm:$0xff] %v3424
    %3433 = vst [vmem:[#allocation2 + $0x208] sm:$0xff] %v3425
    %3434 = vst [vmem:[#allocation2 + $0x210] sm:$0xff] %v3426
    %3435 = vst [vmem:[#allocation2 + $0x218] sm:$0xff] %v3427
    %3436 = vst [vmem:[#allocation2 + $0x220] sm:$0xff] %v3428
    %3437 = vst [vmem:[#allocation2 + $0x228] sm:$0xff] %v3429
    %3438 = vst [vmem:[#allocation2 + $0x230] sm:$0xff] %v3430
    %3439 = vst [vmem:[#allocation2 + $0x238] sm:$0xff] %v3431
    %v3440 = vld [vmem:[%s8] sm:$0xff]
    %v3441 = vld [vmem:[%s8 + $0x8] sm:$0xf]
    %v3442 = vld [vmem:[%s8 + $0xc] sm:$0xff]
    %v3443 = vld [vmem:[%s8 + $0x14] sm:$0xf]
    %v3444 = vld [vmem:[%s8 + $0x18] sm:$0xff]
    %v3445 = vld [vmem:[%s8 + $0x20] sm:$0xf]
    %v3446 = vld [vmem:[%s8 + $0x24] sm:$0xff]
    %v3447 = vld [vmem:[%s8 + $0x2c] sm:$0xf]
    %v3448 = vld [vmem:[#allocation2] sm:$0xff]
    %v3449 = vld [vmem:[#allocation2 + $0x8] sm:$0xff]
    %v3450 = vld [vmem:[#allocation2 + $0x10] sm:$0xff]
    %v3451 = vld [vmem:[#allocation2 + $0x18] sm:$0xff]
    %v3452 = vld [vmem:[#allocation2 + $0x20] sm:$0xff]
    %v3453 = vld [vmem:[#allocation2 + $0x28] sm:$0xff]
    %v3454 = vld [vmem:[#allocation2 + $0x30] sm:$0xff]
    %v3455 = vld [vmem:[#allocation2 + $0x38] sm:$0xff]
    %v3456 = vld [vmem:[#allocation2 + $0x40] sm:$0xff]
    %v3457 = vld [vmem:[#allocation2 + $0x48] sm:$0xff]
    %v3458 = vld [vmem:[#allocation2 + $0x50] sm:$0xff]
    %v3459 = vld [vmem:[#allocation2 + $0x58] sm:$0xff]
    %v3460 = vld [vmem:[#allocation2 + $0x60] sm:$0xff]
    %v3461 = vld [vmem:[#allocation2 + $0x68] sm:$0xff]
    %v3462 = vld [vmem:[#allocation2 + $0x70] sm:$0xff]
    %v3463 = vld [vmem:[#allocation2 + $0x78] sm:$0xff]
    %v3464 = vld [vmem:[#allocation2 + $0x80] sm:$0xff]
    %v3465 = vld [vmem:[#allocation2 + $0x88] sm:$0xff]
    %v3466 = vld [vmem:[#allocation2 + $0x90] sm:$0xff]
    %v3467 = vld [vmem:[#allocation2 + $0x98] sm:$0xff]
    %v3468 = vld [vmem:[#allocation2 + $0xa0] sm:$0xff]
    %v3469 = vld [vmem:[#allocation2 + $0xa8] sm:$0xff]
    %v3470 = vld [vmem:[#allocation2 + $0xb0] sm:$0xff]
    %v3471 = vld [vmem:[#allocation2 + $0xb8] sm:$0xff]
    %v3472 = vld [vmem:[#allocation2 + $0xc0] sm:$0xff]
    %v3473 = vld [vmem:[#allocation2 + $0xc8] sm:$0xff]
    %v3474 = vld [vmem:[#allocation2 + $0xd0] sm:$0xff]
    %v3475 = vld [vmem:[#allocation2 + $0xd8] sm:$0xff]
    %v3476 = vld [vmem:[#allocation2 + $0xe0] sm:$0xff]
    %v3477 = vld [vmem:[#allocation2 + $0xe8] sm:$0xff]
    %v3478 = vld [vmem:[#allocation2 + $0xf0] sm:$0xff]
    %v3479 = vld [vmem:[#allocation2 + $0xf8] sm:$0xff]
    %v3480 = vld [vmem:[#allocation2 + $0x100] sm:$0xff]
    %v3481 = vld [vmem:[#allocation2 + $0x108] sm:$0xff]
    %v3482 = vld [vmem:[#allocation2 + $0x110] sm:$0xff]
    %v3483 = vld [vmem:[#allocation2 + $0x118] sm:$0xff]
    %v3484 = vld [vmem:[#allocation2 + $0x120] sm:$0xff]
    %v3485 = vld [vmem:[#allocation2 + $0x128] sm:$0xff]
    %v3486 = vld [vmem:[#allocation2 + $0x130] sm:$0xff]
    %v3487 = vld [vmem:[#allocation2 + $0x138] sm:$0xff]
    %v3488 = vld [vmem:[#allocation2 + $0x140] sm:$0xff]
    %v3489 = vld [vmem:[#allocation2 + $0x148] sm:$0xff]
    %v3490 = vld [vmem:[#allocation2 + $0x150] sm:$0xff]
    %v3491 = vld [vmem:[#allocation2 + $0x158] sm:$0xff]
    %v3492 = vld [vmem:[#allocation2 + $0x160] sm:$0xff]
    %v3493 = vld [vmem:[#allocation2 + $0x168] sm:$0xff]
    %v3494 = vld [vmem:[#allocation2 + $0x170] sm:$0xff]
    %v3495 = vld [vmem:[#allocation2 + $0x178] sm:$0xff]
    %v3496 = vld [vmem:[#allocation2 + $0x180] sm:$0xff]
    %v3497 = vld [vmem:[#allocation2 + $0x188] sm:$0xff]
    %v3498 = vld [vmem:[#allocation2 + $0x190] sm:$0xff]
    %v3499 = vld [vmem:[#allocation2 + $0x198] sm:$0xff]
    %v3500 = vld [vmem:[#allocation2 + $0x1a0] sm:$0xff]
    %v3501 = vld [vmem:[#allocation2 + $0x1a8] sm:$0xff]
    %v3502 = vld [vmem:[#allocation2 + $0x1b0] sm:$0xff]
    %v3503 = vld [vmem:[#allocation2 + $0x1b8] sm:$0xff]
    %v3504 = vld [vmem:[#allocation2 + $0x1c0] sm:$0xff]
    %v3505 = vld [vmem:[#allocation2 + $0x1c8] sm:$0xff]
    %v3506 = vld [vmem:[#allocation2 + $0x1d0] sm:$0xff]
    %v3507 = vld [vmem:[#allocation2 + $0x1d8] sm:$0xff]
    %v3508 = vld [vmem:[#allocation2 + $0x1e0] sm:$0xff]
    %v3509 = vld [vmem:[#allocation2 + $0x1e8] sm:$0xff]
    %v3510 = vld [vmem:[#allocation2 + $0x1f0] sm:$0xff]
    %v3511 = vld [vmem:[#allocation2 + $0x1f8] sm:$0xff]
    %v3512 = vld [vmem:[#allocation2 + $0x200] sm:$0xff]
    %v3513 = vld [vmem:[#allocation2 + $0x208] sm:$0xff]
    %v3514 = vld [vmem:[#allocation2 + $0x210] sm:$0xff]
    %v3515 = vld [vmem:[#allocation2 + $0x218] sm:$0xff]
    %v3516 = vld [vmem:[#allocation2 + $0x220] sm:$0xff]
    %v3517 = vld [vmem:[#allocation2 + $0x228] sm:$0xff]
    %v3518 = vld [vmem:[#allocation2 + $0x230] sm:$0xff]
    %v3519 = vld [vmem:[#allocation2 + $0x238] sm:$0xff]
    %v3520 = vld [vmem:[%s9] sm:$0xff]
    %v3521 = vld [vmem:[%s9 + $0x8] sm:$0xff]
    %v3522 = vld [vmem:[%s9 + $0x10] sm:$0xff]
    %v3523 = vld [vmem:[%s9 + $0x18] sm:$0xff]
    %3525 = vset.pattern.permute.xlu0 0
    %3526 = vperm.xlu0 %3525, %v3520
    %v3527 = vpop.permute.xlu0 %3526
    %3530 = vset.pattern.permute.xlu0 0
    %3531 = vperm.xlu0 %3530, %v3521
    %v3532 = vpop.permute.xlu0 %3531
    %3535 = vset.pattern.permute.xlu0 0
    %3536 = vperm.xlu0 %3535, %v3522
    %v3537 = vpop.permute.xlu0 %3536
    %3540 = vset.pattern.permute.xlu0 0
    %3541 = vperm.xlu0 %3540, %v3523
    %v3542 = vpop.permute.xlu0 %3541
    %v3552 = vunpack.c.l.b16 %v3440
    %v3553 = vunpack.c.h.b16 %v3440
    %v3554 = vunpack.c.l.b16 %v3441
    %v3555 = vunpack.c.l.b16 %v3442
    %v3556 = vunpack.c.h.b16 %v3442
    %v3557 = vunpack.c.l.b16 %v3443
    %v3558 = vunpack.c.l.b16 %v3444
    %v3559 = vunpack.c.h.b16 %v3444
    %v3560 = vunpack.c.l.b16 %v3445
    %v3561 = vunpack.c.l.b16 %v3446
    %v3562 = vunpack.c.h.b16 %v3446
    %v3563 = vunpack.c.l.b16 %v3447
    %v3564 = vpack.c.b16 %v3555, %v3552
    %v3565 = vpack.c.b16 %v3556, %v3553
    %v3566 = vpack.c.b16 %v3557, %v3554
    %v3567 = vpack.c.b16 %v3561, %v3558
    %v3568 = vpack.c.b16 %v3562, %v3559
    %v3569 = vpack.c.b16 %v3563, %v3560
    %v3646 = vunpack.c.l.b16 %v3448
    %v3647 = vunpack.c.h.b16 %v3448
    %v3648 = vunpack.c.l.b16 %v3449
    %v3649 = vunpack.c.h.b16 %v3449
    %v3650 = vunpack.c.l.b16 %v3450
    %v3651 = vunpack.c.h.b16 %v3450
    %v3652 = vunpack.c.l.b16 %v3451
    %v3653 = vunpack.c.h.b16 %v3451
    %v3654 = vunpack.c.l.b16 %v3452
    %v3655 = vunpack.c.h.b16 %v3452
    %v3656 = vunpack.c.l.b16 %v3453
    %v3657 = vunpack.c.h.b16 %v3453
    %v3658 = vunpack.c.l.b16 %v3454
    %v3659 = vunpack.c.h.b16 %v3454
    %v3660 = vunpack.c.l.b16 %v3455
    %v3661 = vunpack.c.h.b16 %v3455
    %v3662 = vunpack.c.l.b16 %v3456
    %v3663 = vunpack.c.h.b16 %v3456
    %v3664 = vunpack.c.l.b16 %v3457
    %v3665 = vunpack.c.h.b16 %v3457
    %v3666 = vunpack.c.l.b16 %v3458
    %v3667 = vunpack.c.h.b16 %v3458
    %v3668 = vunpack.c.l.b16 %v3459
    %v3669 = vunpack.c.h.b16 %v3459
    %v3670 = vunpack.c.l.b16 %v3460
    %v3671 = vunpack.c.h.b16 %v3460
    %v3672 = vunpack.c.l.b16 %v3461
    %v3673 = vunpack.c.h.b16 %v3461
    %v3674 = vunpack.c.l.b16 %v3462
    %v3675 = vunpack.c.h.b16 %v3462
    %v3676 = vunpack.c.l.b16 %v3463
    %v3677 = vunpack.c.h.b16 %v3463
    %v3678 = vunpack.c.l.b16 %v3464
    %v3679 = vunpack.c.h.b16 %v3464
    %v3680 = vunpack.c.l.b16 %v3465
    %v3681 = vunpack.c.h.b16 %v3465
    %v3682 = vunpack.c.l.b16 %v3466
    %v3683 = vunpack.c.h.b16 %v3466
    %v3684 = vunpack.c.l.b16 %v3467
    %v3685 = vunpack.c.h.b16 %v3467
    %v3686 = vunpack.c.l.b16 %v3468
    %v3687 = vunpack.c.h.b16 %v3468
    %v3688 = vunpack.c.l.b16 %v3469
    %v3689 = vunpack.c.h.b16 %v3469
    %v3690 = vunpack.c.l.b16 %v3470
    %v3691 = vunpack.c.h.b16 %v3470
    %v3692 = vunpack.c.l.b16 %v3471
    %v3693 = vunpack.c.h.b16 %v3471
    %v3694 = vunpack.c.l.b16 %v3472
    %v3695 = vunpack.c.h.b16 %v3472
    %v3696 = vunpack.c.l.b16 %v3473
    %v3697 = vunpack.c.h.b16 %v3473
    %v3698 = vunpack.c.l.b16 %v3474
    %v3699 = vunpack.c.h.b16 %v3474
    %v3700 = vunpack.c.l.b16 %v3475
    %v3701 = vunpack.c.h.b16 %v3475
    %v3702 = vunpack.c.l.b16 %v3476
    %v3703 = vunpack.c.h.b16 %v3476
    %v3704 = vunpack.c.l.b16 %v3477
    %v3705 = vunpack.c.h.b16 %v3477
    %v3706 = vunpack.c.l.b16 %v3478
    %v3707 = vunpack.c.h.b16 %v3478
    %v3708 = vunpack.c.l.b16 %v3479
    %v3709 = vunpack.c.h.b16 %v3479
    %v3710 = vunpack.c.l.b16 %v3480
    %v3711 = vunpack.c.h.b16 %v3480
    %v3712 = vunpack.c.l.b16 %v3481
    %v3713 = vunpack.c.h.b16 %v3481
    %v3714 = vunpack.c.l.b16 %v3482
    %v3715 = vunpack.c.h.b16 %v3482
    %v3716 = vunpack.c.l.b16 %v3483
    %v3717 = vunpack.c.h.b16 %v3483
    %v3718 = vunpack.c.l.b16 %v3484
    %v3719 = vunpack.c.h.b16 %v3484
    %v3720 = vunpack.c.l.b16 %v3485
    %v3721 = vunpack.c.h.b16 %v3485
    %v3722 = vunpack.c.l.b16 %v3486
    %v3723 = vunpack.c.h.b16 %v3486
    %v3724 = vunpack.c.l.b16 %v3487
    %v3725 = vunpack.c.h.b16 %v3487
    %v3726 = vunpack.c.l.b16 %v3488
    %v3727 = vunpack.c.h.b16 %v3488
    %v3728 = vunpack.c.l.b16 %v3489
    %v3729 = vunpack.c.h.b16 %v3489
    %v3730 = vunpack.c.l.b16 %v3490
    %v3731 = vunpack.c.h.b16 %v3490
    %v3732 = vunpack.c.l.b16 %v3491
    %v3733 = vunpack.c.h.b16 %v3491
    %v3734 = vunpack.c.l.b16 %v3492
    %v3735 = vunpack.c.h.b16 %v3492
    %v3736 = vunpack.c.l.b16 %v3493
    %v3737 = vunpack.c.h.b16 %v3493
    %v3738 = vunpack.c.l.b16 %v3494
    %v3739 = vunpack.c.h.b16 %v3494
    %v3740 = vunpack.c.l.b16 %v3495
    %v3741 = vunpack.c.h.b16 %v3495
    %v3742 = vunpack.c.l.b16 %v3496
    %v3743 = vunpack.c.h.b16 %v3496
    %v3744 = vunpack.c.l.b16 %v3497
    %v3745 = vunpack.c.h.b16 %v3497
    %v3746 = vunpack.c.l.b16 %v3498
    %v3747 = vunpack.c.h.b16 %v3498
    %v3748 = vunpack.c.l.b16 %v3499
    %v3749 = vunpack.c.h.b16 %v3499
    %v3750 = vunpack.c.l.b16 %v3500
    %v3751 = vunpack.c.h.b16 %v3500
    %v3752 = vunpack.c.l.b16 %v3501
    %v3753 = vunpack.c.h.b16 %v3501
    %v3754 = vunpack.c.l.b16 %v3502
    %v3755 = vunpack.c.h.b16 %v3502
    %v3756 = vunpack.c.l.b16 %v3503
    %v3757 = vunpack.c.h.b16 %v3503
    %v3758 = vunpack.c.l.b16 %v3504
    %v3759 = vunpack.c.h.b16 %v3504
    %v3760 = vunpack.c.l.b16 %v3505
    %v3761 = vunpack.c.h.b16 %v3505
    %v3762 = vunpack.c.l.b16 %v3506
    %v3763 = vunpack.c.h.b16 %v3506
    %v3764 = vunpack.c.l.b16 %v3507
    %v3765 = vunpack.c.h.b16 %v3507
    %v3766 = vunpack.c.l.b16 %v3508
    %v3767 = vunpack.c.h.b16 %v3508
    %v3768 = vunpack.c.l.b16 %v3509
    %v3769 = vunpack.c.h.b16 %v3509
    %v3770 = vunpack.c.l.b16 %v3510
    %v3771 = vunpack.c.h.b16 %v3510
    %v3772 = vunpack.c.l.b16 %v3511
    %v3773 = vunpack.c.h.b16 %v3511
    %v3774 = vunpack.c.l.b16 %v3512
    %v3775 = vunpack.c.h.b16 %v3512
    %v3776 = vunpack.c.l.b16 %v3513
    %v3777 = vunpack.c.h.b16 %v3513
    %v3778 = vunpack.c.l.b16 %v3514
    %v3779 = vunpack.c.h.b16 %v3514
    %v3780 = vunpack.c.l.b16 %v3515
    %v3781 = vunpack.c.h.b16 %v3515
    %v3782 = vunpack.c.l.b16 %v3516
    %v3783 = vunpack.c.h.b16 %v3516
    %v3784 = vunpack.c.l.b16 %v3517
    %v3785 = vunpack.c.h.b16 %v3517
    %v3786 = vunpack.c.l.b16 %v3518
    %v3787 = vunpack.c.h.b16 %v3518
    %v3788 = vunpack.c.l.b16 %v3519
    %v3789 = vunpack.c.h.b16 %v3519
    %v3790 = vpack.c.b16 %v3650, %v3646
    %v3791 = vpack.c.b16 %v3651, %v3647
    %v3792 = vpack.c.b16 %v3652, %v3648
    %v3793 = vpack.c.b16 %v3653, %v3649
    %v3794 = vpack.c.b16 %v3658, %v3654
    %v3795 = vpack.c.b16 %v3659, %v3655
    %v3796 = vpack.c.b16 %v3660, %v3656
    %v3797 = vpack.c.b16 %v3661, %v3657
    %v3798 = vpack.c.b16 %v3666, %v3662
    %v3799 = vpack.c.b16 %v3667, %v3663
    %v3800 = vpack.c.b16 %v3668, %v3664
    %v3801 = vpack.c.b16 %v3669, %v3665
    %v3802 = vpack.c.b16 %v3674, %v3670
    %v3803 = vpack.c.b16 %v3675, %v3671
    %v3804 = vpack.c.b16 %v3676, %v3672
    %v3805 = vpack.c.b16 %v3677, %v3673
    %v3806 = vpack.c.b16 %v3682, %v3678
    %v3807 = vpack.c.b16 %v3683, %v3679
    %v3808 = vpack.c.b16 %v3684, %v3680
    %v3809 = vpack.c.b16 %v3685, %v3681
    %v3810 = vpack.c.b16 %v3690, %v3686
    %v3811 = vpack.c.b16 %v3691, %v3687
    %v3812 = vpack.c.b16 %v3692, %v3688
    %v3813 = vpack.c.b16 %v3693, %v3689
    %v3814 = vpack.c.b16 %v3698, %v3694
    %v3815 = vpack.c.b16 %v3699, %v3695
    %v3816 = vpack.c.b16 %v3700, %v3696
    %v3817 = vpack.c.b16 %v3701, %v3697
    %v3818 = vpack.c.b16 %v3706, %v3702
    %v3819 = vpack.c.b16 %v3707, %v3703
    %v3820 = vpack.c.b16 %v3708, %v3704
    %v3821 = vpack.c.b16 %v3709, %v3705
    %v3822 = vpack.c.b16 %v3714, %v3710
    %v3823 = vpack.c.b16 %v3715, %v3711
    %v3824 = vpack.c.b16 %v3716, %v3712
    %v3825 = vpack.c.b16 %v3717, %v3713
    %v3826 = vpack.c.b16 %v3722, %v3718
    %v3827 = vpack.c.b16 %v3723, %v3719
    %v3828 = vpack.c.b16 %v3724, %v3720
    %v3829 = vpack.c.b16 %v3725, %v3721
    %v3830 = vpack.c.b16 %v3730, %v3726
    %v3831 = vpack.c.b16 %v3731, %v3727
    %v3832 = vpack.c.b16 %v3732, %v3728
    %v3833 = vpack.c.b16 %v3733, %v3729
    %v3834 = vpack.c.b16 %v3738, %v3734
    %v3835 = vpack.c.b16 %v3739, %v3735
    %v3836 = vpack.c.b16 %v3740, %v3736
    %v3837 = vpack.c.b16 %v3741, %v3737
    %v3838 = vpack.c.b16 %v3746, %v3742
    %v3839 = vpack.c.b16 %v3747, %v3743
    %v3840 = vpack.c.b16 %v3748, %v3744
    %v3841 = vpack.c.b16 %v3749, %v3745
    %v3842 = vpack.c.b16 %v3754, %v3750
    %v3843 = vpack.c.b16 %v3755, %v3751
    %v3844 = vpack.c.b16 %v3756, %v3752
    %v3845 = vpack.c.b16 %v3757, %v3753
    %v3846 = vpack.c.b16 %v3762, %v3758
    %v3847 = vpack.c.b16 %v3763, %v3759
    %v3848 = vpack.c.b16 %v3764, %v3760
    %v3849 = vpack.c.b16 %v3765, %v3761
    %v3850 = vpack.c.b16 %v3770, %v3766
    %v3851 = vpack.c.b16 %v3771, %v3767
    %v3852 = vpack.c.b16 %v3772, %v3768
    %v3853 = vpack.c.b16 %v3773, %v3769
    %v3854 = vpack.c.b16 %v3778, %v3774
    %v3855 = vpack.c.b16 %v3779, %v3775
    %v3856 = vpack.c.b16 %v3780, %v3776
    %v3857 = vpack.c.b16 %v3781, %v3777
    %v3858 = vpack.c.b16 %v3786, %v3782
    %v3859 = vpack.c.b16 %v3787, %v3783
    %v3860 = vpack.c.b16 %v3788, %v3784
    %v3861 = vpack.c.b16 %v3789, %v3785
    %v3935 = vsel %vm1852, %v3566, 0
    %v3938 = vsel %vm1852, %v3569, 0
    %3940 = vmatpush.bf16.msra.mxu0 %v3818
    %3941 = vmatpush.bf16.msra.mxu0 %v3814
    %3942 = vmatpush.bf16.msra.mxu0 %v3810
    %3943 = vmatpush.bf16.msra.mxu0 %v3806
    %3944 = vmatpush.bf16.msra.mxu0 %v3802
    %3945 = vmatpush.bf16.msra.mxu0 %v3798
    %3946 = vmatpush.bf16.msra.mxu0 %v3794
    %3947 = vmatpush.bf16.msra.mxu0 %v3790
    %3948 = vmatmul.bf16.gmra.mxu0 %v3564
    %v3949 = vpop.f32.mrf.mxu0
    %v3950 = vadd.f32 %v3527, %v3949
    %v3951 = vpop.f32.mrf.mxu0
    %v3952 = vadd.f32 %v3532, %v3951
    %3953 = vmatmul.bf16.gmra.mxu0 %v3567
    %v3954 = vpop.f32.mrf.mxu0
    %v3955 = vadd.f32 %v3537, %v3954
    %v3956 = vpop.f32.mrf.mxu0
    %v3957 = vadd.f32 %v3542, %v3956
    %3958 = vdwg.mxu0
    %3959 = vmatpush.bf16.msra.mxu0 %v3850
    %3960 = vmatpush.bf16.msra.mxu0 %v3846
    %3961 = vmatpush.bf16.msra.mxu0 %v3842
    %3962 = vmatpush.bf16.msra.mxu0 %v3838
    %3963 = vmatpush.bf16.msra.mxu0 %v3834
    %3964 = vmatpush.bf16.msra.mxu0 %v3830
    %3965 = vmatpush.bf16.msra.mxu0 %v3826
    %3966 = vmatpush.bf16.msra.mxu0 %v3822
    %3967 = vmatmul.bf16.gmra.mxu0 %v3565
    %v3968 = vpop.f32.mrf.mxu0
    %v3969 = vadd.f32 %v3950, %v3968
    %v3970 = vpop.f32.mrf.mxu0
    %v3971 = vadd.f32 %v3952, %v3970
    %3972 = vmatmul.bf16.gmra.mxu0 %v3568
    %v3973 = vpop.f32.mrf.mxu0
    %v3974 = vadd.f32 %v3955, %v3973
    %v3975 = vpop.f32.mrf.mxu0
    %v3976 = vadd.f32 %v3957, %v3975
    %3977 = vdwg.mxu0
    %3978 = vmatpush.bf16.msra.mxu0 0
    %3979 = vmatpush.bf16.msra.mxu0 0
    %3980 = vmatpush.bf16.msra.mxu0 0
    %3981 = vmatpush.bf16.msra.mxu0 0
    %3982 = vmatpush.bf16.msra.mxu0 0
    %3983 = vmatpush.bf16.msra.mxu0 0
    %3984 = vmatpush.bf16.msra.mxu0 %v3858
    %3985 = vmatpush.bf16.msra.mxu0 %v3854
    %3986 = vmatmul.bf16.gmra.mxu0 %v3935
    %v3987 = vpop.f32.mrf.mxu0
    %v3988 = vadd.f32 %v3969, %v3987
    %v3989 = vpop.f32.mrf.mxu0
    %v3990 = vadd.f32 %v3971, %v3989
    %3991 = vmatmul.bf16.gmra.mxu0 %v3938
    %v3992 = vpop.f32.mrf.mxu0
    %v3993 = vadd.f32 %v3974, %v3992
    %v3994 = vpop.f32.mrf.mxu0
    %v3995 = vadd.f32 %v3976, %v3994
    %3996 = vdwg.mxu0
    %3997 = vmatpush.bf16.msra.mxu0 %v3819
    %3998 = vmatpush.bf16.msra.mxu0 %v3815
    %3999 = vmatpush.bf16.msra.mxu0 %v3811
    %4000 = vmatpush.bf16.msra.mxu0 %v3807
    %4001 = vmatpush.bf16.msra.mxu0 %v3803
    %4002 = vmatpush.bf16.msra.mxu0 %v3799
    %4003 = vmatpush.bf16.msra.mxu0 %v3795
    %4004 = vmatpush.bf16.msra.mxu0 %v3791
    %4005 = vmatmul.bf16.gmra.mxu0 %v3564
    %v4006 = vpop.f32.mrf.mxu0
    %v4007 = vadd.f32 %v3527, %v4006
    %v4008 = vpop.f32.mrf.mxu0
    %v4009 = vadd.f32 %v3532, %v4008
    %4010 = vmatmul.bf16.gmra.mxu0 %v3567
    %v4011 = vpop.f32.mrf.mxu0
    %v4012 = vadd.f32 %v3537, %v4011
    %v4013 = vpop.f32.mrf.mxu0
    %v4014 = vadd.f32 %v3542, %v4013
    %4015 = vdwg.mxu0
    %4016 = vmatpush.bf16.msra.mxu0 %v3851
    %4017 = vmatpush.bf16.msra.mxu0 %v3847
    %4018 = vmatpush.bf16.msra.mxu0 %v3843
    %4019 = vmatpush.bf16.msra.mxu0 %v3839
    %4020 = vmatpush.bf16.msra.mxu0 %v3835
    %4021 = vmatpush.bf16.msra.mxu0 %v3831
    %4022 = vmatpush.bf16.msra.mxu0 %v3827
    %4023 = vmatpush.bf16.msra.mxu0 %v3823
    %4024 = vmatmul.bf16.gmra.mxu0 %v3565
    %v4025 = vpop.f32.mrf.mxu0
    %v4026 = vadd.f32 %v4007, %v4025
    %v4027 = vpop.f32.mrf.mxu0
    %v4028 = vadd.f32 %v4009, %v4027
    %4029 = vmatmul.bf16.gmra.mxu0 %v3568
    %v4030 = vpop.f32.mrf.mxu0
    %v4031 = vadd.f32 %v4012, %v4030
    %v4032 = vpop.f32.mrf.mxu0
    %v4033 = vadd.f32 %v4014, %v4032
    %4034 = vdwg.mxu0
    %4035 = vmatpush.bf16.msra.mxu0 0
    %4036 = vmatpush.bf16.msra.mxu0 0
    %4037 = vmatpush.bf16.msra.mxu0 0
    %4038 = vmatpush.bf16.msra.mxu0 0
    %4039 = vmatpush.bf16.msra.mxu0 0
    %4040 = vmatpush.bf16.msra.mxu0 0
    %4041 = vmatpush.bf16.msra.mxu0 %v3859
    %4042 = vmatpush.bf16.msra.mxu0 %v3855
    %4043 = vmatmul.bf16.gmra.mxu0 %v3935
    %v4044 = vpop.f32.mrf.mxu0
    %v4045 = vadd.f32 %v4026, %v4044
    %v4046 = vpop.f32.mrf.mxu0
    %v4047 = vadd.f32 %v4028, %v4046
    %4048 = vmatmul.bf16.gmra.mxu0 %v3938
    %v4049 = vpop.f32.mrf.mxu0
    %v4050 = vadd.f32 %v4031, %v4049
    %v4051 = vpop.f32.mrf.mxu0
    %v4052 = vadd.f32 %v4033, %v4051
    %4053 = vdwg.mxu0
    %4054 = vmatpush.bf16.msra.mxu0 %v3820
    %4055 = vmatpush.bf16.msra.mxu0 %v3816
    %4056 = vmatpush.bf16.msra.mxu0 %v3812
    %4057 = vmatpush.bf16.msra.mxu0 %v3808
    %4058 = vmatpush.bf16.msra.mxu0 %v3804
    %4059 = vmatpush.bf16.msra.mxu0 %v3800
    %4060 = vmatpush.bf16.msra.mxu0 %v3796
    %4061 = vmatpush.bf16.msra.mxu0 %v3792
    %4062 = vmatmul.bf16.gmra.mxu0 %v3564
    %v4063 = vpop.f32.mrf.mxu0
    %v4064 = vadd.f32 %v3527, %v4063
    %v4065 = vpop.f32.mrf.mxu0
    %v4066 = vadd.f32 %v3532, %v4065
    %4067 = vmatmul.bf16.gmra.mxu0 %v3567
    %v4068 = vpop.f32.mrf.mxu0
    %v4069 = vadd.f32 %v3537, %v4068
    %v4070 = vpop.f32.mrf.mxu0
    %v4071 = vadd.f32 %v3542, %v4070
    %4072 = vdwg.mxu0
    %4073 = vmatpush.bf16.msra.mxu0 %v3852
    %4074 = vmatpush.bf16.msra.mxu0 %v3848
    %4075 = vmatpush.bf16.msra.mxu0 %v3844
    %4076 = vmatpush.bf16.msra.mxu0 %v3840
    %4077 = vmatpush.bf16.msra.mxu0 %v3836
    %4078 = vmatpush.bf16.msra.mxu0 %v3832
    %4079 = vmatpush.bf16.msra.mxu0 %v3828
    %4080 = vmatpush.bf16.msra.mxu0 %v3824
    %4081 = vmatmul.bf16.gmra.mxu0 %v3565
    %v4082 = vpop.f32.mrf.mxu0
    %v4083 = vadd.f32 %v4064, %v4082
    %v4084 = vpop.f32.mrf.mxu0
    %v4085 = vadd.f32 %v4066, %v4084
    %4086 = vmatmul.bf16.gmra.mxu0 %v3568
    %v4087 = vpop.f32.mrf.mxu0
    %v4088 = vadd.f32 %v4069, %v4087
    %v4089 = vpop.f32.mrf.mxu0
    %v4090 = vadd.f32 %v4071, %v4089
    %4091 = vdwg.mxu0
    %4092 = vmatpush.bf16.msra.mxu0 0
    %4093 = vmatpush.bf16.msra.mxu0 0
    %4094 = vmatpush.bf16.msra.mxu0 0
    %4095 = vmatpush.bf16.msra.mxu0 0
    %4096 = vmatpush.bf16.msra.mxu0 0
    %4097 = vmatpush.bf16.msra.mxu0 0
    %4098 = vmatpush.bf16.msra.mxu0 %v3860
    %4099 = vmatpush.bf16.msra.mxu0 %v3856
    %4100 = vmatmul.bf16.gmra.mxu0 %v3935
    %v4101 = vpop.f32.mrf.mxu0
    %v4102 = vadd.f32 %v4083, %v4101
    %v4103 = vpop.f32.mrf.mxu0
    %v4104 = vadd.f32 %v4085, %v4103
    %4105 = vmatmul.bf16.gmra.mxu0 %v3938
    %v4106 = vpop.f32.mrf.mxu0
    %v4107 = vadd.f32 %v4088, %v4106
    %v4108 = vpop.f32.mrf.mxu0
    %v4109 = vadd.f32 %v4090, %v4108
    %4110 = vdwg.mxu0
    %4111 = vmatpush.bf16.msra.mxu0 %v3821
    %4112 = vmatpush.bf16.msra.mxu0 %v3817
    %4113 = vmatpush.bf16.msra.mxu0 %v3813
    %4114 = vmatpush.bf16.msra.mxu0 %v3809
    %4115 = vmatpush.bf16.msra.mxu0 %v3805
    %4116 = vmatpush.bf16.msra.mxu0 %v3801
    %4117 = vmatpush.bf16.msra.mxu0 %v3797
    %4118 = vmatpush.bf16.msra.mxu0 %v3793
    %4119 = vmatmul.bf16.gmra.mxu0 %v3564
    %v4120 = vpop.f32.mrf.mxu0
    %v4121 = vadd.f32 %v3527, %v4120
    %v4122 = vpop.f32.mrf.mxu0
    %v4123 = vadd.f32 %v3532, %v4122
    %4124 = vmatmul.bf16.gmra.mxu0 %v3567
    %v4125 = vpop.f32.mrf.mxu0
    %v4126 = vadd.f32 %v3537, %v4125
    %v4127 = vpop.f32.mrf.mxu0
    %v4128 = vadd.f32 %v3542, %v4127
    %4129 = vdwg.mxu0
    %4130 = vmatpush.bf16.msra.mxu0 %v3853
    %4131 = vmatpush.bf16.msra.mxu0 %v3849
    %4132 = vmatpush.bf16.msra.mxu0 %v3845
    %4133 = vmatpush.bf16.msra.mxu0 %v3841
    %4134 = vmatpush.bf16.msra.mxu0 %v3837
    %4135 = vmatpush.bf16.msra.mxu0 %v3833
    %4136 = vmatpush.bf16.msra.mxu0 %v3829
    %4137 = vmatpush.bf16.msra.mxu0 %v3825
    %4138 = vmatmul.bf16.gmra.mxu0 %v3565
    %v4139 = vpop.f32.mrf.mxu0
    %v4140 = vadd.f32 %v4121, %v4139
    %v4141 = vpop.f32.mrf.mxu0
    %v4142 = vadd.f32 %v4123, %v4141
    %4143 = vmatmul.bf16.gmra.mxu0 %v3568
    %v4144 = vpop.f32.mrf.mxu0
    %v4145 = vadd.f32 %v4126, %v4144
    %v4146 = vpop.f32.mrf.mxu0
    %v4147 = vadd.f32 %v4128, %v4146
    %4148 = vdwg.mxu0
    %4149 = vmatpush.bf16.msra.mxu0 0
    %4150 = vmatpush.bf16.msra.mxu0 0
    %4151 = vmatpush.bf16.msra.mxu0 0
    %4152 = vmatpush.bf16.msra.mxu0 0
    %4153 = vmatpush.bf16.msra.mxu0 0
    %4154 = vmatpush.bf16.msra.mxu0 0
    %4155 = vmatpush.bf16.msra.mxu0 %v3861
    %4156 = vmatpush.bf16.msra.mxu0 %v3857
    %4157 = vmatmul.bf16.gmra.mxu0 %v3935
    %v4158 = vpop.f32.mrf.mxu0
    %v4159 = vadd.f32 %v4140, %v4158
    %v4160 = vpop.f32.mrf.mxu0
    %v4161 = vadd.f32 %v4142, %v4160
    %4162 = vmatmul.bf16.gmra.mxu0 %v3938
    %v4163 = vpop.f32.mrf.mxu0
    %v4164 = vadd.f32 %v4145, %v4163
    %v4165 = vpop.f32.mrf.mxu0
    %v4166 = vadd.f32 %v4147, %v4165
    %4167 = vdwg.mxu0
    %v4168 = vld [vmem:[%s0] sm:$0xff]
    %v4169 = vld [vmem:[%s0 + $0x8] sm:$0xff]
    %v4170 = vld [vmem:[%s0 + $0x10] sm:$0xff]
    %v4171 = vld [vmem:[%s0 + $0x18] sm:$0xff]
    %v4172 = vunpack.c.l.bf16 %v4168
    %v4173 = vunpack.c.h.bf16 %v4168
    %v4174 = vunpack.c.l.bf16 %v4169
    %v4175 = vunpack.c.h.bf16 %v4169
    %v4176 = vunpack.c.l.bf16 %v4170
    %v4177 = vunpack.c.h.bf16 %v4170
    %v4178 = vunpack.c.l.bf16 %v4171
    %v4179 = vunpack.c.h.bf16 %v4171
    %v4180 = vadd.f32 %v4172, %v3988
    %v4181 = vadd.f32 %v4173, %v4045
    %v4182 = vadd.f32 %v4174, %v3990
    %v4183 = vadd.f32 %v4175, %v4047
    %v4184 = vadd.f32 %v4176, %v3993
    %v4185 = vadd.f32 %v4177, %v4050
    %v4186 = vadd.f32 %v4178, %v3995
    %v4187 = vadd.f32 %v4179, %v4052
    %v4188 = vpack.c.bf16 %v4181, %v4180
    %v4189 = vpack.c.bf16 %v4183, %v4182
    %v4190 = vpack.c.bf16 %v4185, %v4184
    %v4191 = vpack.c.bf16 %v4187, %v4186
    %4192 = vst [vmem:[#allocation3] sm:$0xff] %v4188
    %4193 = vst [vmem:[#allocation3 + $0x8] sm:$0xff] %v4189
    %4194 = vst [vmem:[#allocation3 + $0x10] sm:$0xff] %v4190
    %4195 = vst [vmem:[#allocation3 + $0x18] sm:$0xff] %v4191
    %v4196 = vld [vmem:[%s157] sm:$0xff]
    %v4197 = vld [vmem:[%s157 + $0x8] sm:$0xff]
    %v4198 = vld [vmem:[%s157 + $0x10] sm:$0xff]
    %v4199 = vld [vmem:[%s157 + $0x18] sm:$0xff]
    %v4200 = vunpack.c.l.bf16 %v4196
    %v4201 = vunpack.c.h.bf16 %v4196
    %v4202 = vunpack.c.l.bf16 %v4197
    %v4203 = vunpack.c.h.bf16 %v4197
    %v4204 = vunpack.c.l.bf16 %v4198
    %v4205 = vunpack.c.h.bf16 %v4198
    %v4206 = vunpack.c.l.bf16 %v4199
    %v4207 = vunpack.c.h.bf16 %v4199
    %v4208 = vadd.f32 %v4200, %v4102
    %v4209 = vadd.f32 %v4201, %v4159
    %v4210 = vadd.f32 %v4202, %v4104
    %v4211 = vadd.f32 %v4203, %v4161
    %v4212 = vadd.f32 %v4204, %v4107
    %v4213 = vadd.f32 %v4205, %v4164
    %v4214 = vadd.f32 %v4206, %v4109
    %v4215 = vadd.f32 %v4207, %v4166
    %v4216 = vpack.c.bf16 %v4209, %v4208
    %v4217 = vpack.c.bf16 %v4211, %v4210
    %v4218 = vpack.c.bf16 %v4213, %v4212
    %v4219 = vpack.c.bf16 %v4215, %v4214
    %s4220 = scalar_lea.vmem [#allocation3], 32
    %4221 = vst [vmem:[%s4220] sm:$0xff] %v4216
    %4222 = vst [vmem:[%s4220 + $0x8] sm:$0xff] %v4217
    %4223 = vst [vmem:[%s4220 + $0x10] sm:$0xff] %v4218
    %4224 = vst [vmem:[%s4220 + $0x18] sm:$0xff] %v4219
    // Predicated region
    $region42: #{tpu_custom_call.1} parent=1 // pred_check
      _
    $region43: #{tpu_custom_call.1} parent=1 // pred_check_branch
      %4226 = sbr.rel (0) target = $region45
    $region44: #{tpu_custom_call.1} parent=1 // pred_region
      %4228 = vsyncadd [#allocation4], 0
      %s4229 = sshll.u32 [#allocation3], 4
      %s4230 = int_to_ptr.vmem [resolvable:$true] %s4229
      %s4231 = sshll.u32 %s10, 4
      %s4232 = int_to_ptr.hbm [resolvable:$true] %s4231
      %4237 = dma.vmem_to_hbm [thread:$0]  %s4230, 1024, %s4232, [#allocation4], 128, 128, 8
    $region45: #{tpu_custom_call.1} parent=1 // pred_fallthru
      _
    // Predicated region
    $region46: #{tpu_custom_call.1} parent=1 // pred_check
      _
    $region47: #{tpu_custom_call.1} parent=1 // pred_check_branch
      %4239 = sbr.rel (0) target = $region49
    $region48: #{tpu_custom_call.1} parent=1 // pred_region
      %4241 = dma.done [#allocation4], 1024
    $region49: #{tpu_custom_call.1} parent=1 // pred_fallthru
      _
    %4242 = vsyncpa [#allocation4], 1

</llo_original>
